<compile_context>
chip_gen: v7x
topology: tpu7x:2x2x1
jax: 0.10.0
libtpu: 0.0.40
codegen_flags: <defaults>
</compile_context>

<pallas_src>
import functools

import jax
import jax.numpy as jnp
from jax.experimental import pallas as pl
from jax.experimental.pallas import tpu as pltpu


def gat_layer_kernel(
    x_t_ref, x_all_ref, e_ref, mask_ref,
    wq_ref, bq_ref, wk_ref, bk_ref, wv_ref, bv_ref,
    ws_ref, bs_ref,
    g1_ref, beta1_ref,
    w1_ref, b1_ref, w2_ref, b2_ref,
    g2_ref, beta2_ref,
    sel_dh_ref, sel_hd_ref,
    out_ref,
    *, n_head, head_dim,
):
    f32 = jnp.float32
    scale = f32(1.0 / (head_dim ** 0.5))
    neg = f32(-1e30)

    x_t = x_t_ref[...]          # [T, D]    destination-node tile
    x_all = x_all_ref[...]      # [S, D]    all (padded) nodes, used as sources
    e = e_ref[...]              # [T, S, D] pre-projected edge features (edge j -> i)
    mask = mask_ref[...]        # [T, S]    adjacency mask (1 iff edge j -> i exists)

    T, S, D = e.shape
    H = n_head

    # ---- TransformerConv projections (MXU, all heads at once, lane-dense D) ----
    q = (jnp.dot(x_t, wq_ref[...], preferred_element_type=f32) + bq_ref[...]) * scale
    k = jnp.dot(x_all, wk_ref[...], preferred_element_type=f32) + bk_ref[...]
    v = jnp.dot(x_all, wv_ref[...], preferred_element_type=f32) + bv_ref[...]

    # ---- attention logits:  l[i,j,h] = (q_i,h . (k_j,h + e_ij,h)) / sqrt(C) ----
    # One VPU broadcast multiply, then the per-head channel reduction is a single
    # MXU matmul against the static block-diagonal head selector sel_dh [D, H].
    qke = q[:, None, :] * (k[None, :, :] + e)                        # [T, S, D]
    logits = jnp.dot(qke.reshape(T * S, D), sel_dh_ref[...],
                     preferred_element_type=f32).reshape(T, S, H)    # [T, S, H]

    mask3 = mask[:, :, None]                                         # [T, S, 1]
    logits = jnp.where(mask3 > 0, logits, neg)

    # ---- masked softmax over incoming edges j (axis=1), per (dest, head) ----
    m = jnp.max(logits, axis=1, keepdims=True)                       # [T, 1, H]
    p = jnp.exp(logits - m) * mask3
    denom = jnp.sum(p, axis=1, keepdims=True)
    denom = jnp.where(denom > 0, denom, f32(1.0))                    # isolated / padded nodes
    a = p * pl.reciprocal(denom, approx=True)                        # [T, S, H]

    # ---- messages:  o[i,h,c] = sum_j a[i,j,h] * (v_j,h,c + e_ij,h,c) ----
    # Dest-batched MXU matmul (contract over sources j), then a cheap
    # block-diagonal selection picks each head's own channel block.
    ve = v[None, :, :] + e                                           # [T, S, D]
    full = jax.lax.dot_general(
        a, ve, dimension_numbers=(((1,), (1,)), ((0,), (0,))),
        preferred_element_type=f32)                                  # [T, H, D]
    attn = jnp.sum(full * sel_hd_ref[...][None, :, :], axis=1)       # [T, D]

    # ---- root / skip connection (concat=True, beta=False -> plain add) ----
    mha = attn + jnp.dot(x_t, ws_ref[...], preferred_element_type=f32) + bs_ref[...]

    def layer_norm(z, g, b):
        mu = jnp.mean(z, axis=-1, keepdims=True)
        var = jnp.mean((z - mu) ** 2, axis=-1, keepdims=True)
        return (z - mu) * jax.lax.rsqrt(var + f32(1e-5)) * g + b

    # node_attr = node_attr + norm1(MHA(...))
    node = x_t + layer_norm(mha, g1_ref[...], beta1_ref[...])

    # FFN: Linear -> SiLU -> (Dropout: identity) -> Linear
    h1 = jnp.dot(node, w1_ref[...], preferred_element_type=f32) + b1_ref[...]
    h1 = h1 * jax.nn.sigmoid(h1)
    h2 = jnp.dot(h1, w2_ref[...], preferred_element_type=f32) + b2_ref[...]

    # node_attr = node_attr + norm2(FFN(node_attr))
    out_ref[...] = (node + layer_norm(h2, g2_ref[...], beta2_ref[...])).astype(out_ref.dtype)


def _choose_tile_rows(n_dst, n_src, d, vmem_budget_bytes):
    """Destination-node tile so the pipelined e-block fits the VMEM budget (v7x-safe)."""
    # Resident fixed cost: 6 DxD weights, ~12 D-vectors, full node features (x2 slack).
    fixed = (6 * d * d + 12 * d + 2 * n_src * d) * 4
    avail = max(vmem_budget_bytes - fixed, 1 << 20)
    # Dominant per-tile-row cost: double-buffered e block + f32 temporaries (qke, ve).
    per_row = 4 * n_src * d * 4
    t = max(8, min(int(avail // per_row), 128))
    t = (t // 8) * 8
    n_dst_pad = ((n_dst + 7) // 8) * 8
    return max(8, min(t, n_dst_pad))


def gat_layer(edge_index, node_attr, edge_attr, params, n_head,
              *, tile_rows=None, vmem_budget_bytes=40 * 1024 * 1024):
    N, D = node_attr.shape
    assert D % n_head == 0
    head_dim = D // n_head

    if tile_rows is None:
        tile_rows = _choose_tile_rows(N, ((N + 7) // 8) * 8, D, vmem_budget_bytes)
    T = int(tile_rows)
    assert T % 8 == 0
    Np = ((N + T - 1) // T) * T                   # pad node count to a tile multiple
    grid = (Np // T,)

    # ---- glue: pre-project edge features on the sparse edge list, then densify ----
    src = edge_index[0]
    dst = edge_index[1]
    # PyG TransformerConv's lin_edge has bias=False.
    e_proj = jnp.dot(edge_attr.astype(jnp.float32), params["we"])                  # [E, D]
    mask = jnp.zeros((Np, Np), jnp.float32).at[dst, src].set(1.0)                  # [Np, Np]
    e_dense = jnp.zeros((Np, Np, D), jnp.float32).at[dst, src].set(e_proj)         # [Np, Np, D]
    x_p = jnp.zeros((Np, D), jnp.float32).at[:N].set(node_attr.astype(jnp.float32))

    # Static block-diagonal head selectors (move per-head reductions onto the MXU).
    head_of = jnp.arange(D, dtype=jnp.int32) // head_dim
    sel_dh = (head_of[:, None] == jnp.arange(n_head, dtype=jnp.int32)[None, :]
              ).astype(jnp.float32)                                                # [D, H]
    sel_hd = jnp.transpose(sel_dh)                                                 # [H, D]

    inputs = (
        x_p, x_p, e_dense, mask,
        params["wq"], params["bq"], params["wk"], params["bk"],
        params["wv"], params["bv"], params["ws"], params["bs"],
        params["g1"], params["beta1"],
        params["w1"], params["b1"], params["w2"], params["b2"],
        params["g2"], params["beta2"],
        sel_dh, sel_hd,
    )

    def _const_spec(arr):                      # weights etc.: VMEM resident, no re-DMA
        nd = arr.ndim
        return pl.BlockSpec(arr.shape, lambda i, _nd=nd: (0,) * _nd)

    in_specs = [
        pl.BlockSpec((T, D), lambda i: (i, 0)),          # x tile (destination nodes)
        pl.BlockSpec((Np, D), lambda i: (0, 0)),         # x full (source nodes), resident
        pl.BlockSpec((T, Np, D), lambda i: (i, 0, 0)),   # edge block (pipelined)
        pl.BlockSpec((T, Np), lambda i: (i, 0)),         # adjacency-mask block
    ] + [_const_spec(a) for a in inputs[4:]]

    kernel = functools.partial(gat_layer_kernel, n_head=n_head, head_dim=head_dim)

    out = pl.pallas_call(
        kernel,
        out_shape=jax.ShapeDtypeStruct((Np, D), jnp.float32),
        grid=grid,
        in_specs=in_specs,
        out_specs=pl.BlockSpec((T, D), lambda i: (i, 0)),
        compiler_params=pltpu.CompilerParams(
            dimension_semantics=("parallel",),           # shard dest tiles across TCs
            vmem_limit_bytes=64 * 1024 * 1024),
    )(*inputs)

    return out[:N]


def init_params(key, hidden_dim):
    D = hidden_dim
    ks = jax.random.split(key, 16)

    def w(k):   # stored transposed: [in, out]
        return jax.random.normal(k, (D, D), jnp.float32) * 0.1

    def b(k):
        return jax.random.normal(k, (1, D), jnp.float32) * 0.01

    return {
        # TransformerConv: lin_query / lin_key / lin_value / lin_edge (no bias) / lin_skip
        "wq": w(ks[0]), "bq": b(ks[1]),
        "wk": w(ks[2]), "bk": b(ks[3]),
        "wv": w(ks[4]), "bv": b(ks[5]),
        "we": w(ks[6]),
        "ws": w(ks[7]), "bs": b(ks[8]),
        # LayerNorm 1 / 2 (default affine init)
        "g1": jnp.ones((1, D), jnp.float32), "beta1": jnp.zeros((1, D), jnp.float32),
        "g2": jnp.ones((1, D), jnp.float32), "beta2": jnp.zeros((1, D), jnp.float32),
        # FFN linears
        "w1": w(ks[9]), "b1": b(ks[10]),
        "w2": w(ks[11]), "b2": b(ks[12]),
    }


if __name__ == "__main__":
    # Small but lane-dense shapes: 16 nodes, hidden_dim=128 (multiple of 128 lanes),
    # 4 heads (head_dim=32).  tile_rows=8 -> grid of 2 destination tiles.
    N, D, H = 16, 128, 4
    key = jax.random.PRNGKey(0)
    k_node, k_edge, k_par = jax.random.split(key, 3)

    # bidirectional ring graph: 2*N directed edges
    s = jnp.arange(N, dtype=jnp.int32)
    t = (s + 1) % N
    edge_index = jnp.stack(
        [jnp.concatenate([s, t]), jnp.concatenate([t, s])], axis=0)   # [2, 32]

    node_attr = jax.random.normal(k_node, (N, D), jnp.float32)
    edge_attr = jax.random.normal(k_edge, (edge_index.shape[1], D), jnp.float32)
    params = init_params(k_par, D)

    out = gat_layer(edge_index, node_attr, edge_attr, params, n_head=H, tile_rows=8)
    jax.block_until_ready(out)
    assert out.shape == (N, D) and bool(jnp.all(jnp.isfinite(out)))
    print("KERNEL_OK")
</pallas_src>

<mosaic_0001>
module attributes {stable_mosaic.version = 11 : i64} {
  func.func @gat_layer_kernel(%arg0: i32, %arg1: memref<8x128xf32, #tpu.memory_space<vmem>>, %arg2: memref<16x128xf32, #tpu.memory_space<vmem>>, %arg3: memref<8x16x128xf32, #tpu.memory_space<vmem>>, %arg4: memref<8x16xf32, #tpu.memory_space<vmem>>, %arg5: memref<128x128xf32, #tpu.memory_space<vmem>>, %arg6: memref<1x128xf32, #tpu.memory_space<vmem>>, %arg7: memref<128x128xf32, #tpu.memory_space<vmem>>, %arg8: memref<1x128xf32, #tpu.memory_space<vmem>>, %arg9: memref<128x128xf32, #tpu.memory_space<vmem>>, %arg10: memref<1x128xf32, #tpu.memory_space<vmem>>, %arg11: memref<128x128xf32, #tpu.memory_space<vmem>>, %arg12: memref<1x128xf32, #tpu.memory_space<vmem>>, %arg13: memref<1x128xf32, #tpu.memory_space<vmem>>, %arg14: memref<1x128xf32, #tpu.memory_space<vmem>>, %arg15: memref<128x128xf32, #tpu.memory_space<vmem>>, %arg16: memref<1x128xf32, #tpu.memory_space<vmem>>, %arg17: memref<128x128xf32, #tpu.memory_space<vmem>>, %arg18: memref<1x128xf32, #tpu.memory_space<vmem>>, %arg19: memref<1x128xf32, #tpu.memory_space<vmem>>, %arg20: memref<1x128xf32, #tpu.memory_space<vmem>>, %arg21: memref<128x4xf32, #tpu.memory_space<vmem>>, %arg22: memref<4x128xf32, #tpu.memory_space<vmem>>, %arg23: memref<8x128xf32, #tpu.memory_space<vmem>>) attributes {dimension_semantics = [#tpu.dimension_semantics<parallel>], iteration_bounds = array<i64: 2>, scalar_prefetch = 0 : i64, scratch_operands = 0 : i64, tpu.core_type = #tpu.core_type<tc>, window_params = [{transform_indices = @transform_0, window_bounds = array<i64: 8, 128>}, {pipeline_mode = #tpu.pipeline_mode<synchronous>, transform_indices = @transform_1, window_bounds = array<i64: 16, 128>}, {transform_indices = @transform_2, window_bounds = array<i64: 8, 16, 128>}, {transform_indices = @transform_3, window_bounds = array<i64: 8, 16>}, {pipeline_mode = #tpu.pipeline_mode<synchronous>, transform_indices = @transform_4, window_bounds = array<i64: 128, 128>}, {pipeline_mode = #tpu.pipeline_mode<synchronous>, transform_indices = @transform_5, window_bounds = array<i64: 1, 128>}, {pipeline_mode = #tpu.pipeline_mode<synchronous>, transform_indices = @transform_6, window_bounds = array<i64: 128, 128>}, {pipeline_mode = #tpu.pipeline_mode<synchronous>, transform_indices = @transform_7, window_bounds = array<i64: 1, 128>}, {pipeline_mode = #tpu.pipeline_mode<synchronous>, transform_indices = @transform_8, window_bounds = array<i64: 128, 128>}, {pipeline_mode = #tpu.pipeline_mode<synchronous>, transform_indices = @transform_9, window_bounds = array<i64: 1, 128>}, {pipeline_mode = #tpu.pipeline_mode<synchronous>, transform_indices = @transform_10, window_bounds = array<i64: 128, 128>}, {pipeline_mode = #tpu.pipeline_mode<synchronous>, transform_indices = @transform_11, window_bounds = array<i64: 1, 128>}, {pipeline_mode = #tpu.pipeline_mode<synchronous>, transform_indices = @transform_12, window_bounds = array<i64: 1, 128>}, {pipeline_mode = #tpu.pipeline_mode<synchronous>, transform_indices = @transform_13, window_bounds = array<i64: 1, 128>}, {pipeline_mode = #tpu.pipeline_mode<synchronous>, transform_indices = @transform_14, window_bounds = array<i64: 128, 128>}, {pipeline_mode = #tpu.pipeline_mode<synchronous>, transform_indices = @transform_15, window_bounds = array<i64: 1, 128>}, {pipeline_mode = #tpu.pipeline_mode<synchronous>, transform_indices = @transform_16, window_bounds = array<i64: 128, 128>}, {pipeline_mode = #tpu.pipeline_mode<synchronous>, transform_indices = @transform_17, window_bounds = array<i64: 1, 128>}, {pipeline_mode = #tpu.pipeline_mode<synchronous>, transform_indices = @transform_18, window_bounds = array<i64: 1, 128>}, {pipeline_mode = #tpu.pipeline_mode<synchronous>, transform_indices = @transform_19, window_bounds = array<i64: 1, 128>}, {pipeline_mode = #tpu.pipeline_mode<synchronous>, transform_indices = @transform_20, window_bounds = array<i64: 128, 4>}, {pipeline_mode = #tpu.pipeline_mode<synchronous>, transform_indices = @transform_21, window_bounds = array<i64: 4, 128>}, {transform_indices = @transform_22, window_bounds = array<i64: 8, 128>}]} {
    %c0 = arith.constant 0 : index
    %c0_0 = arith.constant 0 : index
    %0 = vector.load %arg1[%c0, %c0_0] : memref<8x128xf32, #tpu.memory_space<vmem>>, vector<8x128xf32>
    %c0_1 = arith.constant 0 : index
    %c0_2 = arith.constant 0 : index
    %1 = vector.load %arg2[%c0_1, %c0_2] : memref<16x128xf32, #tpu.memory_space<vmem>>, vector<16x128xf32>
    %c0_3 = arith.constant 0 : index
    %c0_4 = arith.constant 0 : index
    %c0_5 = arith.constant 0 : index
    %2 = vector.load %arg3[%c0_3, %c0_4, %c0_5] : memref<8x16x128xf32, #tpu.memory_space<vmem>>, vector<8x16x128xf32>
    %c0_6 = arith.constant 0 : index
    %c0_7 = arith.constant 0 : index
    %3 = vector.load %arg4[%c0_6, %c0_7] : memref<8x16xf32, #tpu.memory_space<vmem>>, vector<8x16xf32>
    %c0_8 = arith.constant 0 : index
    %c0_9 = arith.constant 0 : index
    %4 = vector.load %arg5[%c0_8, %c0_9] : memref<128x128xf32, #tpu.memory_space<vmem>>, vector<128x128xf32>
    %cst = arith.constant dense<0.000000e+00> : vector<8x128xf32>
    %5 = tpu.matmul %0, %4, %cst {dimension_numbers = #tpu.dot_dimension_numbers<[1], [0], [0], [1], [0, 0, 1, 1], [], []>} : vector<8x128xf32>, vector<128x128xf32>, vector<8x128xf32> -> vector<8x128xf32>
    %c0_10 = arith.constant 0 : index
    %c0_11 = arith.constant 0 : index
    %6 = vector.load %arg6[%c0_10, %c0_11] : memref<1x128xf32, #tpu.memory_space<vmem>>, vector<1x128xf32>
    %7 = vector.broadcast %6 : vector<1x128xf32> to vector<8x128xf32>
    %8 = arith.addf %5, %7 : vector<8x128xf32>
    %cst_12 = arith.constant 0.176776692 : f32
    %9 = vector.broadcast %cst_12 : f32 to vector<8x128xf32>
    %10 = arith.mulf %8, %9 : vector<8x128xf32>
    %c0_13 = arith.constant 0 : index
    %c0_14 = arith.constant 0 : index
    %11 = vector.load %arg7[%c0_13, %c0_14] : memref<128x128xf32, #tpu.memory_space<vmem>>, vector<128x128xf32>
    %cst_15 = arith.constant dense<0.000000e+00> : vector<16x128xf32>
    %12 = tpu.matmul %1, %11, %cst_15 {dimension_numbers = #tpu.dot_dimension_numbers<[1], [0], [0], [1], [0, 0, 1, 1], [], []>} : vector<16x128xf32>, vector<128x128xf32>, vector<16x128xf32> -> vector<16x128xf32>
    %c0_16 = arith.constant 0 : index
    %c0_17 = arith.constant 0 : index
    %13 = vector.load %arg8[%c0_16, %c0_17] : memref<1x128xf32, #tpu.memory_space<vmem>>, vector<1x128xf32>
    %14 = vector.broadcast %13 : vector<1x128xf32> to vector<16x128xf32>
    %15 = arith.addf %12, %14 : vector<16x128xf32>
    %c0_18 = arith.constant 0 : index
    %c0_19 = arith.constant 0 : index
    %16 = vector.load %arg9[%c0_18, %c0_19] : memref<128x128xf32, #tpu.memory_space<vmem>>, vector<128x128xf32>
    %cst_20 = arith.constant dense<0.000000e+00> : vector<16x128xf32>
    %17 = tpu.matmul %1, %16, %cst_20 {dimension_numbers = #tpu.dot_dimension_numbers<[1], [0], [0], [1], [0, 0, 1, 1], [], []>} : vector<16x128xf32>, vector<128x128xf32>, vector<16x128xf32> -> vector<16x128xf32>
    %c0_21 = arith.constant 0 : index
    %c0_22 = arith.constant 0 : index
    %18 = vector.load %arg10[%c0_21, %c0_22] : memref<1x128xf32, #tpu.memory_space<vmem>>, vector<1x128xf32>
    %19 = vector.broadcast %18 : vector<1x128xf32> to vector<16x128xf32>
    %20 = arith.addf %17, %19 : vector<16x128xf32>
    %21 = vector.shape_cast %10 : vector<8x128xf32> to vector<8x1x128xf32>
    %22 = vector.shape_cast %15 : vector<16x128xf32> to vector<1x16x128xf32>
    %23 = vector.broadcast %22 : vector<1x16x128xf32> to vector<8x16x128xf32>
    %24 = arith.addf %23, %2 : vector<8x16x128xf32>
    %25 = vector.broadcast %21 : vector<8x1x128xf32> to vector<8x16x128xf32>
    %26 = arith.mulf %25, %24 : vector<8x16x128xf32>
    %27 = vector.shape_cast %26 : vector<8x16x128xf32> to vector<128x128xf32>
    %c0_23 = arith.constant 0 : index
    %c0_24 = arith.constant 0 : index
    %28 = vector.load %arg21[%c0_23, %c0_24] : memref<128x4xf32, #tpu.memory_space<vmem>>, vector<128x4xf32>
    %cst_25 = arith.constant dense<0.000000e+00> : vector<128x4xf32>
    %29 = tpu.matmul %27, %28, %cst_25 {dimension_numbers = #tpu.dot_dimension_numbers<[1], [0], [0], [1], [0, 0, 1, 1], [], []>} : vector<128x128xf32>, vector<128x4xf32>, vector<128x4xf32> -> vector<128x4xf32>
    %30 = vector.shape_cast %29 : vector<128x4xf32> to vector<8x16x4xf32>
    %31 = vector.shape_cast %3 : vector<8x16xf32> to vector<8x16x1xf32>
    %cst_26 = arith.constant 0.000000e+00 : f32
    %32 = vector.broadcast %cst_26 : f32 to vector<8x16x1xf32>
    %33 = arith.cmpf ogt, %31, %32 : vector<8x16x1xf32>
    %cst_27 = arith.constant -1.000000e+30 : f32
    %34 = vector.shape_cast %33 : vector<8x16x1xi1> to vector<8x16x1xi1>
    %35 = vector.broadcast %34 : vector<8x16x1xi1> to vector<8x16x4xi1>
    %36 = vector.broadcast %cst_27 : f32 to vector<8x16x4xf32>
    %37 = arith.select %35, %30, %36 : vector<8x16x4xi1>, vector<8x16x4xf32>
    %cst_28 = arith.constant dense<0xFF800000> : vector<8x4xf32>
    %38 = vector.multi_reduction <maximumf>, %37, %cst_28 [1] : vector<8x16x4xf32> to vector<8x4xf32>
    %39 = vector.shape_cast %38 : vector<8x4xf32> to vector<8x1x4xf32>
    %40 = vector.broadcast %39 : vector<8x1x4xf32> to vector<8x16x4xf32>
    %41 = arith.subf %37, %40 : vector<8x16x4xf32>
    %42 = math.exp %41 : vector<8x16x4xf32>
    %43 = vector.broadcast %31 : vector<8x16x1xf32> to vector<8x16x4xf32>
    %44 = arith.mulf %42, %43 : vector<8x16x4xf32>
    %cst_29 = arith.constant dense<0.000000e+00> : vector<8x4xf32>
    %45 = vector.multi_reduction <add>, %44, %cst_29 [1] : vector<8x16x4xf32> to vector<8x4xf32>
    %46 = vector.shape_cast %45 : vector<8x4xf32> to vector<8x1x4xf32>
    %cst_30 = arith.constant 0.000000e+00 : f32
    %47 = vector.broadcast %cst_30 : f32 to vector<8x1x4xf32>
    %48 = arith.cmpf ogt, %46, %47 : vector<8x1x4xf32>
    %cst_31 = arith.constant 1.000000e+00 : f32
    %49 = vector.broadcast %cst_31 : f32 to vector<8x1x4xf32>
    %50 = arith.select %48, %46, %49 : vector<8x1x4xi1>, vector<8x1x4xf32>
    %51 = tpu.reciprocal %50 {approx = true} : vector<8x1x4xf32> -> vector<8x1x4xf32>
    %52 = vector.broadcast %51 : vector<8x1x4xf32> to vector<8x16x4xf32>
    %53 = arith.mulf %44, %52 : vector<8x16x4xf32>
    %54 = vector.shape_cast %20 : vector<16x128xf32> to vector<1x16x128xf32>
    %55 = vector.broadcast %54 : vector<1x16x128xf32> to vector<8x16x128xf32>
    %56 = arith.addf %55, %2 : vector<8x16x128xf32>
    %cst_32 = arith.constant dense<0.000000e+00> : vector<8x4x128xf32>
    %57 = tpu.matmul %53, %56, %cst_32 {dimension_numbers = #tpu.dot_dimension_numbers<[1], [1], [2], [2], [0, 0, 0, 2, 1, 2], [0], [0]>} : vector<8x16x4xf32>, vector<8x16x128xf32>, vector<8x4x128xf32> -> vector<8x4x128xf32>
    %c0_33 = arith.constant 0 : index
    %c0_34 = arith.constant 0 : index
    %58 = vector.load %arg22[%c0_33, %c0_34] : memref<4x128xf32, #tpu.memory_space<vmem>>, vector<4x128xf32>
    %59 = vector.shape_cast %58 : vector<4x128xf32> to vector<1x4x128xf32>
    %60 = vector.broadcast %59 : vector<1x4x128xf32> to vector<8x4x128xf32>
    %61 = arith.mulf %57, %60 : vector<8x4x128xf32>
    %cst_35 = arith.constant dense<0.000000e+00> : vector<8x128xf32>
    %62 = vector.multi_reduction <add>, %61, %cst_35 [1] : vector<8x4x128xf32> to vector<8x128xf32>
    %c0_36 = arith.constant 0 : index
    %c0_37 = arith.constant 0 : index
    %63 = vector.load %arg11[%c0_36, %c0_37] : memref<128x128xf32, #tpu.memory_space<vmem>>, vector<128x128xf32>
    %cst_38 = arith.constant dense<0.000000e+00> : vector<8x128xf32>
    %64 = tpu.matmul %0, %63, %cst_38 {dimension_numbers = #tpu.dot_dimension_numbers<[1], [0], [0], [1], [0, 0, 1, 1], [], []>} : vector<8x128xf32>, vector<128x128xf32>, vector<8x128xf32> -> vector<8x128xf32>
    %65 = arith.addf %62, %64 : vector<8x128xf32>
    %c0_39 = arith.constant 0 : index
    %c0_40 = arith.constant 0 : index
    %66 = vector.load %arg12[%c0_39, %c0_40] : memref<1x128xf32, #tpu.memory_space<vmem>>, vector<1x128xf32>
    %67 = vector.broadcast %66 : vector<1x128xf32> to vector<8x128xf32>
    %68 = arith.addf %65, %67 : vector<8x128xf32>
    %c0_41 = arith.constant 0 : index
    %c0_42 = arith.constant 0 : index
    %69 = vector.load %arg13[%c0_41, %c0_42] : memref<1x128xf32, #tpu.memory_space<vmem>>, vector<1x128xf32>
    %c0_43 = arith.constant 0 : index
    %c0_44 = arith.constant 0 : index
    %70 = vector.load %arg14[%c0_43, %c0_44] : memref<1x128xf32, #tpu.memory_space<vmem>>, vector<1x128xf32>
    %cst_45 = arith.constant dense<0.000000e+00> : vector<8xf32>
    %71 = vector.multi_reduction <add>, %68, %cst_45 [1] : vector<8x128xf32> to vector<8xf32>
    %72 = vector.shape_cast %71 : vector<8xf32> to vector<8x1xf32>
    %cst_46 = arith.constant 1.280000e+02 : f32
    %73 = vector.broadcast %cst_46 : f32 to vector<8x1xf32>
    %74 = arith.divf %72, %73 : vector<8x1xf32>
    %75 = vector.broadcast %74 : vector<8x1xf32> to vector<8x128xf32>
    %76 = arith.subf %68, %75 : vector<8x128xf32>
    %77 = arith.mulf %76, %76 : vector<8x128xf32>
    %cst_47 = arith.constant dense<0.000000e+00> : vector<8xf32>
    %78 = vector.multi_reduction <add>, %77, %cst_47 [1] : vector<8x128xf32> to vector<8xf32>
    %79 = vector.shape_cast %78 : vector<8xf32> to vector<8x1xf32>
    %cst_48 = arith.constant 1.280000e+02 : f32
    %80 = vector.broadcast %cst_48 : f32 to vector<8x1xf32>
    %81 = arith.divf %79, %80 : vector<8x1xf32>
    %82 = vector.broadcast %74 : vector<8x1xf32> to vector<8x128xf32>
    %83 = arith.subf %68, %82 : vector<8x128xf32>
    %cst_49 = arith.constant 9.99999974E-6 : f32
    %84 = vector.broadcast %cst_49 : f32 to vector<8x1xf32>
    %85 = arith.addf %81, %84 : vector<8x1xf32>
    %86 = math.rsqrt %85 : vector<8x1xf32>
    %87 = vector.broadcast %86 : vector<8x1xf32> to vector<8x128xf32>
    %88 = arith.mulf %83, %87 : vector<8x128xf32>
    %89 = vector.broadcast %69 : vector<1x128xf32> to vector<8x128xf32>
    %90 = arith.mulf %88, %89 : vector<8x128xf32>
    %91 = vector.broadcast %70 : vector<1x128xf32> to vector<8x128xf32>
    %92 = arith.addf %90, %91 : vector<8x128xf32>
    %93 = arith.addf %0, %92 : vector<8x128xf32>
    %c0_50 = arith.constant 0 : index
    %c0_51 = arith.constant 0 : index
    %94 = vector.load %arg15[%c0_50, %c0_51] : memref<128x128xf32, #tpu.memory_space<vmem>>, vector<128x128xf32>
    %cst_52 = arith.constant dense<0.000000e+00> : vector<8x128xf32>
    %95 = tpu.matmul %93, %94, %cst_52 {dimension_numbers = #tpu.dot_dimension_numbers<[1], [0], [0], [1], [0, 0, 1, 1], [], []>} : vector<8x128xf32>, vector<128x128xf32>, vector<8x128xf32> -> vector<8x128xf32>
    %c0_53 = arith.constant 0 : index
    %c0_54 = arith.constant 0 : index
    %96 = vector.load %arg16[%c0_53, %c0_54] : memref<1x128xf32, #tpu.memory_space<vmem>>, vector<1x128xf32>
    %97 = vector.broadcast %96 : vector<1x128xf32> to vector<8x128xf32>
    %98 = arith.addf %95, %97 : vector<8x128xf32>
    %99 = arith.negf %98 : vector<8x128xf32>
    %100 = math.exp %99 : vector<8x128xf32>
    %cst_55 = arith.constant 1.000000e+00 : f32
    %101 = vector.broadcast %cst_55 : f32 to vector<8x128xf32>
    %102 = arith.addf %101, %100 : vector<8x128xf32>
    %103 = arith.divf %101, %102 : vector<8x128xf32>
    %104 = arith.mulf %98, %103 : vector<8x128xf32>
    %c0_56 = arith.constant 0 : index
    %c0_57 = arith.constant 0 : index
    %105 = vector.load %arg17[%c0_56, %c0_57] : memref<128x128xf32, #tpu.memory_space<vmem>>, vector<128x128xf32>
    %cst_58 = arith.constant dense<0.000000e+00> : vector<8x128xf32>
    %106 = tpu.matmul %104, %105, %cst_58 {dimension_numbers = #tpu.dot_dimension_numbers<[1], [0], [0], [1], [0, 0, 1, 1], [], []>} : vector<8x128xf32>, vector<128x128xf32>, vector<8x128xf32> -> vector<8x128xf32>
    %c0_59 = arith.constant 0 : index
    %c0_60 = arith.constant 0 : index
    %107 = vector.load %arg18[%c0_59, %c0_60] : memref<1x128xf32, #tpu.memory_space<vmem>>, vector<1x128xf32>
    %108 = vector.broadcast %107 : vector<1x128xf32> to vector<8x128xf32>
    %109 = arith.addf %106, %108 : vector<8x128xf32>
    %c0_61 = arith.constant 0 : index
    %c0_62 = arith.constant 0 : index
    %110 = vector.load %arg19[%c0_61, %c0_62] : memref<1x128xf32, #tpu.memory_space<vmem>>, vector<1x128xf32>
    %c0_63 = arith.constant 0 : index
    %c0_64 = arith.constant 0 : index
    %111 = vector.load %arg20[%c0_63, %c0_64] : memref<1x128xf32, #tpu.memory_space<vmem>>, vector<1x128xf32>
    %cst_65 = arith.constant dense<0.000000e+00> : vector<8xf32>
    %112 = vector.multi_reduction <add>, %109, %cst_65 [1] : vector<8x128xf32> to vector<8xf32>
    %113 = vector.shape_cast %112 : vector<8xf32> to vector<8x1xf32>
    %cst_66 = arith.constant 1.280000e+02 : f32
    %114 = vector.broadcast %cst_66 : f32 to vector<8x1xf32>
    %115 = arith.divf %113, %114 : vector<8x1xf32>
    %116 = vector.broadcast %115 : vector<8x1xf32> to vector<8x128xf32>
    %117 = arith.subf %109, %116 : vector<8x128xf32>
    %118 = arith.mulf %117, %117 : vector<8x128xf32>
    %cst_67 = arith.constant dense<0.000000e+00> : vector<8xf32>
    %119 = vector.multi_reduction <add>, %118, %cst_67 [1] : vector<8x128xf32> to vector<8xf32>
    %120 = vector.shape_cast %119 : vector<8xf32> to vector<8x1xf32>
    %cst_68 = arith.constant 1.280000e+02 : f32
    %121 = vector.broadcast %cst_68 : f32 to vector<8x1xf32>
    %122 = arith.divf %120, %121 : vector<8x1xf32>
    %123 = vector.broadcast %115 : vector<8x1xf32> to vector<8x128xf32>
    %124 = arith.subf %109, %123 : vector<8x128xf32>
    %cst_69 = arith.constant 9.99999974E-6 : f32
    %125 = vector.broadcast %cst_69 : f32 to vector<8x1xf32>
    %126 = arith.addf %122, %125 : vector<8x1xf32>
    %127 = math.rsqrt %126 : vector<8x1xf32>
    %128 = vector.broadcast %127 : vector<8x1xf32> to vector<8x128xf32>
    %129 = arith.mulf %124, %128 : vector<8x128xf32>
    %130 = vector.broadcast %110 : vector<1x128xf32> to vector<8x128xf32>
    %131 = arith.mulf %129, %130 : vector<8x128xf32>
    %132 = vector.broadcast %111 : vector<1x128xf32> to vector<8x128xf32>
    %133 = arith.addf %131, %132 : vector<8x128xf32>
    %134 = arith.addf %93, %133 : vector<8x128xf32>
    %c0_70 = arith.constant 0 : index
    %c0_71 = arith.constant 0 : index
    %135 = vector.load %arg23[%c0_70, %c0_71] : memref<8x128xf32, #tpu.memory_space<vmem>>, vector<8x128xf32>
    tpu.vector_store %arg23[%c0_70, %c0_71], %134 {strides = array<i32>} : memref<8x128xf32, #tpu.memory_space<vmem>>, vector<8x128xf32>,
    return
  }
  func.func @transform_0(%arg0: i32) -> (i32, i32) {
    %c0_i32 = arith.constant 0 : i32
    %c0_i32_0 = arith.constant 0 : i32
    return %arg0, %c0_i32 : i32, i32
  }
  func.func @transform_1(%arg0: i32) -> (i32, i32) {
    %c0_i32 = arith.constant 0 : i32
    %c0_i32_0 = arith.constant 0 : i32
    %c0_i32_1 = arith.constant 0 : i32
    return %c0_i32, %c0_i32_0 : i32, i32
  }
  func.func @transform_2(%arg0: i32) -> (i32, i32, i32) {
    %c0_i32 = arith.constant 0 : i32
    %c0_i32_0 = arith.constant 0 : i32
    %c0_i32_1 = arith.constant 0 : i32
    return %arg0, %c0_i32, %c0_i32_0 : i32, i32, i32
  }
  func.func @transform_3(%arg0: i32) -> (i32, i32) {
    %c0_i32 = arith.constant 0 : i32
    %c0_i32_0 = arith.constant 0 : i32
    return %arg0, %c0_i32 : i32, i32
  }
  func.func @transform_4(%arg0: i32) -> (i32, i32) {
    %c0_i32 = arith.constant 0 : i32
    %c0_i32_0 = arith.constant 0 : i32
    %c0_i32_1 = arith.constant 0 : i32
    return %c0_i32, %c0_i32_0 : i32, i32
  }
  func.func @transform_5(%arg0: i32) -> (i32, i32) {
    %c0_i32 = arith.constant 0 : i32
    %c0_i32_0 = arith.constant 0 : i32
    %c0_i32_1 = arith.constant 0 : i32
    return %c0_i32, %c0_i32_0 : i32, i32
  }
  func.func @transform_6(%arg0: i32) -> (i32, i32) {
    %c0_i32 = arith.constant 0 : i32
    %c0_i32_0 = arith.constant 0 : i32
    %c0_i32_1 = arith.constant 0 : i32
    return %c0_i32, %c0_i32_0 : i32, i32
  }
  func.func @transform_7(%arg0: i32) -> (i32, i32) {
    %c0_i32 = arith.constant 0 : i32
    %c0_i32_0 = arith.constant 0 : i32
    %c0_i32_1 = arith.constant 0 : i32
    return %c0_i32, %c0_i32_0 : i32, i32
  }
  func.func @transform_8(%arg0: i32) -> (i32, i32) {
    %c0_i32 = arith.constant 0 : i32
    %c0_i32_0 = arith.constant 0 : i32
    %c0_i32_1 = arith.constant 0 : i32
    return %c0_i32, %c0_i32_0 : i32, i32
  }
  func.func @transform_9(%arg0: i32) -> (i32, i32) {
    %c0_i32 = arith.constant 0 : i32
    %c0_i32_0 = arith.constant 0 : i32
    %c0_i32_1 = arith.constant 0 : i32
    return %c0_i32, %c0_i32_0 : i32, i32
  }
  func.func @transform_10(%arg0: i32) -> (i32, i32) {
    %c0_i32 = arith.constant 0 : i32
    %c0_i32_0 = arith.constant 0 : i32
    %c0_i32_1 = arith.constant 0 : i32
    return %c0_i32, %c0_i32_0 : i32, i32
  }
  func.func @transform_11(%arg0: i32) -> (i32, i32) {
    %c0_i32 = arith.constant 0 : i32
    %c0_i32_0 = arith.constant 0 : i32
    %c0_i32_1 = arith.constant 0 : i32
    return %c0_i32, %c0_i32_0 : i32, i32
  }
  func.func @transform_12(%arg0: i32) -> (i32, i32) {
    %c0_i32 = arith.constant 0 : i32
    %c0_i32_0 = arith.constant 0 : i32
    %c0_i32_1 = arith.constant 0 : i32
    return %c0_i32, %c0_i32_0 : i32, i32
  }
  func.func @transform_13(%arg0: i32) -> (i32, i32) {
    %c0_i32 = arith.constant 0 : i32
    %c0_i32_0 = arith.constant 0 : i32
    %c0_i32_1 = arith.constant 0 : i32
    return %c0_i32, %c0_i32_0 : i32, i32
  }
  func.func @transform_14(%arg0: i32) -> (i32, i32) {
    %c0_i32 = arith.constant 0 : i32
    %c0_i32_0 = arith.constant 0 : i32
    %c0_i32_1 = arith.constant 0 : i32
    return %c0_i32, %c0_i32_0 : i32, i32
  }
  func.func @transform_15(%arg0: i32) -> (i32, i32) {
    %c0_i32 = arith.constant 0 : i32
    %c0_i32_0 = arith.constant 0 : i32
    %c0_i32_1 = arith.constant 0 : i32
    return %c0_i32, %c0_i32_0 : i32, i32
  }
  func.func @transform_16(%arg0: i32) -> (i32, i32) {
    %c0_i32 = arith.constant 0 : i32
    %c0_i32_0 = arith.constant 0 : i32
    %c0_i32_1 = arith.constant 0 : i32
    return %c0_i32, %c0_i32_0 : i32, i32
  }
  func.func @transform_17(%arg0: i32) -> (i32, i32) {
    %c0_i32 = arith.constant 0 : i32
    %c0_i32_0 = arith.constant 0 : i32
    %c0_i32_1 = arith.constant 0 : i32
    return %c0_i32, %c0_i32_0 : i32, i32
  }
  func.func @transform_18(%arg0: i32) -> (i32, i32) {
    %c0_i32 = arith.constant 0 : i32
    %c0_i32_0 = arith.constant 0 : i32
    %c0_i32_1 = arith.constant 0 : i32
    return %c0_i32, %c0_i32_0 : i32, i32
  }
  func.func @transform_19(%arg0: i32) -> (i32, i32) {
    %c0_i32 = arith.constant 0 : i32
    %c0_i32_0 = arith.constant 0 : i32
    %c0_i32_1 = arith.constant 0 : i32
    return %c0_i32, %c0_i32_0 : i32, i32
  }
  func.func @transform_20(%arg0: i32) -> (i32, i32) {
    %c0_i32 = arith.constant 0 : i32
    %c0_i32_0 = arith.constant 0 : i32
    %c0_i32_1 = arith.constant 0 : i32
    return %c0_i32, %c0_i32_0 : i32, i32
  }
  func.func @transform_21(%arg0: i32) -> (i32, i32) {
    %c0_i32 = arith.constant 0 : i32
    %c0_i32_0 = arith.constant 0 : i32
    %c0_i32_1 = arith.constant 0 : i32
    return %c0_i32, %c0_i32_0 : i32, i32
  }
  func.func @transform_22(%arg0: i32) -> (i32, i32) {
    %c0_i32 = arith.constant 0 : i32
    %c0_i32_0 = arith.constant 0 : i32
    return %arg0, %c0_i32 : i32, i32
  }
}

</mosaic_0001>

<llo_original>
// kernel: tpu_custom_call.1
$region0: #{tpu_custom_call.1}
  #allocation0 [shape = 'u32[]', space=smem, size = 0x4, offset = 0x4, fixed_abs, tag = 'smem constant byte address 0x4 - core index']
  #allocation1 [shape = 'u32[144,128]{1,0:T(1,128)}', space=vmem, size = 0x12000, scoped, tag = 'internal scratch']
  %s0 = inlined_call_operand.hbm [shape: f32[16,128], index: 0, kind: input, shape index: {}]
  %s1 = inlined_call_operand.hbm [shape: f32[16,128], index: 1, kind: input, shape index: {}]
  %s2 = inlined_call_operand.hbm [shape: f32[16,16,128], index: 2, kind: input, shape index: {}]
  %s3 = inlined_call_operand.hbm [shape: f32[16,16], index: 3, kind: input, shape index: {}]
  %s4 = inlined_call_operand.hbm [shape: f32[128,128], index: 4, kind: input, shape index: {}]
  %s5 = inlined_call_operand.hbm [shape: f32[1,128], index: 5, kind: input, shape index: {}]
  %s6 = inlined_call_operand.hbm [shape: f32[128,128], index: 6, kind: input, shape index: {}]
  %s7 = inlined_call_operand.hbm [shape: f32[1,128], index: 7, kind: input, shape index: {}]
  %s8 = inlined_call_operand.hbm [shape: f32[128,128], index: 8, kind: input, shape index: {}]
  %s9 = inlined_call_operand.hbm [shape: f32[1,128], index: 9, kind: input, shape index: {}]
  %s10 = inlined_call_operand.hbm [shape: f32[128,128], index: 10, kind: input, shape index: {}]
  %s11 = inlined_call_operand.hbm [shape: f32[1,128], index: 11, kind: input, shape index: {}]
  %s12 = inlined_call_operand.hbm [shape: f32[1,128], index: 12, kind: input, shape index: {}]
  %s13 = inlined_call_operand.hbm [shape: f32[1,128], index: 13, kind: input, shape index: {}]
  %s14 = inlined_call_operand.hbm [shape: f32[128,128], index: 14, kind: input, shape index: {}]
  %s15 = inlined_call_operand.hbm [shape: f32[1,128], index: 15, kind: input, shape index: {}]
  %s16 = inlined_call_operand.hbm [shape: f32[128,128], index: 16, kind: input, shape index: {}]
  %s17 = inlined_call_operand.hbm [shape: f32[1,128], index: 17, kind: input, shape index: {}]
  %s18 = inlined_call_operand.hbm [shape: f32[1,128], index: 18, kind: input, shape index: {}]
  %s19 = inlined_call_operand.hbm [shape: f32[1,128], index: 19, kind: input, shape index: {}]
  %s20 = inlined_call_operand.hbm [shape: f32[128,4], index: 20, kind: input, shape index: {}]
  %s21 = inlined_call_operand.hbm [shape: f32[4,128], index: 21, kind: input, shape index: {}]
  %s22 = inlined_call_operand.hbm [shape: f32[16,128], index: 22, kind: output, shape index: {}]
  %s23 = sld [smem:[#allocation0]]
  $region209: #{tpu_custom_call.1} parent=0
    _
  %s25 = ssub.s32 1, %s23
  %s26 = scalar_select 0, %s25, %s23
  $region1: #{tpu_custom_call.1} parent=0
    #allocation2 [shape = 'u8[8192]{0}', space=vmem, size = 0x2000, scoped, tag = 'input window, operand 0']
    #allocation3 [shape = 's32[2]{0}', space=sflag, size = 0x8, scoped, tag = 'scoped memory for tpu_custom_call.1']
    #allocation4 [shape = 's32[2]{0}', space=sflag, size = 0x8, scoped, tag = 'scoped memory for tpu_custom_call.1']
    #allocation5 [shape = 'u8[8192]{0}', space=vmem, size = 0x2000, scoped, tag = 'input window, operand 1, single buffered']
    #allocation6 [shape = 's32[1]{0}', space=sflag, size = 0x4, scoped, tag = 'scoped memory for tpu_custom_call.1']
    #allocation7 [shape = 'u8[131072]{0}', space=vmem, size = 0x20000, scoped, tag = 'input window, operand 2']
    #allocation8 [shape = 'u8[8192]{0}', space=vmem, size = 0x2000, scoped, tag = 'input window, operand 3']
    #allocation9 [shape = 'u8[65536]{0}', space=vmem, size = 0x10000, scoped, tag = 'input window, operand 4, single buffered']
    #allocation10 [shape = 'u8[512]{0}', space=vmem, size = 0x400, scoped, tag = 'input window, operand 5, single buffered']
    #allocation11 [shape = 's32[1]{0}', space=sflag, size = 0x4, scoped, tag = 'scoped memory for tpu_custom_call.1']
    #allocation12 [shape = 'u8[65536]{0}', space=vmem, size = 0x10000, scoped, tag = 'input window, operand 6, single buffered']
    #allocation13 [shape = 'u8[512]{0}', space=vmem, size = 0x400, scoped, tag = 'input window, operand 7, single buffered']
    #allocation14 [shape = 's32[1]{0}', space=sflag, size = 0x4, scoped, tag = 'scoped memory for tpu_custom_call.1']
    #allocation15 [shape = 'u8[65536]{0}', space=vmem, size = 0x10000, scoped, tag = 'input window, operand 8, single buffered']
    #allocation16 [shape = 'u8[512]{0}', space=vmem, size = 0x400, scoped, tag = 'input window, operand 9, single buffered']
    #allocation17 [shape = 's32[1]{0}', space=sflag, size = 0x4, scoped, tag = 'scoped memory for tpu_custom_call.1']
    #allocation18 [shape = 'u8[65536]{0}', space=vmem, size = 0x10000, scoped, tag = 'input window, operand 10, single buffered']
    #allocation19 [shape = 'u8[512]{0}', space=vmem, size = 0x400, scoped, tag = 'input window, operand 11, single buffered']
    #allocation20 [shape = 's32[1]{0}', space=sflag, size = 0x4, scoped, tag = 'scoped memory for tpu_custom_call.1']
    #allocation21 [shape = 'u8[512]{0}', space=vmem, size = 0x400, scoped, tag = 'input window, operand 12, single buffered']
    #allocation22 [shape = 'u8[512]{0}', space=vmem, size = 0x400, scoped, tag = 'input window, operand 13, single buffered']
    #allocation23 [shape = 's32[1]{0}', space=sflag, size = 0x4, scoped, tag = 'scoped memory for tpu_custom_call.1']
    #allocation24 [shape = 'u8[65536]{0}', space=vmem, size = 0x10000, scoped, tag = 'input window, operand 14, single buffered']
    #allocation25 [shape = 'u8[512]{0}', space=vmem, size = 0x400, scoped, tag = 'input window, operand 15, single buffered']
    #allocation26 [shape = 's32[1]{0}', space=sflag, size = 0x4, scoped, tag = 'scoped memory for tpu_custom_call.1']
    #allocation27 [shape = 'u8[65536]{0}', space=vmem, size = 0x10000, scoped, tag = 'input window, operand 16, single buffered']
    #allocation28 [shape = 'u8[512]{0}', space=vmem, size = 0x400, scoped, tag = 'input window, operand 17, single buffered']
    #allocation29 [shape = 's32[1]{0}', space=sflag, size = 0x4, scoped, tag = 'scoped memory for tpu_custom_call.1']
    #allocation30 [shape = 'u8[512]{0}', space=vmem, size = 0x400, scoped, tag = 'input window, operand 18, single buffered']
    #allocation31 [shape = 'u8[512]{0}', space=vmem, size = 0x400, scoped, tag = 'input window, operand 19, single buffered']
    #allocation32 [shape = 's32[1]{0}', space=sflag, size = 0x4, scoped, tag = 'scoped memory for tpu_custom_call.1']
    #allocation33 [shape = 'u8[65536]{0}', space=vmem, size = 0x10000, scoped, tag = 'input window, operand 20, single buffered']
    #allocation34 [shape = 'u8[2048]{0}', space=vmem, size = 0x800, scoped, tag = 'input window, operand 21, single buffered']
    #allocation35 [shape = 's32[1]{0}', space=sflag, size = 0x4, scoped, tag = 'scoped memory for tpu_custom_call.1']
    #allocation36 [shape = 'u8[8192]{0}', space=vmem, size = 0x2000, scoped, tag = 'output window, operand 0']
    %27 = vsyncpa [#allocation3], 0
    %s28 = scalar_lea.sflag [#allocation3], 1
    %29 = vsyncpa %s28, 0
    %30 = vsyncpa [#allocation6], 0
    %31 = vsyncpa [#allocation11], 0
    %32 = vsyncpa [#allocation14], 0
    %33 = vsyncpa [#allocation17], 0
    %34 = vsyncpa [#allocation20], 0
    %35 = vsyncpa [#allocation23], 0
    %36 = vsyncpa [#allocation26], 0
    %37 = vsyncpa [#allocation29], 0
    %38 = vsyncpa [#allocation32], 0
    %39 = vsyncpa [#allocation35], 0
    %40 = vsyncpa [#allocation4], 0
    %s41 = scalar_lea.sflag [#allocation4], 1
    %42 = vsyncpa %s41, 0
    loop: start=0, step=1, limit=4
    $region2: #{tpu_custom_call.1} parent=1 // loop_pre_header
      _
    $region3: #{tpu_custom_call.1} parent=1 // loop_header
      %s44 = sphi 0, %s48
      %p45 = scmp.ge.s32.totalorder %s44, 4
      %s54 = sphi 0, %s56
      %s57 = sphi 0, %s54
      %s58 = sphi 0, %s57
      %s74 = sphi 0, %s58
      %s78 = sphi 0, %s78
      %s80 = sphi 0, %s78
      %s81 = sphi 0, %s80
      %s95 = sphi 0, %s81
      %s101 = sphi 0, %s103
      %s104 = sphi 0, %s101
      %s105 = sphi 0, %s104
      %s121 = sphi 0, %s105
      %s127 = sphi 0, %s129
      %s130 = sphi 0, %s127
      %s131 = sphi 0, %s130
      %s147 = sphi 0, %s131
      %s151 = sphi 0, %s151
      %s153 = sphi 0, %s151
      %s154 = sphi 0, %s153
      %s168 = sphi 0, %s154
      %s172 = sphi 0, %s172
      %s174 = sphi 0, %s172
      %s175 = sphi 0, %s174
      %s189 = sphi 0, %s175
      %s193 = sphi 0, %s193
      %s195 = sphi 0, %s193
      %s196 = sphi 0, %s195
      %s210 = sphi 0, %s196
      %s214 = sphi 0, %s214
      %s216 = sphi 0, %s214
      %s217 = sphi 0, %s216
      %s231 = sphi 0, %s217
      %s235 = sphi 0, %s235
      %s237 = sphi 0, %s235
      %s238 = sphi 0, %s237
      %s252 = sphi 0, %s238
      %s256 = sphi 0, %s256
      %s258 = sphi 0, %s256
      %s259 = sphi 0, %s258
      %s273 = sphi 0, %s259
      %s277 = sphi 0, %s277
      %s279 = sphi 0, %s277
      %s280 = sphi 0, %s279
      %s294 = sphi 0, %s280
      %s298 = sphi 0, %s298
      %s300 = sphi 0, %s298
      %s301 = sphi 0, %s300
      %s315 = sphi 0, %s301
      %s319 = sphi 0, %s319
      %s321 = sphi 0, %s319
      %s322 = sphi 0, %s321
      %s336 = sphi 0, %s322
      %s340 = sphi 0, %s340
      %s342 = sphi 0, %s340
      %s343 = sphi 0, %s342
      %s357 = sphi 0, %s343
      %s361 = sphi 0, %s361
      %s363 = sphi 0, %s361
      %s364 = sphi 0, %s363
      %s378 = sphi 0, %s364
      %s382 = sphi 0, %s382
      %s384 = sphi 0, %s382
      %s385 = sphi 0, %s384
      %s399 = sphi 0, %s385
      %s403 = sphi 0, %s403
      %s405 = sphi 0, %s403
      %s406 = sphi 0, %s405
      %s420 = sphi 0, %s406
      %s424 = sphi 0, %s424
      %s426 = sphi 0, %s424
      %s427 = sphi 0, %s426
      %s441 = sphi 0, %s427
      %s445 = sphi 0, %s445
      %s447 = sphi 0, %s445
      %s448 = sphi 0, %s447
      %s462 = sphi 0, %s448
      %s466 = sphi 0, %s466
      %s468 = sphi 0, %s466
      %s469 = sphi 0, %s468
      %s483 = sphi 0, %s469
      %s487 = sphi 0, %s487
      %s489 = sphi 0, %s487
      %s490 = sphi 0, %s489
      %s504 = sphi 0, %s490
      %s508 = sphi 0, %s508
      %s510 = sphi 0, %s508
      %s511 = sphi 0, %s510
      %s525 = sphi 0, %s511
      %s531 = sphi 0, %s533
      %s534 = sphi 0, %s531
      %s535 = sphi 0, %s534
      %s551 = sphi 0, %s535
    $region4: #{tpu_custom_call.1} parent=1 // loop_header_branch
      %47 = sbr.rel (%p45) target = $region8
    $region5: #{tpu_custom_call.1} parent=1 // loop_body
      %s49 = ssub.s32 %s44, 1
      %s50 = ssub.s32 %s44, 2
      %s51 = sadd.s32 %s44, 1
      %s52 = ssub.s32 %s44, %s51
      %p53 = scmp.eq.s32.totalorder %s52, 0
      %s55 = sadd.s32 %s54, 1
      %s56 = scalar_select %p53, %s54, %s55
      %p59 = pneg %p53
      %p60 = scmp.eq.s32.totalorder %s44, 1
      %p61 = por %p59, %p60
      %p62 = scmp.ne.s32.totalorder %s54, %s57
      %p63 = scmp.eq.s32.totalorder %s44, 0
      %p64 = por %p62, %p63
      %p65 = scmp.ne.s32.totalorder %s54, %s57
      %p66 = scmp.eq.s32.totalorder %s49, 1
      %p67 = por %p65, %p66
      %p68 = scmp.ne.s32.totalorder %s57, %s58
      %p69 = scmp.eq.s32.totalorder %s49, 0
      %p70 = por %p68, %p69
      %p71 = scmp.ne.s32.totalorder %s57, %s58
      %p72 = scmp.eq.s32.totalorder %s50, 1
      %p73 = por %p71, %p72
      %p75 = scmp.ne.s32.totalorder %s58, %s74
      %p76 = scmp.eq.s32.totalorder %s50, 0
      %p77 = por %p75, %p76
      %s79 = sadd.s32 %s78, 1
      %p82 = scmp.eq.s32.totalorder %s44, 1
      %p83 = scmp.ne.s32.totalorder %s78, %s80
      %p84 = scmp.eq.s32.totalorder %s44, 0
      %p85 = por %p83, %p84
      %p86 = scmp.ne.s32.totalorder %s78, %s80
      %p87 = scmp.eq.s32.totalorder %s49, 1
      %p88 = por %p86, %p87
      %p89 = scmp.ne.s32.totalorder %s80, %s81
      %p90 = scmp.eq.s32.totalorder %s49, 0
      %p91 = por %p89, %p90
      %p92 = scmp.ne.s32.totalorder %s80, %s81
      %p93 = scmp.eq.s32.totalorder %s50, 1
      %p94 = por %p92, %p93
      %p96 = scmp.ne.s32.totalorder %s81, %s95
      %p97 = scmp.eq.s32.totalorder %s50, 0
      %p98 = por %p96, %p97
      %s99 = ssub.s32 %s44, %s51
      %p100 = scmp.eq.s32.totalorder %s99, 0
      %s102 = sadd.s32 %s101, 1
      %s103 = scalar_select %p100, %s101, %s102
      %p106 = pneg %p100
      %p107 = scmp.eq.s32.totalorder %s44, 1
      %p108 = por %p106, %p107
      %p109 = scmp.ne.s32.totalorder %s101, %s104
      %p110 = scmp.eq.s32.totalorder %s44, 0
      %p111 = por %p109, %p110
      %p112 = scmp.ne.s32.totalorder %s101, %s104
      %p113 = scmp.eq.s32.totalorder %s49, 1
      %p114 = por %p112, %p113
      %p115 = scmp.ne.s32.totalorder %s104, %s105
      %p116 = scmp.eq.s32.totalorder %s49, 0
      %p117 = por %p115, %p116
      %p118 = scmp.ne.s32.totalorder %s104, %s105
      %p119 = scmp.eq.s32.totalorder %s50, 1
      %p120 = por %p118, %p119
      %p122 = scmp.ne.s32.totalorder %s105, %s121
      %p123 = scmp.eq.s32.totalorder %s50, 0
      %p124 = por %p122, %p123
      %s125 = ssub.s32 %s44, %s51
      %p126 = scmp.eq.s32.totalorder %s125, 0
      %s128 = sadd.s32 %s127, 1
      %s129 = scalar_select %p126, %s127, %s128
      %p132 = pneg %p126
      %p133 = scmp.eq.s32.totalorder %s44, 1
      %p134 = por %p132, %p133
      %p135 = scmp.ne.s32.totalorder %s127, %s130
      %p136 = scmp.eq.s32.totalorder %s44, 0
      %p137 = por %p135, %p136
      %p138 = scmp.ne.s32.totalorder %s127, %s130
      %p139 = scmp.eq.s32.totalorder %s49, 1
      %p140 = por %p138, %p139
      %p141 = scmp.ne.s32.totalorder %s130, %s131
      %p142 = scmp.eq.s32.totalorder %s49, 0
      %p143 = por %p141, %p142
      %p144 = scmp.ne.s32.totalorder %s130, %s131
      %p145 = scmp.eq.s32.totalorder %s50, 1
      %p146 = por %p144, %p145
      %p148 = scmp.ne.s32.totalorder %s131, %s147
      %p149 = scmp.eq.s32.totalorder %s50, 0
      %p150 = por %p148, %p149
      %s152 = sadd.s32 %s151, 1
      %p155 = scmp.eq.s32.totalorder %s44, 1
      %p156 = scmp.ne.s32.totalorder %s151, %s153
      %p157 = scmp.eq.s32.totalorder %s44, 0
      %p158 = por %p156, %p157
      %p159 = scmp.ne.s32.totalorder %s151, %s153
      %p160 = scmp.eq.s32.totalorder %s49, 1
      %p161 = por %p159, %p160
      %p162 = scmp.ne.s32.totalorder %s153, %s154
      %p163 = scmp.eq.s32.totalorder %s49, 0
      %p164 = por %p162, %p163
      %p165 = scmp.ne.s32.totalorder %s153, %s154
      %p166 = scmp.eq.s32.totalorder %s50, 1
      %p167 = por %p165, %p166
      %p169 = scmp.ne.s32.totalorder %s154, %s168
      %p170 = scmp.eq.s32.totalorder %s50, 0
      %p171 = por %p169, %p170
      %s173 = sadd.s32 %s172, 1
      %p176 = scmp.eq.s32.totalorder %s44, 1
      %p177 = scmp.ne.s32.totalorder %s172, %s174
      %p178 = scmp.eq.s32.totalorder %s44, 0
      %p179 = por %p177, %p178
      %p180 = scmp.ne.s32.totalorder %s172, %s174
      %p181 = scmp.eq.s32.totalorder %s49, 1
      %p182 = por %p180, %p181
      %p183 = scmp.ne.s32.totalorder %s174, %s175
      %p184 = scmp.eq.s32.totalorder %s49, 0
      %p185 = por %p183, %p184
      %p186 = scmp.ne.s32.totalorder %s174, %s175
      %p187 = scmp.eq.s32.totalorder %s50, 1
      %p188 = por %p186, %p187
      %p190 = scmp.ne.s32.totalorder %s175, %s189
      %p191 = scmp.eq.s32.totalorder %s50, 0
      %p192 = por %p190, %p191
      %s194 = sadd.s32 %s193, 1
      %p197 = scmp.eq.s32.totalorder %s44, 1
      %p198 = scmp.ne.s32.totalorder %s193, %s195
      %p199 = scmp.eq.s32.totalorder %s44, 0
      %p200 = por %p198, %p199
      %p201 = scmp.ne.s32.totalorder %s193, %s195
      %p202 = scmp.eq.s32.totalorder %s49, 1
      %p203 = por %p201, %p202
      %p204 = scmp.ne.s32.totalorder %s195, %s196
      %p205 = scmp.eq.s32.totalorder %s49, 0
      %p206 = por %p204, %p205
      %p207 = scmp.ne.s32.totalorder %s195, %s196
      %p208 = scmp.eq.s32.totalorder %s50, 1
      %p209 = por %p207, %p208
      %p211 = scmp.ne.s32.totalorder %s196, %s210
      %p212 = scmp.eq.s32.totalorder %s50, 0
      %p213 = por %p211, %p212
      %s215 = sadd.s32 %s214, 1
      %p218 = scmp.eq.s32.totalorder %s44, 1
      %p219 = scmp.ne.s32.totalorder %s214, %s216
      %p220 = scmp.eq.s32.totalorder %s44, 0
      %p221 = por %p219, %p220
      %p222 = scmp.ne.s32.totalorder %s214, %s216
      %p223 = scmp.eq.s32.totalorder %s49, 1
      %p224 = por %p222, %p223
      %p225 = scmp.ne.s32.totalorder %s216, %s217
      %p226 = scmp.eq.s32.totalorder %s49, 0
      %p227 = por %p225, %p226
      %p228 = scmp.ne.s32.totalorder %s216, %s217
      %p229 = scmp.eq.s32.totalorder %s50, 1
      %p230 = por %p228, %p229
      %p232 = scmp.ne.s32.totalorder %s217, %s231
      %p233 = scmp.eq.s32.totalorder %s50, 0
      %p234 = por %p232, %p233
      %s236 = sadd.s32 %s235, 1
      %p239 = scmp.eq.s32.totalorder %s44, 1
      %p240 = scmp.ne.s32.totalorder %s235, %s237
      %p241 = scmp.eq.s32.totalorder %s44, 0
      %p242 = por %p240, %p241
      %p243 = scmp.ne.s32.totalorder %s235, %s237
      %p244 = scmp.eq.s32.totalorder %s49, 1
      %p245 = por %p243, %p244
      %p246 = scmp.ne.s32.totalorder %s237, %s238
      %p247 = scmp.eq.s32.totalorder %s49, 0
      %p248 = por %p246, %p247
      %p249 = scmp.ne.s32.totalorder %s237, %s238
      %p250 = scmp.eq.s32.totalorder %s50, 1
      %p251 = por %p249, %p250
      %p253 = scmp.ne.s32.totalorder %s238, %s252
      %p254 = scmp.eq.s32.totalorder %s50, 0
      %p255 = por %p253, %p254
      %s257 = sadd.s32 %s256, 1
      %p260 = scmp.eq.s32.totalorder %s44, 1
      %p261 = scmp.ne.s32.totalorder %s256, %s258
      %p262 = scmp.eq.s32.totalorder %s44, 0
      %p263 = por %p261, %p262
      %p264 = scmp.ne.s32.totalorder %s256, %s258
      %p265 = scmp.eq.s32.totalorder %s49, 1
      %p266 = por %p264, %p265
      %p267 = scmp.ne.s32.totalorder %s258, %s259
      %p268 = scmp.eq.s32.totalorder %s49, 0
      %p269 = por %p267, %p268
      %p270 = scmp.ne.s32.totalorder %s258, %s259
      %p271 = scmp.eq.s32.totalorder %s50, 1
      %p272 = por %p270, %p271
      %p274 = scmp.ne.s32.totalorder %s259, %s273
      %p275 = scmp.eq.s32.totalorder %s50, 0
      %p276 = por %p274, %p275
      %s278 = sadd.s32 %s277, 1
      %p281 = scmp.eq.s32.totalorder %s44, 1
      %p282 = scmp.ne.s32.totalorder %s277, %s279
      %p283 = scmp.eq.s32.totalorder %s44, 0
      %p284 = por %p282, %p283
      %p285 = scmp.ne.s32.totalorder %s277, %s279
      %p286 = scmp.eq.s32.totalorder %s49, 1
      %p287 = por %p285, %p286
      %p288 = scmp.ne.s32.totalorder %s279, %s280
      %p289 = scmp.eq.s32.totalorder %s49, 0
      %p290 = por %p288, %p289
      %p291 = scmp.ne.s32.totalorder %s279, %s280
      %p292 = scmp.eq.s32.totalorder %s50, 1
      %p293 = por %p291, %p292
      %p295 = scmp.ne.s32.totalorder %s280, %s294
      %p296 = scmp.eq.s32.totalorder %s50, 0
      %p297 = por %p295, %p296
      %s299 = sadd.s32 %s298, 1
      %p302 = scmp.eq.s32.totalorder %s44, 1
      %p303 = scmp.ne.s32.totalorder %s298, %s300
      %p304 = scmp.eq.s32.totalorder %s44, 0
      %p305 = por %p303, %p304
      %p306 = scmp.ne.s32.totalorder %s298, %s300
      %p307 = scmp.eq.s32.totalorder %s49, 1
      %p308 = por %p306, %p307
      %p309 = scmp.ne.s32.totalorder %s300, %s301
      %p310 = scmp.eq.s32.totalorder %s49, 0
      %p311 = por %p309, %p310
      %p312 = scmp.ne.s32.totalorder %s300, %s301
      %p313 = scmp.eq.s32.totalorder %s50, 1
      %p314 = por %p312, %p313
      %p316 = scmp.ne.s32.totalorder %s301, %s315
      %p317 = scmp.eq.s32.totalorder %s50, 0
      %p318 = por %p316, %p317
      %s320 = sadd.s32 %s319, 1
      %p323 = scmp.eq.s32.totalorder %s44, 1
      %p324 = scmp.ne.s32.totalorder %s319, %s321
      %p325 = scmp.eq.s32.totalorder %s44, 0
      %p326 = por %p324, %p325
      %p327 = scmp.ne.s32.totalorder %s319, %s321
      %p328 = scmp.eq.s32.totalorder %s49, 1
      %p329 = por %p327, %p328
      %p330 = scmp.ne.s32.totalorder %s321, %s322
      %p331 = scmp.eq.s32.totalorder %s49, 0
      %p332 = por %p330, %p331
      %p333 = scmp.ne.s32.totalorder %s321, %s322
      %p334 = scmp.eq.s32.totalorder %s50, 1
      %p335 = por %p333, %p334
      %p337 = scmp.ne.s32.totalorder %s322, %s336
      %p338 = scmp.eq.s32.totalorder %s50, 0
      %p339 = por %p337, %p338
      %s341 = sadd.s32 %s340, 1
      %p344 = scmp.eq.s32.totalorder %s44, 1
      %p345 = scmp.ne.s32.totalorder %s340, %s342
      %p346 = scmp.eq.s32.totalorder %s44, 0
      %p347 = por %p345, %p346
      %p348 = scmp.ne.s32.totalorder %s340, %s342
      %p349 = scmp.eq.s32.totalorder %s49, 1
      %p350 = por %p348, %p349
      %p351 = scmp.ne.s32.totalorder %s342, %s343
      %p352 = scmp.eq.s32.totalorder %s49, 0
      %p353 = por %p351, %p352
      %p354 = scmp.ne.s32.totalorder %s342, %s343
      %p355 = scmp.eq.s32.totalorder %s50, 1
      %p356 = por %p354, %p355
      %p358 = scmp.ne.s32.totalorder %s343, %s357
      %p359 = scmp.eq.s32.totalorder %s50, 0
      %p360 = por %p358, %p359
      %s362 = sadd.s32 %s361, 1
      %p365 = scmp.eq.s32.totalorder %s44, 1
      %p366 = scmp.ne.s32.totalorder %s361, %s363
      %p367 = scmp.eq.s32.totalorder %s44, 0
      %p368 = por %p366, %p367
      %p369 = scmp.ne.s32.totalorder %s361, %s363
      %p370 = scmp.eq.s32.totalorder %s49, 1
      %p371 = por %p369, %p370
      %p372 = scmp.ne.s32.totalorder %s363, %s364
      %p373 = scmp.eq.s32.totalorder %s49, 0
      %p374 = por %p372, %p373
      %p375 = scmp.ne.s32.totalorder %s363, %s364
      %p376 = scmp.eq.s32.totalorder %s50, 1
      %p377 = por %p375, %p376
      %p379 = scmp.ne.s32.totalorder %s364, %s378
      %p380 = scmp.eq.s32.totalorder %s50, 0
      %p381 = por %p379, %p380
      %s383 = sadd.s32 %s382, 1
      %p386 = scmp.eq.s32.totalorder %s44, 1
      %p387 = scmp.ne.s32.totalorder %s382, %s384
      %p388 = scmp.eq.s32.totalorder %s44, 0
      %p389 = por %p387, %p388
      %p390 = scmp.ne.s32.totalorder %s382, %s384
      %p391 = scmp.eq.s32.totalorder %s49, 1
      %p392 = por %p390, %p391
      %p393 = scmp.ne.s32.totalorder %s384, %s385
      %p394 = scmp.eq.s32.totalorder %s49, 0
      %p395 = por %p393, %p394
      %p396 = scmp.ne.s32.totalorder %s384, %s385
      %p397 = scmp.eq.s32.totalorder %s50, 1
      %p398 = por %p396, %p397
      %p400 = scmp.ne.s32.totalorder %s385, %s399
      %p401 = scmp.eq.s32.totalorder %s50, 0
      %p402 = por %p400, %p401
      %s404 = sadd.s32 %s403, 1
      %p407 = scmp.eq.s32.totalorder %s44, 1
      %p408 = scmp.ne.s32.totalorder %s403, %s405
      %p409 = scmp.eq.s32.totalorder %s44, 0
      %p410 = por %p408, %p409
      %p411 = scmp.ne.s32.totalorder %s403, %s405
      %p412 = scmp.eq.s32.totalorder %s49, 1
      %p413 = por %p411, %p412
      %p414 = scmp.ne.s32.totalorder %s405, %s406
      %p415 = scmp.eq.s32.totalorder %s49, 0
      %p416 = por %p414, %p415
      %p417 = scmp.ne.s32.totalorder %s405, %s406
      %p418 = scmp.eq.s32.totalorder %s50, 1
      %p419 = por %p417, %p418
      %p421 = scmp.ne.s32.totalorder %s406, %s420
      %p422 = scmp.eq.s32.totalorder %s50, 0
      %p423 = por %p421, %p422
      %s425 = sadd.s32 %s424, 1
      %p428 = scmp.eq.s32.totalorder %s44, 1
      %p429 = scmp.ne.s32.totalorder %s424, %s426
      %p430 = scmp.eq.s32.totalorder %s44, 0
      %p431 = por %p429, %p430
      %p432 = scmp.ne.s32.totalorder %s424, %s426
      %p433 = scmp.eq.s32.totalorder %s49, 1
      %p434 = por %p432, %p433
      %p435 = scmp.ne.s32.totalorder %s426, %s427
      %p436 = scmp.eq.s32.totalorder %s49, 0
      %p437 = por %p435, %p436
      %p438 = scmp.ne.s32.totalorder %s426, %s427
      %p439 = scmp.eq.s32.totalorder %s50, 1
      %p440 = por %p438, %p439
      %p442 = scmp.ne.s32.totalorder %s427, %s441
      %p443 = scmp.eq.s32.totalorder %s50, 0
      %p444 = por %p442, %p443
      %s446 = sadd.s32 %s445, 1
      %p449 = scmp.eq.s32.totalorder %s44, 1
      %p450 = scmp.ne.s32.totalorder %s445, %s447
      %p451 = scmp.eq.s32.totalorder %s44, 0
      %p452 = por %p450, %p451
      %p453 = scmp.ne.s32.totalorder %s445, %s447
      %p454 = scmp.eq.s32.totalorder %s49, 1
      %p455 = por %p453, %p454
      %p456 = scmp.ne.s32.totalorder %s447, %s448
      %p457 = scmp.eq.s32.totalorder %s49, 0
      %p458 = por %p456, %p457
      %p459 = scmp.ne.s32.totalorder %s447, %s448
      %p460 = scmp.eq.s32.totalorder %s50, 1
      %p461 = por %p459, %p460
      %p463 = scmp.ne.s32.totalorder %s448, %s462
      %p464 = scmp.eq.s32.totalorder %s50, 0
      %p465 = por %p463, %p464
      %s467 = sadd.s32 %s466, 1
      %p470 = scmp.eq.s32.totalorder %s44, 1
      %p471 = scmp.ne.s32.totalorder %s466, %s468
      %p472 = scmp.eq.s32.totalorder %s44, 0
      %p473 = por %p471, %p472
      %p474 = scmp.ne.s32.totalorder %s466, %s468
      %p475 = scmp.eq.s32.totalorder %s49, 1
      %p476 = por %p474, %p475
      %p477 = scmp.ne.s32.totalorder %s468, %s469
      %p478 = scmp.eq.s32.totalorder %s49, 0
      %p479 = por %p477, %p478
      %p480 = scmp.ne.s32.totalorder %s468, %s469
      %p481 = scmp.eq.s32.totalorder %s50, 1
      %p482 = por %p480, %p481
      %p484 = scmp.ne.s32.totalorder %s469, %s483
      %p485 = scmp.eq.s32.totalorder %s50, 0
      %p486 = por %p484, %p485
      %s488 = sadd.s32 %s487, 1
      %p491 = scmp.eq.s32.totalorder %s44, 1
      %p492 = scmp.ne.s32.totalorder %s487, %s489
      %p493 = scmp.eq.s32.totalorder %s44, 0
      %p494 = por %p492, %p493
      %p495 = scmp.ne.s32.totalorder %s487, %s489
      %p496 = scmp.eq.s32.totalorder %s49, 1
      %p497 = por %p495, %p496
      %p498 = scmp.ne.s32.totalorder %s489, %s490
      %p499 = scmp.eq.s32.totalorder %s49, 0
      %p500 = por %p498, %p499
      %p501 = scmp.ne.s32.totalorder %s489, %s490
      %p502 = scmp.eq.s32.totalorder %s50, 1
      %p503 = por %p501, %p502
      %p505 = scmp.ne.s32.totalorder %s490, %s504
      %p506 = scmp.eq.s32.totalorder %s50, 0
      %p507 = por %p505, %p506
      %s509 = sadd.s32 %s508, 1
      %p512 = scmp.eq.s32.totalorder %s44, 1
      %p513 = scmp.ne.s32.totalorder %s508, %s510
      %p514 = scmp.eq.s32.totalorder %s44, 0
      %p515 = por %p513, %p514
      %p516 = scmp.ne.s32.totalorder %s508, %s510
      %p517 = scmp.eq.s32.totalorder %s49, 1
      %p518 = por %p516, %p517
      %p519 = scmp.ne.s32.totalorder %s510, %s511
      %p520 = scmp.eq.s32.totalorder %s49, 0
      %p521 = por %p519, %p520
      %p522 = scmp.ne.s32.totalorder %s510, %s511
      %p523 = scmp.eq.s32.totalorder %s50, 1
      %p524 = por %p522, %p523
      %p526 = scmp.ne.s32.totalorder %s511, %s525
      %p527 = scmp.eq.s32.totalorder %s50, 0
      %p528 = por %p526, %p527
      %s529 = ssub.s32 %s44, %s51
      %p530 = scmp.eq.s32.totalorder %s529, 0
      %s532 = sadd.s32 %s531, 1
      %s533 = scalar_select %p530, %s531, %s532
      %p536 = pneg %p530
      %p537 = scmp.eq.s32.totalorder %s44, 1
      %p538 = por %p536, %p537
      %p539 = scmp.ne.s32.totalorder %s531, %s534
      %p540 = scmp.eq.s32.totalorder %s44, 0
      %p541 = por %p539, %p540
      %p542 = scmp.ne.s32.totalorder %s531, %s534
      %p543 = scmp.eq.s32.totalorder %s49, 1
      %p544 = por %p542, %p543
      %p545 = scmp.ne.s32.totalorder %s534, %s535
      %p546 = scmp.eq.s32.totalorder %s49, 0
      %p547 = por %p545, %p546
      %p548 = scmp.ne.s32.totalorder %s534, %s535
      %p549 = scmp.eq.s32.totalorder %s50, 1
      %p550 = por %p548, %p549
      %p552 = scmp.ne.s32.totalorder %s535, %s551
      %p553 = scmp.eq.s32.totalorder %s50, 0
      %p554 = por %p552, %p553
      %p555 = scmp.le.s32.totalorder 1, %s44
      %p556 = scmp.lt.s32.totalorder %s44, 3
      %p557 = pnand %p555, %p556
      %p558 = pneg %p557
      // Predicated region
      $region9: #{tpu_custom_call.1} parent=5 // pred_check
        _
      $region10: #{tpu_custom_call.1} parent=5 // pred_check_branch
        %560 = sbr.rel (%p557) target = $region12
      $region11: #{tpu_custom_call.1} parent=5 // pred_region
        %s561 = ssub.s32 %s44, 1
        // Predicated region
        $region13: #{tpu_custom_call.1} parent=11 // pred_check
          %p562 = pneg %p91
        $region14: #{tpu_custom_call.1} parent=11 // pred_check_branch
          %564 = sbr.rel (%p562) target = $region16
        $region15: #{tpu_custom_call.1} parent=11 // pred_region
          %s566 = ssub.s32 256, 256
          %567 = vsyncadd [#allocation6], %s566
          %s568 = sshll.u32 [#allocation5], 4
          %s569 = int_to_ptr.vmem [resolvable:$true] %s568
          %574 = dma.hbm_to_vmem [thread:$0]  %s1, 256, %s569, [#allocation6], 128, 128, 8
        $region16: #{tpu_custom_call.1} parent=11 // pred_fallthru
          _
        // Predicated region
        $region17: #{tpu_custom_call.1} parent=11 // pred_check
          %p575 = pneg %p164
        $region18: #{tpu_custom_call.1} parent=11 // pred_check_branch
          %577 = sbr.rel (%p575) target = $region20
        $region19: #{tpu_custom_call.1} parent=11 // pred_region
          %s579 = ssub.s32 2048, 2048
          %580 = vsyncadd [#allocation6], %s579
          %s581 = sshll.u32 [#allocation9], 4
          %s582 = int_to_ptr.vmem [resolvable:$true] %s581
          %587 = dma.hbm_to_vmem [thread:$0]  %s4, 2048, %s582, [#allocation6], 128, 128, 8
        $region20: #{tpu_custom_call.1} parent=11 // pred_fallthru
          _
        // Predicated region
        $region21: #{tpu_custom_call.1} parent=11 // pred_check
          %p588 = pneg %p185
        $region22: #{tpu_custom_call.1} parent=11 // pred_check_branch
          %590 = sbr.rel (%p588) target = $region24
        $region23: #{tpu_custom_call.1} parent=11 // pred_region
          %s592 = ssub.s32 16, 16
          %593 = vsyncadd [#allocation11], %s592
          %s595 = sshll.u32 [#allocation10], 4
          %s596 = int_to_ptr.vmem [resolvable:$true] %s595
          %598 = dma.hbm_to_vmem [thread:$0]  %s5, 16, %s596, [#allocation11]
        $region24: #{tpu_custom_call.1} parent=11 // pred_fallthru
          _
        // Predicated region
        $region25: #{tpu_custom_call.1} parent=11 // pred_check
          %p599 = pneg %p206
        $region26: #{tpu_custom_call.1} parent=11 // pred_check_branch
          %601 = sbr.rel (%p599) target = $region28
        $region27: #{tpu_custom_call.1} parent=11 // pred_region
          %s603 = ssub.s32 2048, 2048
          %604 = vsyncadd [#allocation11], %s603
          %s605 = sshll.u32 [#allocation12], 4
          %s606 = int_to_ptr.vmem [resolvable:$true] %s605
          %611 = dma.hbm_to_vmem [thread:$0]  %s6, 2048, %s606, [#allocation11], 128, 128, 8
        $region28: #{tpu_custom_call.1} parent=11 // pred_fallthru
          _
        // Predicated region
        $region29: #{tpu_custom_call.1} parent=11 // pred_check
          %p612 = pneg %p227
        $region30: #{tpu_custom_call.1} parent=11 // pred_check_branch
          %614 = sbr.rel (%p612) target = $region32
        $region31: #{tpu_custom_call.1} parent=11 // pred_region
          %s616 = ssub.s32 16, 16
          %617 = vsyncadd [#allocation14], %s616
          %s619 = sshll.u32 [#allocation13], 4
          %s620 = int_to_ptr.vmem [resolvable:$true] %s619
          %622 = dma.hbm_to_vmem [thread:$0]  %s7, 16, %s620, [#allocation14]
        $region32: #{tpu_custom_call.1} parent=11 // pred_fallthru
          _
        // Predicated region
        $region33: #{tpu_custom_call.1} parent=11 // pred_check
          %p623 = pneg %p248
        $region34: #{tpu_custom_call.1} parent=11 // pred_check_branch
          %625 = sbr.rel (%p623) target = $region36
        $region35: #{tpu_custom_call.1} parent=11 // pred_region
          %s627 = ssub.s32 2048, 2048
          %628 = vsyncadd [#allocation14], %s627
          %s629 = sshll.u32 [#allocation15], 4
          %s630 = int_to_ptr.vmem [resolvable:$true] %s629
          %635 = dma.hbm_to_vmem [thread:$0]  %s8, 2048, %s630, [#allocation14], 128, 128, 8
        $region36: #{tpu_custom_call.1} parent=11 // pred_fallthru
          _
        // Predicated region
        $region37: #{tpu_custom_call.1} parent=11 // pred_check
          %p636 = pneg %p269
        $region38: #{tpu_custom_call.1} parent=11 // pred_check_branch
          %638 = sbr.rel (%p636) target = $region40
        $region39: #{tpu_custom_call.1} parent=11 // pred_region
          %s640 = ssub.s32 16, 16
          %641 = vsyncadd [#allocation17], %s640
          %s643 = sshll.u32 [#allocation16], 4
          %s644 = int_to_ptr.vmem [resolvable:$true] %s643
          %646 = dma.hbm_to_vmem [thread:$0]  %s9, 16, %s644, [#allocation17]
        $region40: #{tpu_custom_call.1} parent=11 // pred_fallthru
          _
        // Predicated region
        $region41: #{tpu_custom_call.1} parent=11 // pred_check
          %p647 = pneg %p290
        $region42: #{tpu_custom_call.1} parent=11 // pred_check_branch
          %649 = sbr.rel (%p647) target = $region44
        $region43: #{tpu_custom_call.1} parent=11 // pred_region
          %s651 = ssub.s32 2048, 2048
          %652 = vsyncadd [#allocation17], %s651
          %s653 = sshll.u32 [#allocation18], 4
          %s654 = int_to_ptr.vmem [resolvable:$true] %s653
          %659 = dma.hbm_to_vmem [thread:$0]  %s10, 2048, %s654, [#allocation17], 128, 128, 8
        $region44: #{tpu_custom_call.1} parent=11 // pred_fallthru
          _
        // Predicated region
        $region45: #{tpu_custom_call.1} parent=11 // pred_check
          %p660 = pneg %p311
        $region46: #{tpu_custom_call.1} parent=11 // pred_check_branch
          %662 = sbr.rel (%p660) target = $region48
        $region47: #{tpu_custom_call.1} parent=11 // pred_region
          %s664 = ssub.s32 16, 16
          %665 = vsyncadd [#allocation20], %s664
          %s667 = sshll.u32 [#allocation19], 4
          %s668 = int_to_ptr.vmem [resolvable:$true] %s667
          %670 = dma.hbm_to_vmem [thread:$0]  %s11, 16, %s668, [#allocation20]
        $region48: #{tpu_custom_call.1} parent=11 // pred_fallthru
          _
        // Predicated region
        $region49: #{tpu_custom_call.1} parent=11 // pred_check
          %p671 = pneg %p332
        $region50: #{tpu_custom_call.1} parent=11 // pred_check_branch
          %673 = sbr.rel (%p671) target = $region52
        $region51: #{tpu_custom_call.1} parent=11 // pred_region
          %s675 = ssub.s32 16, 16
          %676 = vsyncadd [#allocation20], %s675
          %s678 = sshll.u32 [#allocation21], 4
          %s679 = int_to_ptr.vmem [resolvable:$true] %s678
          %681 = dma.hbm_to_vmem [thread:$0]  %s12, 16, %s679, [#allocation20]
        $region52: #{tpu_custom_call.1} parent=11 // pred_fallthru
          _
        // Predicated region
        $region53: #{tpu_custom_call.1} parent=11 // pred_check
          %p682 = pneg %p353
        $region54: #{tpu_custom_call.1} parent=11 // pred_check_branch
          %684 = sbr.rel (%p682) target = $region56
        $region55: #{tpu_custom_call.1} parent=11 // pred_region
          %s686 = ssub.s32 16, 16
          %687 = vsyncadd [#allocation23], %s686
          %s689 = sshll.u32 [#allocation22], 4
          %s690 = int_to_ptr.vmem [resolvable:$true] %s689
          %692 = dma.hbm_to_vmem [thread:$0]  %s13, 16, %s690, [#allocation23]
        $region56: #{tpu_custom_call.1} parent=11 // pred_fallthru
          _
        // Predicated region
        $region57: #{tpu_custom_call.1} parent=11 // pred_check
          %p693 = pneg %p374
        $region58: #{tpu_custom_call.1} parent=11 // pred_check_branch
          %695 = sbr.rel (%p693) target = $region60
        $region59: #{tpu_custom_call.1} parent=11 // pred_region
          %s697 = ssub.s32 2048, 2048
          %698 = vsyncadd [#allocation23], %s697
          %s699 = sshll.u32 [#allocation24], 4
          %s700 = int_to_ptr.vmem [resolvable:$true] %s699
          %705 = dma.hbm_to_vmem [thread:$0]  %s14, 2048, %s700, [#allocation23], 128, 128, 8
        $region60: #{tpu_custom_call.1} parent=11 // pred_fallthru
          _
        // Predicated region
        $region61: #{tpu_custom_call.1} parent=11 // pred_check
          %p706 = pneg %p395
        $region62: #{tpu_custom_call.1} parent=11 // pred_check_branch
          %708 = sbr.rel (%p706) target = $region64
        $region63: #{tpu_custom_call.1} parent=11 // pred_region
          %s710 = ssub.s32 16, 16
          %711 = vsyncadd [#allocation26], %s710
          %s713 = sshll.u32 [#allocation25], 4
          %s714 = int_to_ptr.vmem [resolvable:$true] %s713
          %716 = dma.hbm_to_vmem [thread:$0]  %s15, 16, %s714, [#allocation26]
        $region64: #{tpu_custom_call.1} parent=11 // pred_fallthru
          _
        // Predicated region
        $region65: #{tpu_custom_call.1} parent=11 // pred_check
          %p717 = pneg %p416
        $region66: #{tpu_custom_call.1} parent=11 // pred_check_branch
          %719 = sbr.rel (%p717) target = $region68
        $region67: #{tpu_custom_call.1} parent=11 // pred_region
          %s721 = ssub.s32 2048, 2048
          %722 = vsyncadd [#allocation26], %s721
          %s723 = sshll.u32 [#allocation27], 4
          %s724 = int_to_ptr.vmem [resolvable:$true] %s723
          %729 = dma.hbm_to_vmem [thread:$0]  %s16, 2048, %s724, [#allocation26], 128, 128, 8
        $region68: #{tpu_custom_call.1} parent=11 // pred_fallthru
          _
        // Predicated region
        $region69: #{tpu_custom_call.1} parent=11 // pred_check
          %p730 = pneg %p437
        $region70: #{tpu_custom_call.1} parent=11 // pred_check_branch
          %732 = sbr.rel (%p730) target = $region72
        $region71: #{tpu_custom_call.1} parent=11 // pred_region
          %s734 = ssub.s32 16, 16
          %735 = vsyncadd [#allocation29], %s734
          %s737 = sshll.u32 [#allocation28], 4
          %s738 = int_to_ptr.vmem [resolvable:$true] %s737
          %740 = dma.hbm_to_vmem [thread:$0]  %s17, 16, %s738, [#allocation29]
        $region72: #{tpu_custom_call.1} parent=11 // pred_fallthru
          _
        // Predicated region
        $region73: #{tpu_custom_call.1} parent=11 // pred_check
          %p741 = pneg %p458
        $region74: #{tpu_custom_call.1} parent=11 // pred_check_branch
          %743 = sbr.rel (%p741) target = $region76
        $region75: #{tpu_custom_call.1} parent=11 // pred_region
          %s745 = ssub.s32 16, 16
          %746 = vsyncadd [#allocation29], %s745
          %s748 = sshll.u32 [#allocation30], 4
          %s749 = int_to_ptr.vmem [resolvable:$true] %s748
          %751 = dma.hbm_to_vmem [thread:$0]  %s18, 16, %s749, [#allocation29]
        $region76: #{tpu_custom_call.1} parent=11 // pred_fallthru
          _
        // Predicated region
        $region77: #{tpu_custom_call.1} parent=11 // pred_check
          %p752 = pneg %p479
        $region78: #{tpu_custom_call.1} parent=11 // pred_check_branch
          %754 = sbr.rel (%p752) target = $region80
        $region79: #{tpu_custom_call.1} parent=11 // pred_region
          %s756 = ssub.s32 16, 16
          %757 = vsyncadd [#allocation32], %s756
          %s759 = sshll.u32 [#allocation31], 4
          %s760 = int_to_ptr.vmem [resolvable:$true] %s759
          %762 = dma.hbm_to_vmem [thread:$0]  %s19, 16, %s760, [#allocation32]
        $region80: #{tpu_custom_call.1} parent=11 // pred_fallthru
          _
        // Predicated region
        $region81: #{tpu_custom_call.1} parent=11 // pred_check
          %p763 = pneg %p500
        $region82: #{tpu_custom_call.1} parent=11 // pred_check_branch
          %765 = sbr.rel (%p763) target = $region84
        $region83: #{tpu_custom_call.1} parent=11 // pred_region
          %s767 = ssub.s32 2048, 2048
          %768 = vsyncadd [#allocation32], %s767
          %s769 = sshll.u32 [#allocation33], 4
          %s770 = int_to_ptr.vmem [resolvable:$true] %s769
          %775 = dma.hbm_to_vmem [thread:$0]  %s20, 2048, %s770, [#allocation32], 128, 128, 8
        $region84: #{tpu_custom_call.1} parent=11 // pred_fallthru
          _
        // Predicated region
        $region85: #{tpu_custom_call.1} parent=11 // pred_check
          %p776 = pneg %p521
        $region86: #{tpu_custom_call.1} parent=11 // pred_check_branch
          %778 = sbr.rel (%p776) target = $region88
        $region87: #{tpu_custom_call.1} parent=11 // pred_region
          %s780 = ssub.s32 64, 64
          %781 = vsyncadd [#allocation35], %s780
          %s783 = sshll.u32 [#allocation34], 4
          %s784 = int_to_ptr.vmem [resolvable:$true] %s783
          %786 = dma.hbm_to_vmem [thread:$0]  %s21, 64, %s784, [#allocation35]
        $region88: #{tpu_custom_call.1} parent=11 // pred_fallthru
          _
      $region12: #{tpu_custom_call.1} parent=5 // pred_fallthru
        _
      %p787 = scmp.lt.s32.totalorder %s44, 2
      // Predicated region
      $region89: #{tpu_custom_call.1} parent=5 // pred_check
        %p788 = pneg %p787
      $region90: #{tpu_custom_call.1} parent=5 // pred_check_branch
        %790 = sbr.rel (%p788) target = $region92
      $region91: #{tpu_custom_call.1} parent=5 // pred_region
        // Predicated region
        $region93: #{tpu_custom_call.1} parent=91 // pred_check
          %p791 = pneg %p64
        $region94: #{tpu_custom_call.1} parent=91 // pred_check_branch
          %793 = sbr.rel (%p791) target = $region96
        $region95: #{tpu_custom_call.1} parent=91 // pred_region
          %s794 = sand.u32 %s44, 1
          %s795 = scalar_lea.sflag [#allocation3], %s794
          %s796 = sand.u32 %s54, 1
          %s797 = smul.addr %s796, 8
          %s798 = scalar_lea.vmem [#allocation2], %s797
          %s800 = ssub.s32 128, 128
          %801 = vsyncadd %s795, %s800
          %s802 = smul.addr %s44, 128
          %s803 = scalar_lea.hbm %s0, %s802
          %s805 = sshll.u32 %s798, 4
          %s806 = int_to_ptr.vmem [resolvable:$true] %s805
          %808 = dma.hbm_to_vmem [thread:$0]  %s803, 128, %s806, %s795
        $region96: #{tpu_custom_call.1} parent=91 // pred_fallthru
          _
        // Predicated region
        $region97: #{tpu_custom_call.1} parent=91 // pred_check
          %p809 = pneg %p111
        $region98: #{tpu_custom_call.1} parent=91 // pred_check_branch
          %811 = sbr.rel (%p809) target = $region100
        $region99: #{tpu_custom_call.1} parent=91 // pred_region
          %s812 = sand.u32 %s44, 1
          %s813 = scalar_lea.sflag [#allocation3], %s812
          %s814 = sand.u32 %s101, 1
          %s815 = smul.addr %s814, 128
          %s816 = scalar_lea.vmem [#allocation7], %s815
          %s817 = smul.u32 8, %s44
          %s819 = ssub.s32 2048, 2048
          %820 = vsyncadd %s813, %s819
          %s821 = smul.addr %s817, 2
          %s822 = smul.addr %s821, 128
          %s823 = scalar_lea.hbm %s2, %s822
          %s824 = sshll.u32 %s816, 4
          %s825 = int_to_ptr.vmem [resolvable:$true] %s824
          %830 = dma.hbm_to_vmem [thread:$0]  %s823, 2048, %s825, %s813, 128, 128, 8
        $region100: #{tpu_custom_call.1} parent=91 // pred_fallthru
          _
        // Predicated region
        $region101: #{tpu_custom_call.1} parent=91 // pred_check
          %p831 = pneg %p137
        $region102: #{tpu_custom_call.1} parent=91 // pred_check_branch
          %833 = sbr.rel (%p831) target = $region104
        $region103: #{tpu_custom_call.1} parent=91 // pred_region
          %s834 = sand.u32 %s44, 1
          %s835 = scalar_lea.sflag [#allocation3], %s834
          %s836 = sand.u32 %s127, 1
          %s837 = smul.addr %s836, 8
          %s838 = scalar_lea.vmem [#allocation8], %s837
          %s840 = ssub.s32 128, 128
          %841 = vsyncadd %s835, %s840
          %s842 = smul.addr %s44, 128
          %s843 = scalar_lea.hbm %s3, %s842
          %s845 = sshll.u32 %s838, 4
          %s846 = int_to_ptr.vmem [resolvable:$true] %s845
          %848 = dma.hbm_to_vmem [thread:$0]  %s843, 128, %s846, %s835
        $region104: #{tpu_custom_call.1} parent=91 // pred_fallthru
          _
      $region92: #{tpu_custom_call.1} parent=5 // pred_fallthru
        _
      %p849 = scmp.le.s32.totalorder 1, %s44
      %p850 = scmp.lt.s32.totalorder %s44, 3
      %p851 = pnand %p849, %p850
      %p852 = pneg %p851
      // Predicated region
      $region105: #{tpu_custom_call.1} parent=5 // pred_check
        _
      $region106: #{tpu_custom_call.1} parent=5 // pred_check_branch
        %854 = sbr.rel (%p851) target = $region108
      $region107: #{tpu_custom_call.1} parent=5 // pred_region
        %s855 = ssub.s32 %s44, 1
        %s856 = sand.u32 %s49, 1
        %s857 = scalar_lea.sflag [#allocation3], %s856
        %s858 = sand.u32 %s57, 1
        %s859 = smul.addr %s858, 8
        %s860 = scalar_lea.vmem [#allocation2], %s859
        // Predicated region
        $region109: #{tpu_custom_call.1} parent=107 // pred_check
          %p861 = pneg %p70
        $region110: #{tpu_custom_call.1} parent=107 // pred_check_branch
          %863 = sbr.rel (%p861) target = $region112
        $region111: #{tpu_custom_call.1} parent=107 // pred_region
          %864 = dma.done %s857, 128
        $region112: #{tpu_custom_call.1} parent=107 // pred_fallthru
          _
        // Predicated region
        $region113: #{tpu_custom_call.1} parent=107 // pred_check
          %p865 = pneg %p91
        $region114: #{tpu_custom_call.1} parent=107 // pred_check_branch
          %867 = sbr.rel (%p865) target = $region116
        $region115: #{tpu_custom_call.1} parent=107 // pred_region
          %868 = dma.done [#allocation6], 256
        $region116: #{tpu_custom_call.1} parent=107 // pred_fallthru
          _
        %s869 = sand.u32 %s49, 1
        %s870 = scalar_lea.sflag [#allocation3], %s869
        %s871 = sand.u32 %s104, 1
        %s872 = smul.addr %s871, 128
        %s873 = scalar_lea.vmem [#allocation7], %s872
        // Predicated region
        $region117: #{tpu_custom_call.1} parent=107 // pred_check
          %p874 = pneg %p117
        $region118: #{tpu_custom_call.1} parent=107 // pred_check_branch
          %876 = sbr.rel (%p874) target = $region120
        $region119: #{tpu_custom_call.1} parent=107 // pred_region
          %877 = dma.done %s870, 2048
        $region120: #{tpu_custom_call.1} parent=107 // pred_fallthru
          _
        %s878 = sand.u32 %s49, 1
        %s879 = scalar_lea.sflag [#allocation3], %s878
        %s880 = sand.u32 %s130, 1
        %s881 = smul.addr %s880, 8
        %s882 = scalar_lea.vmem [#allocation8], %s881
        // Predicated region
        $region121: #{tpu_custom_call.1} parent=107 // pred_check
          %p883 = pneg %p143
        $region122: #{tpu_custom_call.1} parent=107 // pred_check_branch
          %885 = sbr.rel (%p883) target = $region124
        $region123: #{tpu_custom_call.1} parent=107 // pred_region
          %886 = dma.done %s879, 128
        $region124: #{tpu_custom_call.1} parent=107 // pred_fallthru
          _
        // Predicated region
        $region125: #{tpu_custom_call.1} parent=107 // pred_check
          %p887 = pneg %p164
        $region126: #{tpu_custom_call.1} parent=107 // pred_check_branch
          %889 = sbr.rel (%p887) target = $region128
        $region127: #{tpu_custom_call.1} parent=107 // pred_region
          %890 = dma.done [#allocation6], 2048
        $region128: #{tpu_custom_call.1} parent=107 // pred_fallthru
          _
        // Predicated region
        $region129: #{tpu_custom_call.1} parent=107 // pred_check
          %p891 = pneg %p185
        $region130: #{tpu_custom_call.1} parent=107 // pred_check_branch
          %893 = sbr.rel (%p891) target = $region132
        $region131: #{tpu_custom_call.1} parent=107 // pred_region
          %894 = dma.done [#allocation11], 16
        $region132: #{tpu_custom_call.1} parent=107 // pred_fallthru
          _
        // Predicated region
        $region133: #{tpu_custom_call.1} parent=107 // pred_check
          %p895 = pneg %p206
        $region134: #{tpu_custom_call.1} parent=107 // pred_check_branch
          %897 = sbr.rel (%p895) target = $region136
        $region135: #{tpu_custom_call.1} parent=107 // pred_region
          %898 = dma.done [#allocation11], 2048
        $region136: #{tpu_custom_call.1} parent=107 // pred_fallthru
          _
        // Predicated region
        $region137: #{tpu_custom_call.1} parent=107 // pred_check
          %p899 = pneg %p227
        $region138: #{tpu_custom_call.1} parent=107 // pred_check_branch
          %901 = sbr.rel (%p899) target = $region140
        $region139: #{tpu_custom_call.1} parent=107 // pred_region
          %902 = dma.done [#allocation14], 16
        $region140: #{tpu_custom_call.1} parent=107 // pred_fallthru
          _
        // Predicated region
        $region141: #{tpu_custom_call.1} parent=107 // pred_check
          %p903 = pneg %p248
        $region142: #{tpu_custom_call.1} parent=107 // pred_check_branch
          %905 = sbr.rel (%p903) target = $region144
        $region143: #{tpu_custom_call.1} parent=107 // pred_region
          %906 = dma.done [#allocation14], 2048
        $region144: #{tpu_custom_call.1} parent=107 // pred_fallthru
          _
        // Predicated region
        $region145: #{tpu_custom_call.1} parent=107 // pred_check
          %p907 = pneg %p269
        $region146: #{tpu_custom_call.1} parent=107 // pred_check_branch
          %909 = sbr.rel (%p907) target = $region148
        $region147: #{tpu_custom_call.1} parent=107 // pred_region
          %910 = dma.done [#allocation17], 16
        $region148: #{tpu_custom_call.1} parent=107 // pred_fallthru
          _
        // Predicated region
        $region149: #{tpu_custom_call.1} parent=107 // pred_check
          %p911 = pneg %p290
        $region150: #{tpu_custom_call.1} parent=107 // pred_check_branch
          %913 = sbr.rel (%p911) target = $region152
        $region151: #{tpu_custom_call.1} parent=107 // pred_region
          %914 = dma.done [#allocation17], 2048
        $region152: #{tpu_custom_call.1} parent=107 // pred_fallthru
          _
        // Predicated region
        $region153: #{tpu_custom_call.1} parent=107 // pred_check
          %p915 = pneg %p311
        $region154: #{tpu_custom_call.1} parent=107 // pred_check_branch
          %917 = sbr.rel (%p915) target = $region156
        $region155: #{tpu_custom_call.1} parent=107 // pred_region
          %918 = dma.done [#allocation20], 16
        $region156: #{tpu_custom_call.1} parent=107 // pred_fallthru
          _
        // Predicated region
        $region157: #{tpu_custom_call.1} parent=107 // pred_check
          %p919 = pneg %p332
        $region158: #{tpu_custom_call.1} parent=107 // pred_check_branch
          %921 = sbr.rel (%p919) target = $region160
        $region159: #{tpu_custom_call.1} parent=107 // pred_region
          %922 = dma.done [#allocation20], 16
        $region160: #{tpu_custom_call.1} parent=107 // pred_fallthru
          _
        // Predicated region
        $region161: #{tpu_custom_call.1} parent=107 // pred_check
          %p923 = pneg %p353
        $region162: #{tpu_custom_call.1} parent=107 // pred_check_branch
          %925 = sbr.rel (%p923) target = $region164
        $region163: #{tpu_custom_call.1} parent=107 // pred_region
          %926 = dma.done [#allocation23], 16
        $region164: #{tpu_custom_call.1} parent=107 // pred_fallthru
          _
        // Predicated region
        $region165: #{tpu_custom_call.1} parent=107 // pred_check
          %p927 = pneg %p374
        $region166: #{tpu_custom_call.1} parent=107 // pred_check_branch
          %929 = sbr.rel (%p927) target = $region168
        $region167: #{tpu_custom_call.1} parent=107 // pred_region
          %930 = dma.done [#allocation23], 2048
        $region168: #{tpu_custom_call.1} parent=107 // pred_fallthru
          _
        // Predicated region
        $region169: #{tpu_custom_call.1} parent=107 // pred_check
          %p931 = pneg %p395
        $region170: #{tpu_custom_call.1} parent=107 // pred_check_branch
          %933 = sbr.rel (%p931) target = $region172
        $region171: #{tpu_custom_call.1} parent=107 // pred_region
          %934 = dma.done [#allocation26], 16
        $region172: #{tpu_custom_call.1} parent=107 // pred_fallthru
          _
        // Predicated region
        $region173: #{tpu_custom_call.1} parent=107 // pred_check
          %p935 = pneg %p416
        $region174: #{tpu_custom_call.1} parent=107 // pred_check_branch
          %937 = sbr.rel (%p935) target = $region176
        $region175: #{tpu_custom_call.1} parent=107 // pred_region
          %938 = dma.done [#allocation26], 2048
        $region176: #{tpu_custom_call.1} parent=107 // pred_fallthru
          _
        // Predicated region
        $region177: #{tpu_custom_call.1} parent=107 // pred_check
          %p939 = pneg %p437
        $region178: #{tpu_custom_call.1} parent=107 // pred_check_branch
          %941 = sbr.rel (%p939) target = $region180
        $region179: #{tpu_custom_call.1} parent=107 // pred_region
          %942 = dma.done [#allocation29], 16
        $region180: #{tpu_custom_call.1} parent=107 // pred_fallthru
          _
        // Predicated region
        $region181: #{tpu_custom_call.1} parent=107 // pred_check
          %p943 = pneg %p458
        $region182: #{tpu_custom_call.1} parent=107 // pred_check_branch
          %945 = sbr.rel (%p943) target = $region184
        $region183: #{tpu_custom_call.1} parent=107 // pred_region
          %946 = dma.done [#allocation29], 16
        $region184: #{tpu_custom_call.1} parent=107 // pred_fallthru
          _
        // Predicated region
        $region185: #{tpu_custom_call.1} parent=107 // pred_check
          %p947 = pneg %p479
        $region186: #{tpu_custom_call.1} parent=107 // pred_check_branch
          %949 = sbr.rel (%p947) target = $region188
        $region187: #{tpu_custom_call.1} parent=107 // pred_region
          %950 = dma.done [#allocation32], 16
        $region188: #{tpu_custom_call.1} parent=107 // pred_fallthru
          _
        // Predicated region
        $region189: #{tpu_custom_call.1} parent=107 // pred_check
          %p951 = pneg %p500
        $region190: #{tpu_custom_call.1} parent=107 // pred_check_branch
          %953 = sbr.rel (%p951) target = $region192
        $region191: #{tpu_custom_call.1} parent=107 // pred_region
          %954 = dma.done [#allocation32], 2048
        $region192: #{tpu_custom_call.1} parent=107 // pred_fallthru
          _
        // Predicated region
        $region193: #{tpu_custom_call.1} parent=107 // pred_check
          %p955 = pneg %p521
        $region194: #{tpu_custom_call.1} parent=107 // pred_check_branch
          %957 = sbr.rel (%p955) target = $region196
        $region195: #{tpu_custom_call.1} parent=107 // pred_region
          %958 = dma.done [#allocation35], 64
        $region196: #{tpu_custom_call.1} parent=107 // pred_fallthru
          _
        %s959 = sand.u32 %s49, 1
        %s960 = scalar_lea.sflag [#allocation3], %s959
        %s961 = sand.u32 %s57, 1
        %s962 = smul.addr %s961, 8
        %s963 = scalar_lea.vmem [#allocation2], %s962
        %p964 = pneg %p70
        %p965 = pneg %p67
        %p966 = pneg %p91
        %p967 = pneg %p88
        %s968 = sand.u32 %s49, 1
        %s969 = scalar_lea.sflag [#allocation3], %s968
        %s970 = sand.u32 %s104, 1
        %s971 = smul.addr %s970, 128
        %s972 = scalar_lea.vmem [#allocation7], %s971
        %p973 = pneg %p117
        %p974 = pneg %p114
        %s975 = sand.u32 %s49, 1
        %s976 = scalar_lea.sflag [#allocation3], %s975
        %s977 = sand.u32 %s130, 1
        %s978 = smul.addr %s977, 8
        %s979 = scalar_lea.vmem [#allocation8], %s978
        %p980 = pneg %p143
        %p981 = pneg %p140
        %p982 = pneg %p164
        %p983 = pneg %p161
        %p984 = pneg %p185
        %p985 = pneg %p182
        %p986 = pneg %p206
        %p987 = pneg %p203
        %p988 = pneg %p227
        %p989 = pneg %p224
        %p990 = pneg %p248
        %p991 = pneg %p245
        %p992 = pneg %p269
        %p993 = pneg %p266
        %p994 = pneg %p290
        %p995 = pneg %p287
        %p996 = pneg %p311
        %p997 = pneg %p308
        %p998 = pneg %p332
        %p999 = pneg %p329
        %p1000 = pneg %p353
        %p1001 = pneg %p350
        %p1002 = pneg %p374
        %p1003 = pneg %p371
        %p1004 = pneg %p395
        %p1005 = pneg %p392
        %p1006 = pneg %p416
        %p1007 = pneg %p413
        %p1008 = pneg %p437
        %p1009 = pneg %p434
        %p1010 = pneg %p458
        %p1011 = pneg %p455
        %p1012 = pneg %p479
        %p1013 = pneg %p476
        %p1014 = pneg %p500
        %p1015 = pneg %p497
        %p1016 = pneg %p521
        %p1017 = pneg %p518
        %p1018 = pneg %p547
        %p1019 = pneg %p544
        %s1020 = sand.u32 %s534, 1
        %s1021 = scalar_lea.sflag [#allocation4], %s1020
        %s1022 = sand.u32 %s534, 1
        %s1023 = smul.addr %s1022, 8
        %s1024 = scalar_lea.vmem [#allocation36], %s1023
        %s1025 = smul.u32 8, %s49
        %v1026 = vld [vmem:[%s860] sm:$0xff]
        %v1027 = vld [vmem:[#allocation5] sm:$0xff]
        %v1028 = vld [vmem:[#allocation5 + $0x8] sm:$0xff]
        %v1029 = vld [vmem:[%s873] sm:$0xff]
        %v1030 = vld [vmem:[%s873 + $0x8] sm:$0xff]
        %v1031 = vld [vmem:[%s873 + $0x10] sm:$0xff]
        %v1032 = vld [vmem:[%s873 + $0x18] sm:$0xff]
        %v1033 = vld [vmem:[%s873 + $0x20] sm:$0xff]
        %v1034 = vld [vmem:[%s873 + $0x28] sm:$0xff]
        %v1035 = vld [vmem:[%s873 + $0x30] sm:$0xff]
        %v1036 = vld [vmem:[%s873 + $0x38] sm:$0xff]
        %v1037 = vld [vmem:[%s873 + $0x40] sm:$0xff]
        %v1038 = vld [vmem:[%s873 + $0x48] sm:$0xff]
        %v1039 = vld [vmem:[%s873 + $0x50] sm:$0xff]
        %v1040 = vld [vmem:[%s873 + $0x58] sm:$0xff]
        %v1041 = vld [vmem:[%s873 + $0x60] sm:$0xff]
        %v1042 = vld [vmem:[%s873 + $0x68] sm:$0xff]
        %v1043 = vld [vmem:[%s873 + $0x70] sm:$0xff]
        %v1044 = vld [vmem:[%s873 + $0x78] sm:$0xff]
        %v1045 = vld [vmem:[%s882] sm:$0xff]
        %v1046 = vld [vmem:[#allocation9] sm:$0xff]
        %v1047 = vld [vmem:[#allocation9 + $0x8] sm:$0xff]
        %v1048 = vld [vmem:[#allocation9 + $0x10] sm:$0xff]
        %v1049 = vld [vmem:[#allocation9 + $0x18] sm:$0xff]
        %v1050 = vld [vmem:[#allocation9 + $0x20] sm:$0xff]
        %v1051 = vld [vmem:[#allocation9 + $0x28] sm:$0xff]
        %v1052 = vld [vmem:[#allocation9 + $0x30] sm:$0xff]
        %v1053 = vld [vmem:[#allocation9 + $0x38] sm:$0xff]
        %v1054 = vld [vmem:[#allocation9 + $0x40] sm:$0xff]
        %v1055 = vld [vmem:[#allocation9 + $0x48] sm:$0xff]
        %v1056 = vld [vmem:[#allocation9 + $0x50] sm:$0xff]
        %v1057 = vld [vmem:[#allocation9 + $0x58] sm:$0xff]
        %v1058 = vld [vmem:[#allocation9 + $0x60] sm:$0xff]
        %v1059 = vld [vmem:[#allocation9 + $0x68] sm:$0xff]
        %v1060 = vld [vmem:[#allocation9 + $0x70] sm:$0xff]
        %v1061 = vld [vmem:[#allocation9 + $0x78] sm:$0xff]
        %v1062 = vld [vmem:[#allocation10] sm:$0x1]
        %v1064 = vlaneseq
        %v1065 = vshrl.u32 %v1064, 7
        %v1066 = vsub.s32 0, %v1065
        %v1067 = vrot.slane %v1062, %v1066
        %1069 = vmatprep.subr.mxu0 0.0
        %1070 = vmatpush1.msra.mxu0 %v1046
        %1071 = vmatprep.subr.mxu0 0.0
        %1072 = vmatpush1.msra.mxu0 %v1047
        %1073 = vmatprep.subr.mxu0 0.0
        %1074 = vmatpush1.msra.mxu0 %v1048
        %1075 = vmatprep.subr.mxu0 0.0
        %1076 = vmatpush1.msra.mxu0 %v1049
        %1077 = vmatprep.subr.mxu0 0.0
        %1078 = vmatpush1.msra.mxu0 %v1050
        %1079 = vmatprep.subr.mxu0 0.0
        %1080 = vmatpush1.msra.mxu0 %v1051
        %1081 = vmatprep.subr.mxu0 0.0
        %1082 = vmatpush1.msra.mxu0 %v1052
        %1083 = vmatprep.subr.mxu0 0.0
        %1084 = vmatpush1.msra.mxu0 %v1053
        %1085 = vmatprep.subr.mxu0 0.0
        %1086 = vmatpush1.msra.mxu0 %v1054
        %1087 = vmatprep.subr.mxu0 0.0
        %1088 = vmatpush1.msra.mxu0 %v1055
        %1089 = vmatprep.subr.mxu0 0.0
        %1090 = vmatpush1.msra.mxu0 %v1056
        %1091 = vmatprep.subr.mxu0 0.0
        %1092 = vmatpush1.msra.mxu0 %v1057
        %1093 = vmatprep.subr.mxu0 0.0
        %1094 = vmatpush1.msra.mxu0 %v1058
        %1095 = vmatprep.subr.mxu0 0.0
        %1096 = vmatpush1.msra.mxu0 %v1059
        %1097 = vmatprep.subr.mxu0 0.0
        %1098 = vmatpush1.msra.mxu0 %v1060
        %1099 = vmatprep.subr.mxu0 0.0
        %1100 = vmatpush1.msra.mxu0 %v1061
        %1101 = vmatprep.subr.mxu0 0.0
        %1102 = vmatpush1.msra.mxu0 0.0
        %1103 = vmatprep.subr.mxu0 0.0
        %1104 = vmatpush1.msra.mxu0 0.0
        %1105 = vmatprep.subr.mxu0 0.0
        %1106 = vmatpush1.msra.mxu0 0.0
        %1107 = vmatprep.subr.mxu0 0.0
        %1108 = vmatpush1.msra.mxu0 0.0
        %1109 = vmatprep.subr.mxu0 0.0
        %1110 = vmatpush1.msra.mxu0 0.0
        %1111 = vmatprep.subr.mxu0 0.0
        %1112 = vmatpush1.msra.mxu0 0.0
        %1113 = vmatprep.subr.mxu0 0.0
        %1114 = vmatpush1.msra.mxu0 0.0
        %1115 = vmatprep.subr.mxu0 0.0
        %1116 = vmatpush1.msra.mxu0 0.0
        %1117 = vmatprep.subr.mxu0 0.0
        %1118 = vmatpush1.msra.mxu0 0.0
        %1119 = vmatprep.subr.mxu0 0.0
        %1120 = vmatpush1.msra.mxu0 0.0
        %1121 = vmatprep.subr.mxu0 0.0
        %1122 = vmatpush1.msra.mxu0 0.0
        %1123 = vmatprep.subr.mxu0 0.0
        %1124 = vmatpush1.msra.mxu0 0.0
        %1125 = vmatprep.subr.mxu0 0.0
        %1126 = vmatpush1.msra.mxu0 0.0
        %1127 = vmatprep.subr.mxu0 0.0
        %1128 = vmatpush1.msra.mxu0 0.0
        %1129 = vmatprep.subr.mxu0 0.0
        %1130 = vmatpush1.msra.mxu0 0.0
        %1131 = vmatprep.subr.mxu0 0.0
        %1132 = vmatpush1.msra.mxu0 0.0
        %1133 = vmatprep.mubr.f32.mxu0 0.0
        %1134 = vmatmul.mubr.f32.gmra.mrb[0].mxu0 %v1026
        %v1135 = vpop.f32.mrb[0].mxu0
        %v1136 = vadd.f32 %v1067, %v1135
        %v1137 = vpop.f32.mrb[0].mxu0
        %1138 = vdwg.mxu0
        %v1139 = vmul.f32 %v1136, 0.17677669
        %v1140 = vld [vmem:[#allocation12] sm:$0xff]
        %v1141 = vld [vmem:[#allocation12 + $0x8] sm:$0xff]
        %v1142 = vld [vmem:[#allocation12 + $0x10] sm:$0xff]
        %v1143 = vld [vmem:[#allocation12 + $0x18] sm:$0xff]
        %v1144 = vld [vmem:[#allocation12 + $0x20] sm:$0xff]
        %v1145 = vld [vmem:[#allocation12 + $0x28] sm:$0xff]
        %v1146 = vld [vmem:[#allocation12 + $0x30] sm:$0xff]
        %v1147 = vld [vmem:[#allocation12 + $0x38] sm:$0xff]
        %v1148 = vld [vmem:[#allocation12 + $0x40] sm:$0xff]
        %v1149 = vld [vmem:[#allocation12 + $0x48] sm:$0xff]
        %v1150 = vld [vmem:[#allocation12 + $0x50] sm:$0xff]
        %v1151 = vld [vmem:[#allocation12 + $0x58] sm:$0xff]
        %v1152 = vld [vmem:[#allocation12 + $0x60] sm:$0xff]
        %v1153 = vld [vmem:[#allocation12 + $0x68] sm:$0xff]
        %v1154 = vld [vmem:[#allocation12 + $0x70] sm:$0xff]
        %v1155 = vld [vmem:[#allocation12 + $0x78] sm:$0xff]
        %v1156 = vld [vmem:[#allocation13] sm:$0x1]
        %v1158 = vlaneseq
        %v1159 = vshrl.u32 %v1158, 7
        %v1160 = vsub.s32 0, %v1159
        %v1161 = vrot.slane %v1156, %v1160
        %1163 = vmatprep.subr.mxu0 0.0
        %1164 = vmatpush1.msra.mxu0 %v1140
        %1165 = vmatprep.subr.mxu0 0.0
        %1166 = vmatpush1.msra.mxu0 %v1141
        %1167 = vmatprep.subr.mxu0 0.0
        %1168 = vmatpush1.msra.mxu0 %v1142
        %1169 = vmatprep.subr.mxu0 0.0
        %1170 = vmatpush1.msra.mxu0 %v1143
        %1171 = vmatprep.subr.mxu0 0.0
        %1172 = vmatpush1.msra.mxu0 %v1144
        %1173 = vmatprep.subr.mxu0 0.0
        %1174 = vmatpush1.msra.mxu0 %v1145
        %1175 = vmatprep.subr.mxu0 0.0
        %1176 = vmatpush1.msra.mxu0 %v1146
        %1177 = vmatprep.subr.mxu0 0.0
        %1178 = vmatpush1.msra.mxu0 %v1147
        %1179 = vmatprep.subr.mxu0 0.0
        %1180 = vmatpush1.msra.mxu0 %v1148
        %1181 = vmatprep.subr.mxu0 0.0
        %1182 = vmatpush1.msra.mxu0 %v1149
        %1183 = vmatprep.subr.mxu0 0.0
        %1184 = vmatpush1.msra.mxu0 %v1150
        %1185 = vmatprep.subr.mxu0 0.0
        %1186 = vmatpush1.msra.mxu0 %v1151
        %1187 = vmatprep.subr.mxu0 0.0
        %1188 = vmatpush1.msra.mxu0 %v1152
        %1189 = vmatprep.subr.mxu0 0.0
        %1190 = vmatpush1.msra.mxu0 %v1153
        %1191 = vmatprep.subr.mxu0 0.0
        %1192 = vmatpush1.msra.mxu0 %v1154
        %1193 = vmatprep.subr.mxu0 0.0
        %1194 = vmatpush1.msra.mxu0 %v1155
        %1195 = vmatprep.subr.mxu0 0.0
        %1196 = vmatpush1.msra.mxu0 0.0
        %1197 = vmatprep.subr.mxu0 0.0
        %1198 = vmatpush1.msra.mxu0 0.0
        %1199 = vmatprep.subr.mxu0 0.0
        %1200 = vmatpush1.msra.mxu0 0.0
        %1201 = vmatprep.subr.mxu0 0.0
        %1202 = vmatpush1.msra.mxu0 0.0
        %1203 = vmatprep.subr.mxu0 0.0
        %1204 = vmatpush1.msra.mxu0 0.0
        %1205 = vmatprep.subr.mxu0 0.0
        %1206 = vmatpush1.msra.mxu0 0.0
        %1207 = vmatprep.subr.mxu0 0.0
        %1208 = vmatpush1.msra.mxu0 0.0
        %1209 = vmatprep.subr.mxu0 0.0
        %1210 = vmatpush1.msra.mxu0 0.0
        %1211 = vmatprep.subr.mxu0 0.0
        %1212 = vmatpush1.msra.mxu0 0.0
        %1213 = vmatprep.subr.mxu0 0.0
        %1214 = vmatpush1.msra.mxu0 0.0
        %1215 = vmatprep.subr.mxu0 0.0
        %1216 = vmatpush1.msra.mxu0 0.0
        %1217 = vmatprep.subr.mxu0 0.0
        %1218 = vmatpush1.msra.mxu0 0.0
        %1219 = vmatprep.subr.mxu0 0.0
        %1220 = vmatpush1.msra.mxu0 0.0
        %1221 = vmatprep.subr.mxu0 0.0
        %1222 = vmatpush1.msra.mxu0 0.0
        %1223 = vmatprep.subr.mxu0 0.0
        %1224 = vmatpush1.msra.mxu0 0.0
        %1225 = vmatprep.subr.mxu0 0.0
        %1226 = vmatpush1.msra.mxu0 0.0
        %1227 = vmatprep.mubr.f32.mxu0 0.0
        %1228 = vmatmul.mubr.f32.gmra.mrb[0].mxu0 %v1027
        %v1229 = vpop.f32.mrb[0].mxu0
        %v1230 = vadd.f32 %v1161, %v1229
        %v1231 = vpop.f32.mrb[0].mxu0
        %1232 = vmatprep.mubr.f32.mxu0 0.0
        %1233 = vmatmul.mubr.f32.gmra.mrb[0].mxu0 %v1028
        %v1234 = vpop.f32.mrb[0].mxu0
        %v1235 = vadd.f32 %v1161, %v1234
        %v1236 = vpop.f32.mrb[0].mxu0
        %1237 = vdwg.mxu0
        %v1238 = vld [vmem:[#allocation15] sm:$0xff]
        %v1239 = vld [vmem:[#allocation15 + $0x8] sm:$0xff]
        %v1240 = vld [vmem:[#allocation15 + $0x10] sm:$0xff]
        %v1241 = vld [vmem:[#allocation15 + $0x18] sm:$0xff]
        %v1242 = vld [vmem:[#allocation15 + $0x20] sm:$0xff]
        %v1243 = vld [vmem:[#allocation15 + $0x28] sm:$0xff]
        %v1244 = vld [vmem:[#allocation15 + $0x30] sm:$0xff]
        %v1245 = vld [vmem:[#allocation15 + $0x38] sm:$0xff]
        %v1246 = vld [vmem:[#allocation15 + $0x40] sm:$0xff]
        %v1247 = vld [vmem:[#allocation15 + $0x48] sm:$0xff]
        %v1248 = vld [vmem:[#allocation15 + $0x50] sm:$0xff]
        %v1249 = vld [vmem:[#allocation15 + $0x58] sm:$0xff]
        %v1250 = vld [vmem:[#allocation15 + $0x60] sm:$0xff]
        %v1251 = vld [vmem:[#allocation15 + $0x68] sm:$0xff]
        %v1252 = vld [vmem:[#allocation15 + $0x70] sm:$0xff]
        %v1253 = vld [vmem:[#allocation15 + $0x78] sm:$0xff]
        %v1254 = vld [vmem:[#allocation16] sm:$0x1]
        %v1256 = vlaneseq
        %v1257 = vshrl.u32 %v1256, 7
        %v1258 = vsub.s32 0, %v1257
        %v1259 = vrot.slane %v1254, %v1258
        %1261 = vmatprep.subr.mxu0 0.0
        %1262 = vmatpush1.msra.mxu0 %v1238
        %1263 = vmatprep.subr.mxu0 0.0
        %1264 = vmatpush1.msra.mxu0 %v1239
        %1265 = vmatprep.subr.mxu0 0.0
        %1266 = vmatpush1.msra.mxu0 %v1240
        %1267 = vmatprep.subr.mxu0 0.0
        %1268 = vmatpush1.msra.mxu0 %v1241
        %1269 = vmatprep.subr.mxu0 0.0
        %1270 = vmatpush1.msra.mxu0 %v1242
        %1271 = vmatprep.subr.mxu0 0.0
        %1272 = vmatpush1.msra.mxu0 %v1243
        %1273 = vmatprep.subr.mxu0 0.0
        %1274 = vmatpush1.msra.mxu0 %v1244
        %1275 = vmatprep.subr.mxu0 0.0
        %1276 = vmatpush1.msra.mxu0 %v1245
        %1277 = vmatprep.subr.mxu0 0.0
        %1278 = vmatpush1.msra.mxu0 %v1246
        %1279 = vmatprep.subr.mxu0 0.0
        %1280 = vmatpush1.msra.mxu0 %v1247
        %1281 = vmatprep.subr.mxu0 0.0
        %1282 = vmatpush1.msra.mxu0 %v1248
        %1283 = vmatprep.subr.mxu0 0.0
        %1284 = vmatpush1.msra.mxu0 %v1249
        %1285 = vmatprep.subr.mxu0 0.0
        %1286 = vmatpush1.msra.mxu0 %v1250
        %1287 = vmatprep.subr.mxu0 0.0
        %1288 = vmatpush1.msra.mxu0 %v1251
        %1289 = vmatprep.subr.mxu0 0.0
        %1290 = vmatpush1.msra.mxu0 %v1252
        %1291 = vmatprep.subr.mxu0 0.0
        %1292 = vmatpush1.msra.mxu0 %v1253
        %1293 = vmatprep.subr.mxu0 0.0
        %1294 = vmatpush1.msra.mxu0 0.0
        %1295 = vmatprep.subr.mxu0 0.0
        %1296 = vmatpush1.msra.mxu0 0.0
        %1297 = vmatprep.subr.mxu0 0.0
        %1298 = vmatpush1.msra.mxu0 0.0
        %1299 = vmatprep.subr.mxu0 0.0
        %1300 = vmatpush1.msra.mxu0 0.0
        %1301 = vmatprep.subr.mxu0 0.0
        %1302 = vmatpush1.msra.mxu0 0.0
        %1303 = vmatprep.subr.mxu0 0.0
        %1304 = vmatpush1.msra.mxu0 0.0
        %1305 = vmatprep.subr.mxu0 0.0
        %1306 = vmatpush1.msra.mxu0 0.0
        %1307 = vmatprep.subr.mxu0 0.0
        %1308 = vmatpush1.msra.mxu0 0.0
        %1309 = vmatprep.subr.mxu0 0.0
        %1310 = vmatpush1.msra.mxu0 0.0
        %1311 = vmatprep.subr.mxu0 0.0
        %1312 = vmatpush1.msra.mxu0 0.0
        %1313 = vmatprep.subr.mxu0 0.0
        %1314 = vmatpush1.msra.mxu0 0.0
        %1315 = vmatprep.subr.mxu0 0.0
        %1316 = vmatpush1.msra.mxu0 0.0
        %1317 = vmatprep.subr.mxu0 0.0
        %1318 = vmatpush1.msra.mxu0 0.0
        %1319 = vmatprep.subr.mxu0 0.0
        %1320 = vmatpush1.msra.mxu0 0.0
        %1321 = vmatprep.subr.mxu0 0.0
        %1322 = vmatpush1.msra.mxu0 0.0
        %1323 = vmatprep.subr.mxu0 0.0
        %1324 = vmatpush1.msra.mxu0 0.0
        %1325 = vmatprep.mubr.f32.mxu0 0.0
        %1326 = vmatmul.mubr.f32.gmra.mrb[0].mxu0 %v1027
        %v1327 = vpop.f32.mrb[0].mxu0
        %v1328 = vadd.f32 %v1259, %v1327
        %v1329 = vpop.f32.mrb[0].mxu0
        %1330 = vmatprep.mubr.f32.mxu0 0.0
        %1331 = vmatmul.mubr.f32.gmra.mrb[0].mxu0 %v1028
        %v1332 = vpop.f32.mrb[0].mxu0
        %v1333 = vadd.f32 %v1259, %v1332
        %v1334 = vpop.f32.mrb[0].mxu0
        %1335 = vdwg.mxu0
        %v1337 = vcombine.high %v1139, %v1139
        %v1339 = vunpack.c.l.s4 1966171168
        %v1340 = vunpack.c.0.s8 %v1339
        %v1341 = vlaneseq
        %v1342 = vshrl.u32 %v1341, 7
        %v1343 = vsub.s32 %v1340, %v1342
        %v1344 = vrot.slane %v1139, %v1343
        %v1346 = vunpack.c.l.s4 1966171168
        %v1347 = vunpack.c.0.s8 %v1346
        %v1348 = vlaneseq
        %v1349 = vshrl.u32 %v1348, 7
        %v1350 = vsub.s32 %v1347, %v1349
        %v1351 = vrot.slane %v1337, %v1350
        %v1352 = vcombine.high %v1344, %v1344
        %v1353 = vcombine.high %v1351, %v1351
        %v1355 = vunpack.c.l.s4 1966171168
        %v1356 = vunpack.c.0.s8 %v1355
        %v1357 = vlaneseq
        %v1358 = vshrl.u32 %v1357, 7
        %v1359 = vsub.s32 %v1356, %v1358
        %v1360 = vrot.slane %v1344, %v1359
        %v1362 = vunpack.c.l.s4 1966171168
        %v1363 = vunpack.c.0.s8 %v1362
        %v1364 = vlaneseq
        %v1365 = vshrl.u32 %v1364, 7
        %v1366 = vsub.s32 %v1363, %v1365
        %v1367 = vrot.slane %v1351, %v1366
        %v1369 = vunpack.c.l.s4 1966171168
        %v1370 = vunpack.c.0.s8 %v1369
        %v1371 = vlaneseq
        %v1372 = vshrl.u32 %v1371, 7
        %v1373 = vsub.s32 %v1370, %v1372
        %v1374 = vrot.slane %v1352, %v1373
        %v1376 = vunpack.c.l.s4 1966171168
        %v1377 = vunpack.c.0.s8 %v1376
        %v1378 = vlaneseq
        %v1379 = vshrl.u32 %v1378, 7
        %v1380 = vsub.s32 %v1377, %v1379
        %v1381 = vrot.slane %v1353, %v1380
        %v1382 = vcombine.high %v1360, %v1360
        %v1383 = vcombine.high %v1367, %v1367
        %v1384 = vcombine.high %v1374, %v1374
        %v1385 = vcombine.high %v1381, %v1381
        %v1386 = vadd.f32 %v1230, %v1029
        %v1387 = vadd.f32 %v1235, %v1030
        %v1388 = vadd.f32 %v1230, %v1031
        %v1389 = vadd.f32 %v1235, %v1032
        %v1390 = vadd.f32 %v1230, %v1033
        %v1391 = vadd.f32 %v1235, %v1034
        %v1392 = vadd.f32 %v1230, %v1035
        %v1393 = vadd.f32 %v1235, %v1036
        %v1394 = vadd.f32 %v1230, %v1037
        %v1395 = vadd.f32 %v1235, %v1038
        %v1396 = vadd.f32 %v1230, %v1039
        %v1397 = vadd.f32 %v1235, %v1040
        %v1398 = vadd.f32 %v1230, %v1041
        %v1399 = vadd.f32 %v1235, %v1042
        %v1400 = vadd.f32 %v1230, %v1043
        %v1401 = vadd.f32 %v1235, %v1044
        %v1402 = vlaneseq
        %v1403 = vshrl.u32 %v1402, 7
        %v1404 = vsub.s32 0, %v1403
        %v1405 = vrot.slane %v1360, %v1404
        %v1406 = vlaneseq
        %v1407 = vshrl.u32 %v1406, 7
        %v1408 = vsub.s32 0, %v1407
        %v1409 = vrot.slane %v1374, %v1408
        %v1410 = vlaneseq
        %v1411 = vshrl.u32 %v1410, 7
        %v1412 = vsub.s32 0, %v1411
        %v1413 = vrot.slane %v1382, %v1412
        %v1414 = vlaneseq
        %v1415 = vshrl.u32 %v1414, 7
        %v1416 = vsub.s32 0, %v1415
        %v1417 = vrot.slane %v1384, %v1416
        %v1418 = vlaneseq
        %v1419 = vshrl.u32 %v1418, 7
        %v1420 = vsub.s32 0, %v1419
        %v1421 = vrot.slane %v1367, %v1420
        %v1422 = vlaneseq
        %v1423 = vshrl.u32 %v1422, 7
        %v1424 = vsub.s32 0, %v1423
        %v1425 = vrot.slane %v1381, %v1424
        %v1426 = vlaneseq
        %v1427 = vshrl.u32 %v1426, 7
        %v1428 = vsub.s32 0, %v1427
        %v1429 = vrot.slane %v1383, %v1428
        %v1430 = vlaneseq
        %v1431 = vshrl.u32 %v1430, 7
        %v1432 = vsub.s32 0, %v1431
        %v1433 = vrot.slane %v1385, %v1432
        %v1442 = vmul.f32 %v1405, %v1386
        %v1443 = vmul.f32 %v1405, %v1387
        %v1444 = vmul.f32 %v1409, %v1388
        %v1445 = vmul.f32 %v1409, %v1389
        %v1446 = vmul.f32 %v1413, %v1390
        %v1447 = vmul.f32 %v1413, %v1391
        %v1448 = vmul.f32 %v1417, %v1392
        %v1449 = vmul.f32 %v1417, %v1393
        %v1450 = vmul.f32 %v1421, %v1394
        %v1451 = vmul.f32 %v1421, %v1395
        %v1452 = vmul.f32 %v1425, %v1396
        %v1453 = vmul.f32 %v1425, %v1397
        %v1454 = vmul.f32 %v1429, %v1398
        %v1455 = vmul.f32 %v1429, %v1399
        %v1456 = vmul.f32 %v1433, %v1400
        %v1457 = vmul.f32 %v1433, %v1401
        %v1458 = vld [vmem:[#allocation33] sm:$0xff]
        %v1459 = vld [vmem:[#allocation33 + $0x8] sm:$0xff]
        %v1460 = vld [vmem:[#allocation33 + $0x10] sm:$0xff]
        %v1461 = vld [vmem:[#allocation33 + $0x18] sm:$0xff]
        %v1462 = vld [vmem:[#allocation33 + $0x20] sm:$0xff]
        %v1463 = vld [vmem:[#allocation33 + $0x28] sm:$0xff]
        %v1464 = vld [vmem:[#allocation33 + $0x30] sm:$0xff]
        %v1465 = vld [vmem:[#allocation33 + $0x38] sm:$0xff]
        %v1466 = vld [vmem:[#allocation33 + $0x40] sm:$0xff]
        %v1467 = vld [vmem:[#allocation33 + $0x48] sm:$0xff]
        %v1468 = vld [vmem:[#allocation33 + $0x50] sm:$0xff]
        %v1469 = vld [vmem:[#allocation33 + $0x58] sm:$0xff]
        %v1470 = vld [vmem:[#allocation33 + $0x60] sm:$0xff]
        %v1471 = vld [vmem:[#allocation33 + $0x68] sm:$0xff]
        %v1472 = vld [vmem:[#allocation33 + $0x70] sm:$0xff]
        %v1473 = vld [vmem:[#allocation33 + $0x78] sm:$0xff]
        %1474 = vmatprep.subr.mxu0 0.0
        %1475 = vmatpush1.msra.mxu0 %v1458
        %1476 = vmatprep.subr.mxu0 0.0
        %1477 = vmatpush1.msra.mxu0 %v1459
        %1478 = vmatprep.subr.mxu0 0.0
        %1479 = vmatpush1.msra.mxu0 %v1460
        %1480 = vmatprep.subr.mxu0 0.0
        %1481 = vmatpush1.msra.mxu0 %v1461
        %1482 = vmatprep.subr.mxu0 0.0
        %1483 = vmatpush1.msra.mxu0 %v1462
        %1484 = vmatprep.subr.mxu0 0.0
        %1485 = vmatpush1.msra.mxu0 %v1463
        %1486 = vmatprep.subr.mxu0 0.0
        %1487 = vmatpush1.msra.mxu0 %v1464
        %1488 = vmatprep.subr.mxu0 0.0
        %1489 = vmatpush1.msra.mxu0 %v1465
        %1490 = vmatprep.subr.mxu0 0.0
        %1491 = vmatpush1.msra.mxu0 %v1466
        %1492 = vmatprep.subr.mxu0 0.0
        %1493 = vmatpush1.msra.mxu0 %v1467
        %1494 = vmatprep.subr.mxu0 0.0
        %1495 = vmatpush1.msra.mxu0 %v1468
        %1496 = vmatprep.subr.mxu0 0.0
        %1497 = vmatpush1.msra.mxu0 %v1469
        %1498 = vmatprep.subr.mxu0 0.0
        %1499 = vmatpush1.msra.mxu0 %v1470
        %1500 = vmatprep.subr.mxu0 0.0
        %1501 = vmatpush1.msra.mxu0 %v1471
        %1502 = vmatprep.subr.mxu0 0.0
        %1503 = vmatpush1.msra.mxu0 %v1472
        %1504 = vmatprep.subr.mxu0 0.0
        %1505 = vmatpush1.msra.mxu0 %v1473
        %1506 = vmatprep.subr.mxu0 0.0
        %1507 = vmatpush1.msra.mxu0 0.0
        %1508 = vmatprep.subr.mxu0 0.0
        %1509 = vmatpush1.msra.mxu0 0.0
        %1510 = vmatprep.subr.mxu0 0.0
        %1511 = vmatpush1.msra.mxu0 0.0
        %1512 = vmatprep.subr.mxu0 0.0
        %1513 = vmatpush1.msra.mxu0 0.0
        %1514 = vmatprep.subr.mxu0 0.0
        %1515 = vmatpush1.msra.mxu0 0.0
        %1516 = vmatprep.subr.mxu0 0.0
        %1517 = vmatpush1.msra.mxu0 0.0
        %1518 = vmatprep.subr.mxu0 0.0
        %1519 = vmatpush1.msra.mxu0 0.0
        %1520 = vmatprep.subr.mxu0 0.0
        %1521 = vmatpush1.msra.mxu0 0.0
        %1522 = vmatprep.subr.mxu0 0.0
        %1523 = vmatpush1.msra.mxu0 0.0
        %1524 = vmatprep.subr.mxu0 0.0
        %1525 = vmatpush1.msra.mxu0 0.0
        %1526 = vmatprep.subr.mxu0 0.0
        %1527 = vmatpush1.msra.mxu0 0.0
        %1528 = vmatprep.subr.mxu0 0.0
        %1529 = vmatpush1.msra.mxu0 0.0
        %1530 = vmatprep.subr.mxu0 0.0
        %1531 = vmatpush1.msra.mxu0 0.0
        %1532 = vmatprep.subr.mxu0 0.0
        %1533 = vmatpush1.msra.mxu0 0.0
        %1534 = vmatprep.subr.mxu0 0.0
        %1535 = vmatpush1.msra.mxu0 0.0
        %1536 = vmatprep.subr.mxu0 0.0
        %1537 = vmatpush1.msra.mxu0 0.0
        %1538 = vmatprep.mubr.f32.mxu0 0.0
        %1539 = vmatmul.mubr.f32.gmra.mrb[0].mxu0 %v1442
        %v1540 = vpop.f32.mrb[0].mxu0
        %v1541 = vadd.f32 0.0, %v1540
        %v1542 = vpop.f32.mrb[0].mxu0
        %1543 = vmatprep.mubr.f32.mxu0 0.0
        %1544 = vmatmul.mubr.f32.gmra.mrb[0].mxu0 %v1443
        %v1545 = vpop.f32.mrb[0].mxu0
        %v1546 = vadd.f32 0.0, %v1545
        %v1547 = vpop.f32.mrb[0].mxu0
        %1548 = vmatprep.mubr.f32.mxu0 0.0
        %1549 = vmatmul.mubr.f32.gmra.mrb[0].mxu0 %v1444
        %v1550 = vpop.f32.mrb[0].mxu0
        %v1551 = vadd.f32 0.0, %v1550
        %v1552 = vpop.f32.mrb[0].mxu0
        %1553 = vmatprep.mubr.f32.mxu0 0.0
        %1554 = vmatmul.mubr.f32.gmra.mrb[0].mxu0 %v1445
        %v1555 = vpop.f32.mrb[0].mxu0
        %v1556 = vadd.f32 0.0, %v1555
        %v1557 = vpop.f32.mrb[0].mxu0
        %1558 = vmatprep.mubr.f32.mxu0 0.0
        %1559 = vmatmul.mubr.f32.gmra.mrb[0].mxu0 %v1446
        %v1560 = vpop.f32.mrb[0].mxu0
        %v1561 = vadd.f32 0.0, %v1560
        %v1562 = vpop.f32.mrb[0].mxu0
        %1563 = vmatprep.mubr.f32.mxu0 0.0
        %1564 = vmatmul.mubr.f32.gmra.mrb[0].mxu0 %v1447
        %v1565 = vpop.f32.mrb[0].mxu0
        %v1566 = vadd.f32 0.0, %v1565
        %v1567 = vpop.f32.mrb[0].mxu0
        %1568 = vmatprep.mubr.f32.mxu0 0.0
        %1569 = vmatmul.mubr.f32.gmra.mrb[0].mxu0 %v1448
        %v1570 = vpop.f32.mrb[0].mxu0
        %v1571 = vadd.f32 0.0, %v1570
        %v1572 = vpop.f32.mrb[0].mxu0
        %1573 = vmatprep.mubr.f32.mxu0 0.0
        %1574 = vmatmul.mubr.f32.gmra.mrb[0].mxu0 %v1449
        %v1575 = vpop.f32.mrb[0].mxu0
        %v1576 = vadd.f32 0.0, %v1575
        %v1577 = vpop.f32.mrb[0].mxu0
        %1578 = vmatprep.mubr.f32.mxu0 0.0
        %1579 = vmatmul.mubr.f32.gmra.mrb[0].mxu0 %v1450
        %v1580 = vpop.f32.mrb[0].mxu0
        %v1581 = vadd.f32 0.0, %v1580
        %v1582 = vpop.f32.mrb[0].mxu0
        %1583 = vmatprep.mubr.f32.mxu0 0.0
        %1584 = vmatmul.mubr.f32.gmra.mrb[0].mxu0 %v1451
        %v1585 = vpop.f32.mrb[0].mxu0
        %v1586 = vadd.f32 0.0, %v1585
        %v1587 = vpop.f32.mrb[0].mxu0
        %1588 = vmatprep.mubr.f32.mxu0 0.0
        %1589 = vmatmul.mubr.f32.gmra.mrb[0].mxu0 %v1452
        %v1590 = vpop.f32.mrb[0].mxu0
        %v1591 = vadd.f32 0.0, %v1590
        %v1592 = vpop.f32.mrb[0].mxu0
        %1593 = vmatprep.mubr.f32.mxu0 0.0
        %1594 = vmatmul.mubr.f32.gmra.mrb[0].mxu0 %v1453
        %v1595 = vpop.f32.mrb[0].mxu0
        %v1596 = vadd.f32 0.0, %v1595
        %v1597 = vpop.f32.mrb[0].mxu0
        %1598 = vmatprep.mubr.f32.mxu0 0.0
        %1599 = vmatmul.mubr.f32.gmra.mrb[0].mxu0 %v1454
        %v1600 = vpop.f32.mrb[0].mxu0
        %v1601 = vadd.f32 0.0, %v1600
        %v1602 = vpop.f32.mrb[0].mxu0
        %1603 = vmatprep.mubr.f32.mxu0 0.0
        %1604 = vmatmul.mubr.f32.gmra.mrb[0].mxu0 %v1455
        %v1605 = vpop.f32.mrb[0].mxu0
        %v1606 = vadd.f32 0.0, %v1605
        %v1607 = vpop.f32.mrb[0].mxu0
        %1608 = vmatprep.mubr.f32.mxu0 0.0
        %1609 = vmatmul.mubr.f32.gmra.mrb[0].mxu0 %v1456
        %v1610 = vpop.f32.mrb[0].mxu0
        %v1611 = vadd.f32 0.0, %v1610
        %v1612 = vpop.f32.mrb[0].mxu0
        %1613 = vmatprep.mubr.f32.mxu0 0.0
        %1614 = vmatmul.mubr.f32.gmra.mrb[0].mxu0 %v1457
        %v1615 = vpop.f32.mrb[0].mxu0
        %v1616 = vadd.f32 0.0, %v1615
        %v1617 = vpop.f32.mrb[0].mxu0
        %1618 = vdwg.mxu0
        %v1619 = vlaneseq
        %v1620 = vshrl.u32 %v1619, 7
        %v1621 = vsub.s32 0, %v1620
        %v1622 = vrot.slane %v1045, %v1621
        %1624 = vbcast.lane.b32.xlu0 %v1622, 256
        %v1625 = vpop.permute.xlu0 %1624
        %s1627 = sor.u32 256, 8
        %1628 = vbcast.lane.b32.xlu0 %v1622, %s1627
        %v1629 = vpop.permute.xlu0 %1628
        %v1630 = vlaneseq
        %v1631 = vshrl.u32 %v1630, 7
        %v1632 = vsub.s32 1, %v1631
        %v1633 = vrot.slane %v1045, %v1632
        %1635 = vbcast.lane.b32.xlu0 %v1633, 256
        %v1636 = vpop.permute.xlu0 %1635
        %s1638 = sor.u32 256, 8
        %1639 = vbcast.lane.b32.xlu0 %v1633, %s1638
        %v1640 = vpop.permute.xlu0 %1639
        %v1641 = vlaneseq
        %v1642 = vshrl.u32 %v1641, 7
        %v1643 = vsub.s32 2, %v1642
        %v1644 = vrot.slane %v1045, %v1643
        %1646 = vbcast.lane.b32.xlu0 %v1644, 256
        %v1647 = vpop.permute.xlu0 %1646
        %s1649 = sor.u32 256, 8
        %1650 = vbcast.lane.b32.xlu0 %v1644, %s1649
        %v1651 = vpop.permute.xlu0 %1650
        %v1652 = vlaneseq
        %v1653 = vshrl.u32 %v1652, 7
        %v1654 = vsub.s32 3, %v1653
        %v1655 = vrot.slane %v1045, %v1654
        %1657 = vbcast.lane.b32.xlu0 %v1655, 256
        %v1658 = vpop.permute.xlu0 %1657
        %s1660 = sor.u32 256, 8
        %1661 = vbcast.lane.b32.xlu0 %v1655, %s1660
        %v1662 = vpop.permute.xlu0 %1661
        %v1663 = vlaneseq
        %v1664 = vshrl.u32 %v1663, 7
        %v1665 = vsub.s32 4, %v1664
        %v1666 = vrot.slane %v1045, %v1665
        %1668 = vbcast.lane.b32.xlu0 %v1666, 256
        %v1669 = vpop.permute.xlu0 %1668
        %s1671 = sor.u32 256, 8
        %1672 = vbcast.lane.b32.xlu0 %v1666, %s1671
        %v1673 = vpop.permute.xlu0 %1672
        %v1674 = vlaneseq
        %v1675 = vshrl.u32 %v1674, 7
        %v1676 = vsub.s32 5, %v1675
        %v1677 = vrot.slane %v1045, %v1676
        %1679 = vbcast.lane.b32.xlu0 %v1677, 256
        %v1680 = vpop.permute.xlu0 %1679
        %s1682 = sor.u32 256, 8
        %1683 = vbcast.lane.b32.xlu0 %v1677, %s1682
        %v1684 = vpop.permute.xlu0 %1683
        %v1685 = vlaneseq
        %v1686 = vshrl.u32 %v1685, 7
        %v1687 = vsub.s32 6, %v1686
        %v1688 = vrot.slane %v1045, %v1687
        %1690 = vbcast.lane.b32.xlu0 %v1688, 256
        %v1691 = vpop.permute.xlu0 %1690
        %s1693 = sor.u32 256, 8
        %1694 = vbcast.lane.b32.xlu0 %v1688, %s1693
        %v1695 = vpop.permute.xlu0 %1694
        %v1696 = vlaneseq
        %v1697 = vshrl.u32 %v1696, 7
        %v1698 = vsub.s32 7, %v1697
        %v1699 = vrot.slane %v1045, %v1698
        %1701 = vbcast.lane.b32.xlu0 %v1699, 256
        %v1702 = vpop.permute.xlu0 %1701
        %s1704 = sor.u32 256, 8
        %1705 = vbcast.lane.b32.xlu0 %v1699, %s1704
        %v1706 = vpop.permute.xlu0 %1705
        %vm1707 = vcmp.gt.f32.partialorder %v1625, 0.0
        %vm1708 = vcmp.gt.f32.partialorder %v1629, 0.0
        %vm1709 = vcmp.gt.f32.partialorder %v1636, 0.0
        %vm1710 = vcmp.gt.f32.partialorder %v1640, 0.0
        %vm1711 = vcmp.gt.f32.partialorder %v1647, 0.0
        %vm1712 = vcmp.gt.f32.partialorder %v1651, 0.0
        %vm1713 = vcmp.gt.f32.partialorder %v1658, 0.0
        %vm1714 = vcmp.gt.f32.partialorder %v1662, 0.0
        %vm1715 = vcmp.gt.f32.partialorder %v1669, 0.0
        %vm1716 = vcmp.gt.f32.partialorder %v1673, 0.0
        %vm1717 = vcmp.gt.f32.partialorder %v1680, 0.0
        %vm1718 = vcmp.gt.f32.partialorder %v1684, 0.0
        %vm1719 = vcmp.gt.f32.partialorder %v1691, 0.0
        %vm1720 = vcmp.gt.f32.partialorder %v1695, 0.0
        %vm1721 = vcmp.gt.f32.partialorder %v1702, 0.0
        %vm1722 = vcmp.gt.f32.partialorder %v1706, 0.0
        %v1723 = vsel %vm1707, 1, 0
        %v1724 = vsel %vm1708, 1, 0
        %v1725 = vsel %vm1709, 1, 0
        %v1726 = vsel %vm1710, 1, 0
        %v1727 = vsel %vm1711, 1, 0
        %v1728 = vsel %vm1712, 1, 0
        %v1729 = vsel %vm1713, 1, 0
        %v1730 = vsel %vm1714, 1, 0
        %v1731 = vsel %vm1715, 1, 0
        %v1732 = vsel %vm1716, 1, 0
        %v1733 = vsel %vm1717, 1, 0
        %v1734 = vsel %vm1718, 1, 0
        %v1735 = vsel %vm1719, 1, 0
        %v1736 = vsel %vm1720, 1, 0
        %v1737 = vsel %vm1721, 1, 0
        %v1738 = vsel %vm1722, 1, 0
        %vm1739 = vcmp.eq.s32.totalorder %v1723, 1
        %vm1740 = vcmp.eq.s32.totalorder %v1724, 1
        %vm1741 = vcmp.eq.s32.totalorder %v1725, 1
        %vm1742 = vcmp.eq.s32.totalorder %v1726, 1
        %vm1743 = vcmp.eq.s32.totalorder %v1727, 1
        %vm1744 = vcmp.eq.s32.totalorder %v1728, 1
        %vm1745 = vcmp.eq.s32.totalorder %v1729, 1
        %vm1746 = vcmp.eq.s32.totalorder %v1730, 1
        %vm1747 = vcmp.eq.s32.totalorder %v1731, 1
        %vm1748 = vcmp.eq.s32.totalorder %v1732, 1
        %vm1749 = vcmp.eq.s32.totalorder %v1733, 1
        %vm1750 = vcmp.eq.s32.totalorder %v1734, 1
        %vm1751 = vcmp.eq.s32.totalorder %v1735, 1
        %vm1752 = vcmp.eq.s32.totalorder %v1736, 1
        %vm1753 = vcmp.eq.s32.totalorder %v1737, 1
        %vm1754 = vcmp.eq.s32.totalorder %v1738, 1
        %v1755 = vsel %vm1739, %v1541, -1e+30
        %v1756 = vsel %vm1740, %v1546, -1e+30
        %v1757 = vsel %vm1741, %v1551, -1e+30
        %v1758 = vsel %vm1742, %v1556, -1e+30
        %v1759 = vsel %vm1743, %v1561, -1e+30
        %v1760 = vsel %vm1744, %v1566, -1e+30
        %v1761 = vsel %vm1745, %v1571, -1e+30
        %v1762 = vsel %vm1746, %v1576, -1e+30
        %v1763 = vsel %vm1747, %v1581, -1e+30
        %v1764 = vsel %vm1748, %v1586, -1e+30
        %v1765 = vsel %vm1749, %v1591, -1e+30
        %v1766 = vsel %vm1750, %v1596, -1e+30
        %v1767 = vsel %vm1751, %v1601, -1e+30
        %v1768 = vsel %vm1752, %v1606, -1e+30
        %v1769 = vsel %vm1753, %v1611, -1e+30
        %v1770 = vsel %vm1754, %v1616, -1e+30
        %vm1771 = vcmask 31744
        %v1772 = vsel %vm1771, %v1755, -inf
        %v1773 = vsel %vm1771, %v1756, -inf
        %v1774 = vmax.f32 %v1772, %v1773
        %v1775 = vrot.slane %v1774, 4
        %v1776 = vmax.f32 %v1774, %v1775
        %v1777 = vrot.slane %v1776, 2
        %v1778 = vmax.f32 %v1776, %v1777
        %v1779 = vrot.slane %v1778, 1
        %v1780 = vmax.f32 %v1778, %v1779
        %v1781 = vsel %vm1771, %v1757, -inf
        %v1782 = vsel %vm1771, %v1758, -inf
        %v1783 = vmax.f32 %v1781, %v1782
        %v1784 = vrot.slane %v1783, 4
        %v1785 = vmax.f32 %v1783, %v1784
        %v1786 = vrot.slane %v1785, 2
        %v1787 = vmax.f32 %v1785, %v1786
        %v1788 = vrot.slane %v1787, 1
        %v1789 = vmax.f32 %v1787, %v1788
        %v1790 = vsel %vm1771, %v1759, -inf
        %v1791 = vsel %vm1771, %v1760, -inf
        %v1792 = vmax.f32 %v1790, %v1791
        %v1793 = vrot.slane %v1792, 4
        %v1794 = vmax.f32 %v1792, %v1793
        %v1795 = vrot.slane %v1794, 2
        %v1796 = vmax.f32 %v1794, %v1795
        %v1797 = vrot.slane %v1796, 1
        %v1798 = vmax.f32 %v1796, %v1797
        %v1799 = vsel %vm1771, %v1761, -inf
        %v1800 = vsel %vm1771, %v1762, -inf
        %v1801 = vmax.f32 %v1799, %v1800
        %v1802 = vrot.slane %v1801, 4
        %v1803 = vmax.f32 %v1801, %v1802
        %v1804 = vrot.slane %v1803, 2
        %v1805 = vmax.f32 %v1803, %v1804
        %v1806 = vrot.slane %v1805, 1
        %v1807 = vmax.f32 %v1805, %v1806
        %v1808 = vsel %vm1771, %v1763, -inf
        %v1809 = vsel %vm1771, %v1764, -inf
        %v1810 = vmax.f32 %v1808, %v1809
        %v1811 = vrot.slane %v1810, 4
        %v1812 = vmax.f32 %v1810, %v1811
        %v1813 = vrot.slane %v1812, 2
        %v1814 = vmax.f32 %v1812, %v1813
        %v1815 = vrot.slane %v1814, 1
        %v1816 = vmax.f32 %v1814, %v1815
        %v1817 = vsel %vm1771, %v1765, -inf
        %v1818 = vsel %vm1771, %v1766, -inf
        %v1819 = vmax.f32 %v1817, %v1818
        %v1820 = vrot.slane %v1819, 4
        %v1821 = vmax.f32 %v1819, %v1820
        %v1822 = vrot.slane %v1821, 2
        %v1823 = vmax.f32 %v1821, %v1822
        %v1824 = vrot.slane %v1823, 1
        %v1825 = vmax.f32 %v1823, %v1824
        %v1826 = vsel %vm1771, %v1767, -inf
        %v1827 = vsel %vm1771, %v1768, -inf
        %v1828 = vmax.f32 %v1826, %v1827
        %v1829 = vrot.slane %v1828, 4
        %v1830 = vmax.f32 %v1828, %v1829
        %v1831 = vrot.slane %v1830, 2
        %v1832 = vmax.f32 %v1830, %v1831
        %v1833 = vrot.slane %v1832, 1
        %v1834 = vmax.f32 %v1832, %v1833
        %v1835 = vsel %vm1771, %v1769, -inf
        %v1836 = vsel %vm1771, %v1770, -inf
        %v1837 = vmax.f32 %v1835, %v1836
        %v1838 = vrot.slane %v1837, 4
        %v1839 = vmax.f32 %v1837, %v1838
        %v1840 = vrot.slane %v1839, 2
        %v1841 = vmax.f32 %v1839, %v1840
        %v1842 = vrot.slane %v1841, 1
        %v1843 = vmax.f32 %v1841, %v1842
        %v1844 = vsub.f32 %v1755, %v1780
        %v1845 = vsub.f32 %v1756, %v1780
        %v1846 = vsub.f32 %v1757, %v1789
        %v1847 = vsub.f32 %v1758, %v1789
        %v1848 = vsub.f32 %v1759, %v1798
        %v1849 = vsub.f32 %v1760, %v1798
        %v1850 = vsub.f32 %v1761, %v1807
        %v1851 = vsub.f32 %v1762, %v1807
        %v1852 = vsub.f32 %v1763, %v1816
        %v1853 = vsub.f32 %v1764, %v1816
        %v1854 = vsub.f32 %v1765, %v1825
        %v1855 = vsub.f32 %v1766, %v1825
        %v1856 = vsub.f32 %v1767, %v1834
        %v1857 = vsub.f32 %v1768, %v1834
        %v1858 = vsub.f32 %v1769, %v1843
        %v1859 = vsub.f32 %v1770, %v1843
        %v1860 = vmul.f32 %v1844, 1.442695
        %v1861 = vpow.pop %v1860
        %v1862 = vmul.f32 %v1845, 1.442695
        %v1863 = vpow.pop %v1862
        %v1864 = vmul.f32 %v1846, 1.442695
        %v1865 = vpow.pop %v1864
        %v1866 = vmul.f32 %v1847, 1.442695
        %v1867 = vpow.pop %v1866
        %v1868 = vmul.f32 %v1848, 1.442695
        %v1869 = vpow.pop %v1868
        %v1870 = vmul.f32 %v1849, 1.442695
        %v1871 = vpow.pop %v1870
        %v1872 = vmul.f32 %v1850, 1.442695
        %v1873 = vpow.pop %v1872
        %v1874 = vmul.f32 %v1851, 1.442695
        %v1875 = vpow.pop %v1874
        %v1876 = vmul.f32 %v1852, 1.442695
        %v1877 = vpow.pop %v1876
        %v1878 = vmul.f32 %v1853, 1.442695
        %v1879 = vpow.pop %v1878
        %v1880 = vmul.f32 %v1854, 1.442695
        %v1881 = vpow.pop %v1880
        %v1882 = vmul.f32 %v1855, 1.442695
        %v1883 = vpow.pop %v1882
        %v1884 = vmul.f32 %v1856, 1.442695
        %v1885 = vpow.pop %v1884
        %v1886 = vmul.f32 %v1857, 1.442695
        %v1887 = vpow.pop %v1886
        %v1888 = vmul.f32 %v1858, 1.442695
        %v1889 = vpow.pop %v1888
        %v1890 = vmul.f32 %v1859, 1.442695
        %v1891 = vpow.pop %v1890
        %v1892 = vmul.f32 %v1861, %v1625
        %v1893 = vmul.f32 %v1863, %v1629
        %v1894 = vmul.f32 %v1865, %v1636
        %v1895 = vmul.f32 %v1867, %v1640
        %v1896 = vmul.f32 %v1869, %v1647
        %v1897 = vmul.f32 %v1871, %v1651
        %v1898 = vmul.f32 %v1873, %v1658
        %v1899 = vmul.f32 %v1875, %v1662
        %v1900 = vmul.f32 %v1877, %v1669
        %v1901 = vmul.f32 %v1879, %v1673
        %v1902 = vmul.f32 %v1881, %v1680
        %v1903 = vmul.f32 %v1883, %v1684
        %v1904 = vmul.f32 %v1885, %v1691
        %v1905 = vmul.f32 %v1887, %v1695
        %v1906 = vmul.f32 %v1889, %v1702
        %v1907 = vmul.f32 %v1891, %v1706
        %v1908 = vsel %vm1771, %v1892, 0.0
        %v1909 = vsel %vm1771, %v1893, 0.0
        %v1910 = vadd.f32 %v1908, %v1909
        %v1911 = vrot.slane %v1910, 4
        %v1912 = vadd.f32 %v1910, %v1911
        %v1913 = vrot.slane %v1912, 2
        %v1914 = vadd.f32 %v1912, %v1913
        %v1915 = vrot.slane %v1914, 1
        %v1916 = vadd.f32 %v1914, %v1915
        %v1917 = vsel %vm1771, %v1894, 0.0
        %v1918 = vsel %vm1771, %v1895, 0.0
        %v1919 = vadd.f32 %v1917, %v1918
        %v1920 = vrot.slane %v1919, 4
        %v1921 = vadd.f32 %v1919, %v1920
        %v1922 = vrot.slane %v1921, 2
        %v1923 = vadd.f32 %v1921, %v1922
        %v1924 = vrot.slane %v1923, 1
        %v1925 = vadd.f32 %v1923, %v1924
        %v1926 = vsel %vm1771, %v1896, 0.0
        %v1927 = vsel %vm1771, %v1897, 0.0
        %v1928 = vadd.f32 %v1926, %v1927
        %v1929 = vrot.slane %v1928, 4
        %v1930 = vadd.f32 %v1928, %v1929
        %v1931 = vrot.slane %v1930, 2
        %v1932 = vadd.f32 %v1930, %v1931
        %v1933 = vrot.slane %v1932, 1
        %v1934 = vadd.f32 %v1932, %v1933
        %v1935 = vsel %vm1771, %v1898, 0.0
        %v1936 = vsel %vm1771, %v1899, 0.0
        %v1937 = vadd.f32 %v1935, %v1936
        %v1938 = vrot.slane %v1937, 4
        %v1939 = vadd.f32 %v1937, %v1938
        %v1940 = vrot.slane %v1939, 2
        %v1941 = vadd.f32 %v1939, %v1940
        %v1942 = vrot.slane %v1941, 1
        %v1943 = vadd.f32 %v1941, %v1942
        %v1944 = vsel %vm1771, %v1900, 0.0
        %v1945 = vsel %vm1771, %v1901, 0.0
        %v1946 = vadd.f32 %v1944, %v1945
        %v1947 = vrot.slane %v1946, 4
        %v1948 = vadd.f32 %v1946, %v1947
        %v1949 = vrot.slane %v1948, 2
        %v1950 = vadd.f32 %v1948, %v1949
        %v1951 = vrot.slane %v1950, 1
        %v1952 = vadd.f32 %v1950, %v1951
        %v1953 = vsel %vm1771, %v1902, 0.0
        %v1954 = vsel %vm1771, %v1903, 0.0
        %v1955 = vadd.f32 %v1953, %v1954
        %v1956 = vrot.slane %v1955, 4
        %v1957 = vadd.f32 %v1955, %v1956
        %v1958 = vrot.slane %v1957, 2
        %v1959 = vadd.f32 %v1957, %v1958
        %v1960 = vrot.slane %v1959, 1
        %v1961 = vadd.f32 %v1959, %v1960
        %v1962 = vsel %vm1771, %v1904, 0.0
        %v1963 = vsel %vm1771, %v1905, 0.0
        %v1964 = vadd.f32 %v1962, %v1963
        %v1965 = vrot.slane %v1964, 4
        %v1966 = vadd.f32 %v1964, %v1965
        %v1967 = vrot.slane %v1966, 2
        %v1968 = vadd.f32 %v1966, %v1967
        %v1969 = vrot.slane %v1968, 1
        %v1970 = vadd.f32 %v1968, %v1969
        %v1971 = vsel %vm1771, %v1906, 0.0
        %v1972 = vsel %vm1771, %v1907, 0.0
        %v1973 = vadd.f32 %v1971, %v1972
        %v1974 = vrot.slane %v1973, 4
        %v1975 = vadd.f32 %v1973, %v1974
        %v1976 = vrot.slane %v1975, 2
        %v1977 = vadd.f32 %v1975, %v1976
        %v1978 = vrot.slane %v1977, 1
        %v1979 = vadd.f32 %v1977, %v1978
        %vm1980 = vcmp.gt.f32.partialorder %v1916, 0.0
        %vm1981 = vcmp.gt.f32.partialorder %v1925, 0.0
        %vm1982 = vcmp.gt.f32.partialorder %v1934, 0.0
        %vm1983 = vcmp.gt.f32.partialorder %v1943, 0.0
        %vm1984 = vcmp.gt.f32.partialorder %v1952, 0.0
        %vm1985 = vcmp.gt.f32.partialorder %v1961, 0.0
        %vm1986 = vcmp.gt.f32.partialorder %v1970, 0.0
        %vm1987 = vcmp.gt.f32.partialorder %v1979, 0.0
        %v1988 = vsel %vm1980, %v1916, 1.0
        %v1989 = vsel %vm1981, %v1925, 1.0
        %v1990 = vsel %vm1982, %v1934, 1.0
        %v1991 = vsel %vm1983, %v1943, 1.0
        %v1992 = vsel %vm1984, %v1952, 1.0
        %v1993 = vsel %vm1985, %v1961, 1.0
        %v1994 = vsel %vm1986, %v1970, 1.0
        %v1995 = vsel %vm1987, %v1979, 1.0
        %v1996 = vrcp.pop %v1988
        %v1997 = vrcp.pop %v1989
        %v1998 = vrcp.pop %v1990
        %v1999 = vrcp.pop %v1991
        %v2000 = vrcp.pop %v1992
        %v2001 = vrcp.pop %v1993
        %v2002 = vrcp.pop %v1994
        %v2003 = vrcp.pop %v1995
        %v2004 = vmul.f32 %v1892, %v1996
        %v2005 = vmul.f32 %v1893, %v1996
        %v2006 = vmul.f32 %v1894, %v1997
        %v2007 = vmul.f32 %v1895, %v1997
        %v2008 = vmul.f32 %v1896, %v1998
        %v2009 = vmul.f32 %v1897, %v1998
        %v2010 = vmul.f32 %v1898, %v1999
        %v2011 = vmul.f32 %v1899, %v1999
        %v2012 = vmul.f32 %v1900, %v2000
        %v2013 = vmul.f32 %v1901, %v2000
        %v2014 = vmul.f32 %v1902, %v2001
        %v2015 = vmul.f32 %v1903, %v2001
        %v2016 = vmul.f32 %v1904, %v2002
        %v2017 = vmul.f32 %v1905, %v2002
        %v2018 = vmul.f32 %v1906, %v2003
        %v2019 = vmul.f32 %v1907, %v2003
        %v2020 = vadd.f32 %v1328, %v1029
        %v2021 = vadd.f32 %v1333, %v1030
        %v2022 = vadd.f32 %v1328, %v1031
        %v2023 = vadd.f32 %v1333, %v1032
        %v2024 = vadd.f32 %v1328, %v1033
        %v2025 = vadd.f32 %v1333, %v1034
        %v2026 = vadd.f32 %v1328, %v1035
        %v2027 = vadd.f32 %v1333, %v1036
        %v2028 = vadd.f32 %v1328, %v1037
        %v2029 = vadd.f32 %v1333, %v1038
        %v2030 = vadd.f32 %v1328, %v1039
        %v2031 = vadd.f32 %v1333, %v1040
        %v2032 = vadd.f32 %v1328, %v1041
        %v2033 = vadd.f32 %v1333, %v1042
        %v2034 = vadd.f32 %v1328, %v1043
        %v2035 = vadd.f32 %v1333, %v1044
        %2036 = vxpose.xlu0.b32.start [1/16] %v2004, 128
        %2037 = vxpose.xlu0.b32.cont [2/16] %v2005, 128
        %2038 = vxpose.xlu0.b32.cont [3/16] 0.0, 128
        %2039 = vxpose.xlu0.b32.cont [4/16] 0.0, 128
        %2040 = vxpose.xlu0.b32.cont [5/16] 0.0, 128
        %2041 = vxpose.xlu0.b32.cont [6/16] 0.0, 128
        %2042 = vxpose.xlu0.b32.cont [7/16] 0.0, 128
        %2043 = vxpose.xlu0.b32.cont [8/16] 0.0, 128
        %2044 = vxpose.xlu0.b32.cont [9/16] 0.0, 128
        %2045 = vxpose.xlu0.b32.cont [10/16] 0.0, 128
        %2046 = vxpose.xlu0.b32.cont [11/16] 0.0, 128
        %2047 = vxpose.xlu0.b32.cont [12/16] 0.0, 128
        %2048 = vxpose.xlu0.b32.cont [13/16] 0.0, 128
        %2049 = vxpose.xlu0.b32.cont [14/16] 0.0, 128
        %2050 = vxpose.xlu0.b32.cont [15/16] 0.0, 128
        %2051 = vxpose.xlu0.b32.end [16/16] 0.0, 128
        %v2052 = vpop.trf.xlu0
        %v2053 = vpop.trf.xlu0
        %v2054 = vpop.trf.xlu0
        %v2055 = vpop.trf.xlu0
        %v2056 = vpop.trf.xlu0
        %v2057 = vpop.trf.xlu0
        %v2058 = vpop.trf.xlu0
        %v2059 = vpop.trf.xlu0
        %v2060 = vpop.trf.xlu0
        %v2061 = vpop.trf.xlu0
        %v2062 = vpop.trf.xlu0
        %v2063 = vpop.trf.xlu0
        %v2064 = vpop.trf.xlu0
        %v2065 = vpop.trf.xlu0
        %v2066 = vpop.trf.xlu0
        %v2067 = vpop.trf.xlu0
        %vm2068 = vcmask 130048
        %v2070 = vsel %vm2068, %v2052, 0
        %2072 = vmatprep.subr.mxu0 0.0
        %2073 = vmatpush1.msra.mxu0 %v2020
        %2074 = vmatprep.subr.mxu0 0.0
        %2075 = vmatpush1.msra.mxu0 %v2021
        %2076 = vmatprep.subr.mxu0 0.0
        %2077 = vmatpush1.msra.mxu0 0.0
        %2078 = vmatprep.subr.mxu0 0.0
        %2079 = vmatpush1.msra.mxu0 0.0
        %2080 = vmatprep.subr.mxu0 0.0
        %2081 = vmatpush1.msra.mxu0 0.0
        %2082 = vmatprep.subr.mxu0 0.0
        %2083 = vmatpush1.msra.mxu0 0.0
        %2084 = vmatprep.subr.mxu0 0.0
        %2085 = vmatpush1.msra.mxu0 0.0
        %2086 = vmatprep.subr.mxu0 0.0
        %2087 = vmatpush1.msra.mxu0 0.0
        %2088 = vmatprep.subr.mxu0 0.0
        %2089 = vmatpush1.msra.mxu0 0.0
        %2090 = vmatprep.subr.mxu0 0.0
        %2091 = vmatpush1.msra.mxu0 0.0
        %2092 = vmatprep.subr.mxu0 0.0
        %2093 = vmatpush1.msra.mxu0 0.0
        %2094 = vmatprep.subr.mxu0 0.0
        %2095 = vmatpush1.msra.mxu0 0.0
        %2096 = vmatprep.subr.mxu0 0.0
        %2097 = vmatpush1.msra.mxu0 0.0
        %2098 = vmatprep.subr.mxu0 0.0
        %2099 = vmatpush1.msra.mxu0 0.0
        %2100 = vmatprep.subr.mxu0 0.0
        %2101 = vmatpush1.msra.mxu0 0.0
        %2102 = vmatprep.subr.mxu0 0.0
        %2103 = vmatpush1.msra.mxu0 0.0
        %2104 = vmatprep.subr.mxu0 0.0
        %2105 = vmatpush1.msra.mxu0 0.0
        %2106 = vmatprep.subr.mxu0 0.0
        %2107 = vmatpush1.msra.mxu0 0.0
        %2108 = vmatprep.subr.mxu0 0.0
        %2109 = vmatpush1.msra.mxu0 0.0
        %2110 = vmatprep.subr.mxu0 0.0
        %2111 = vmatpush1.msra.mxu0 0.0
        %2112 = vmatprep.subr.mxu0 0.0
        %2113 = vmatpush1.msra.mxu0 0.0
        %2114 = vmatprep.subr.mxu0 0.0
        %2115 = vmatpush1.msra.mxu0 0.0
        %2116 = vmatprep.subr.mxu0 0.0
        %2117 = vmatpush1.msra.mxu0 0.0
        %2118 = vmatprep.subr.mxu0 0.0
        %2119 = vmatpush1.msra.mxu0 0.0
        %2120 = vmatprep.subr.mxu0 0.0
        %2121 = vmatpush1.msra.mxu0 0.0
        %2122 = vmatprep.subr.mxu0 0.0
        %2123 = vmatpush1.msra.mxu0 0.0
        %2124 = vmatprep.subr.mxu0 0.0
        %2125 = vmatpush1.msra.mxu0 0.0
        %2126 = vmatprep.subr.mxu0 0.0
        %2127 = vmatpush1.msra.mxu0 0.0
        %2128 = vmatprep.subr.mxu0 0.0
        %2129 = vmatpush1.msra.mxu0 0.0
        %2130 = vmatprep.subr.mxu0 0.0
        %2131 = vmatpush1.msra.mxu0 0.0
        %2132 = vmatprep.subr.mxu0 0.0
        %2133 = vmatpush1.msra.mxu0 0.0
        %2134 = vmatprep.subr.mxu0 0.0
        %2135 = vmatpush1.msra.mxu0 0.0
        %2136 = vmatprep.mubr.f32.mxu0 0.0
        %2137 = vmatmul.mubr.f32.gmra.mrb[0].mxu0 %v2070
        %v2138 = vpop.f32.mrb[0].mxu0
        %v2139 = vadd.f32 0.0, %v2138
        %v2140 = vpop.f32.mrb[0].mxu0
        %2141 = vdwg.mxu0
        %2142 = vxpose.xlu0.b32.start [1/16] %v2006, 128
        %2143 = vxpose.xlu0.b32.cont [2/16] %v2007, 128
        %2144 = vxpose.xlu0.b32.cont [3/16] 0.0, 128
        %2145 = vxpose.xlu0.b32.cont [4/16] 0.0, 128
        %2146 = vxpose.xlu0.b32.cont [5/16] 0.0, 128
        %2147 = vxpose.xlu0.b32.cont [6/16] 0.0, 128
        %2148 = vxpose.xlu0.b32.cont [7/16] 0.0, 128
        %2149 = vxpose.xlu0.b32.cont [8/16] 0.0, 128
        %2150 = vxpose.xlu0.b32.cont [9/16] 0.0, 128
        %2151 = vxpose.xlu0.b32.cont [10/16] 0.0, 128
        %2152 = vxpose.xlu0.b32.cont [11/16] 0.0, 128
        %2153 = vxpose.xlu0.b32.cont [12/16] 0.0, 128
        %2154 = vxpose.xlu0.b32.cont [13/16] 0.0, 128
        %2155 = vxpose.xlu0.b32.cont [14/16] 0.0, 128
        %2156 = vxpose.xlu0.b32.cont [15/16] 0.0, 128
        %2157 = vxpose.xlu0.b32.end [16/16] 0.0, 128
        %v2158 = vpop.trf.xlu0
        %v2159 = vpop.trf.xlu0
        %v2160 = vpop.trf.xlu0
        %v2161 = vpop.trf.xlu0
        %v2162 = vpop.trf.xlu0
        %v2163 = vpop.trf.xlu0
        %v2164 = vpop.trf.xlu0
        %v2165 = vpop.trf.xlu0
        %v2166 = vpop.trf.xlu0
        %v2167 = vpop.trf.xlu0
        %v2168 = vpop.trf.xlu0
        %v2169 = vpop.trf.xlu0
        %v2170 = vpop.trf.xlu0
        %v2171 = vpop.trf.xlu0
        %v2172 = vpop.trf.xlu0
        %v2173 = vpop.trf.xlu0
        %v2175 = vsel %vm2068, %v2158, 0
        %2177 = vmatprep.subr.mxu0 0.0
        %2178 = vmatpush1.msra.mxu0 %v2022
        %2179 = vmatprep.subr.mxu0 0.0
        %2180 = vmatpush1.msra.mxu0 %v2023
        %2181 = vmatprep.subr.mxu0 0.0
        %2182 = vmatpush1.msra.mxu0 0.0
        %2183 = vmatprep.subr.mxu0 0.0
        %2184 = vmatpush1.msra.mxu0 0.0
        %2185 = vmatprep.subr.mxu0 0.0
        %2186 = vmatpush1.msra.mxu0 0.0
        %2187 = vmatprep.subr.mxu0 0.0
        %2188 = vmatpush1.msra.mxu0 0.0
        %2189 = vmatprep.subr.mxu0 0.0
        %2190 = vmatpush1.msra.mxu0 0.0
        %2191 = vmatprep.subr.mxu0 0.0
        %2192 = vmatpush1.msra.mxu0 0.0
        %2193 = vmatprep.subr.mxu0 0.0
        %2194 = vmatpush1.msra.mxu0 0.0
        %2195 = vmatprep.subr.mxu0 0.0
        %2196 = vmatpush1.msra.mxu0 0.0
        %2197 = vmatprep.subr.mxu0 0.0
        %2198 = vmatpush1.msra.mxu0 0.0
        %2199 = vmatprep.subr.mxu0 0.0
        %2200 = vmatpush1.msra.mxu0 0.0
        %2201 = vmatprep.subr.mxu0 0.0
        %2202 = vmatpush1.msra.mxu0 0.0
        %2203 = vmatprep.subr.mxu0 0.0
        %2204 = vmatpush1.msra.mxu0 0.0
        %2205 = vmatprep.subr.mxu0 0.0
        %2206 = vmatpush1.msra.mxu0 0.0
        %2207 = vmatprep.subr.mxu0 0.0
        %2208 = vmatpush1.msra.mxu0 0.0
        %2209 = vmatprep.subr.mxu0 0.0
        %2210 = vmatpush1.msra.mxu0 0.0
        %2211 = vmatprep.subr.mxu0 0.0
        %2212 = vmatpush1.msra.mxu0 0.0
        %2213 = vmatprep.subr.mxu0 0.0
        %2214 = vmatpush1.msra.mxu0 0.0
        %2215 = vmatprep.subr.mxu0 0.0
        %2216 = vmatpush1.msra.mxu0 0.0
        %2217 = vmatprep.subr.mxu0 0.0
        %2218 = vmatpush1.msra.mxu0 0.0
        %2219 = vmatprep.subr.mxu0 0.0
        %2220 = vmatpush1.msra.mxu0 0.0
        %2221 = vmatprep.subr.mxu0 0.0
        %2222 = vmatpush1.msra.mxu0 0.0
        %2223 = vmatprep.subr.mxu0 0.0
        %2224 = vmatpush1.msra.mxu0 0.0
        %2225 = vmatprep.subr.mxu0 0.0
        %2226 = vmatpush1.msra.mxu0 0.0
        %2227 = vmatprep.subr.mxu0 0.0
        %2228 = vmatpush1.msra.mxu0 0.0
        %2229 = vmatprep.subr.mxu0 0.0
        %2230 = vmatpush1.msra.mxu0 0.0
        %2231 = vmatprep.subr.mxu0 0.0
        %2232 = vmatpush1.msra.mxu0 0.0
        %2233 = vmatprep.subr.mxu0 0.0
        %2234 = vmatpush1.msra.mxu0 0.0
        %2235 = vmatprep.subr.mxu0 0.0
        %2236 = vmatpush1.msra.mxu0 0.0
        %2237 = vmatprep.subr.mxu0 0.0
        %2238 = vmatpush1.msra.mxu0 0.0
        %2239 = vmatprep.subr.mxu0 0.0
        %2240 = vmatpush1.msra.mxu0 0.0
        %2241 = vmatprep.mubr.f32.mxu0 0.0
        %2242 = vmatmul.mubr.f32.gmra.mrb[0].mxu0 %v2175
        %v2243 = vpop.f32.mrb[0].mxu0
        %v2244 = vadd.f32 0.0, %v2243
        %v2245 = vpop.f32.mrb[0].mxu0
        %2246 = vdwg.mxu0
        %2247 = vxpose.xlu0.b32.start [1/16] %v2008, 128
        %2248 = vxpose.xlu0.b32.cont [2/16] %v2009, 128
        %2249 = vxpose.xlu0.b32.cont [3/16] 0.0, 128
        %2250 = vxpose.xlu0.b32.cont [4/16] 0.0, 128
        %2251 = vxpose.xlu0.b32.cont [5/16] 0.0, 128
        %2252 = vxpose.xlu0.b32.cont [6/16] 0.0, 128
        %2253 = vxpose.xlu0.b32.cont [7/16] 0.0, 128
        %2254 = vxpose.xlu0.b32.cont [8/16] 0.0, 128
        %2255 = vxpose.xlu0.b32.cont [9/16] 0.0, 128
        %2256 = vxpose.xlu0.b32.cont [10/16] 0.0, 128
        %2257 = vxpose.xlu0.b32.cont [11/16] 0.0, 128
        %2258 = vxpose.xlu0.b32.cont [12/16] 0.0, 128
        %2259 = vxpose.xlu0.b32.cont [13/16] 0.0, 128
        %2260 = vxpose.xlu0.b32.cont [14/16] 0.0, 128
        %2261 = vxpose.xlu0.b32.cont [15/16] 0.0, 128
        %2262 = vxpose.xlu0.b32.end [16/16] 0.0, 128
        %v2263 = vpop.trf.xlu0
        %v2264 = vpop.trf.xlu0
        %v2265 = vpop.trf.xlu0
        %v2266 = vpop.trf.xlu0
        %v2267 = vpop.trf.xlu0
        %v2268 = vpop.trf.xlu0
        %v2269 = vpop.trf.xlu0
        %v2270 = vpop.trf.xlu0
        %v2271 = vpop.trf.xlu0
        %v2272 = vpop.trf.xlu0
        %v2273 = vpop.trf.xlu0
        %v2274 = vpop.trf.xlu0
        %v2275 = vpop.trf.xlu0
        %v2276 = vpop.trf.xlu0
        %v2277 = vpop.trf.xlu0
        %v2278 = vpop.trf.xlu0
        %v2280 = vsel %vm2068, %v2263, 0
        %2282 = vmatprep.subr.mxu0 0.0
        %2283 = vmatpush1.msra.mxu0 %v2024
        %2284 = vmatprep.subr.mxu0 0.0
        %2285 = vmatpush1.msra.mxu0 %v2025
        %2286 = vmatprep.subr.mxu0 0.0
        %2287 = vmatpush1.msra.mxu0 0.0
        %2288 = vmatprep.subr.mxu0 0.0
        %2289 = vmatpush1.msra.mxu0 0.0
        %2290 = vmatprep.subr.mxu0 0.0
        %2291 = vmatpush1.msra.mxu0 0.0
        %2292 = vmatprep.subr.mxu0 0.0
        %2293 = vmatpush1.msra.mxu0 0.0
        %2294 = vmatprep.subr.mxu0 0.0
        %2295 = vmatpush1.msra.mxu0 0.0
        %2296 = vmatprep.subr.mxu0 0.0
        %2297 = vmatpush1.msra.mxu0 0.0
        %2298 = vmatprep.subr.mxu0 0.0
        %2299 = vmatpush1.msra.mxu0 0.0
        %2300 = vmatprep.subr.mxu0 0.0
        %2301 = vmatpush1.msra.mxu0 0.0
        %2302 = vmatprep.subr.mxu0 0.0
        %2303 = vmatpush1.msra.mxu0 0.0
        %2304 = vmatprep.subr.mxu0 0.0
        %2305 = vmatpush1.msra.mxu0 0.0
        %2306 = vmatprep.subr.mxu0 0.0
        %2307 = vmatpush1.msra.mxu0 0.0
        %2308 = vmatprep.subr.mxu0 0.0
        %2309 = vmatpush1.msra.mxu0 0.0
        %2310 = vmatprep.subr.mxu0 0.0
        %2311 = vmatpush1.msra.mxu0 0.0
        %2312 = vmatprep.subr.mxu0 0.0
        %2313 = vmatpush1.msra.mxu0 0.0
        %2314 = vmatprep.subr.mxu0 0.0
        %2315 = vmatpush1.msra.mxu0 0.0
        %2316 = vmatprep.subr.mxu0 0.0
        %2317 = vmatpush1.msra.mxu0 0.0
        %2318 = vmatprep.subr.mxu0 0.0
        %2319 = vmatpush1.msra.mxu0 0.0
        %2320 = vmatprep.subr.mxu0 0.0
        %2321 = vmatpush1.msra.mxu0 0.0
        %2322 = vmatprep.subr.mxu0 0.0
        %2323 = vmatpush1.msra.mxu0 0.0
        %2324 = vmatprep.subr.mxu0 0.0
        %2325 = vmatpush1.msra.mxu0 0.0
        %2326 = vmatprep.subr.mxu0 0.0
        %2327 = vmatpush1.msra.mxu0 0.0
        %2328 = vmatprep.subr.mxu0 0.0
        %2329 = vmatpush1.msra.mxu0 0.0
        %2330 = vmatprep.subr.mxu0 0.0
        %2331 = vmatpush1.msra.mxu0 0.0
        %2332 = vmatprep.subr.mxu0 0.0
        %2333 = vmatpush1.msra.mxu0 0.0
        %2334 = vmatprep.subr.mxu0 0.0
        %2335 = vmatpush1.msra.mxu0 0.0
        %2336 = vmatprep.subr.mxu0 0.0
        %2337 = vmatpush1.msra.mxu0 0.0
        %2338 = vmatprep.subr.mxu0 0.0
        %2339 = vmatpush1.msra.mxu0 0.0
        %2340 = vmatprep.subr.mxu0 0.0
        %2341 = vmatpush1.msra.mxu0 0.0
        %2342 = vmatprep.subr.mxu0 0.0
        %2343 = vmatpush1.msra.mxu0 0.0
        %2344 = vmatprep.subr.mxu0 0.0
        %2345 = vmatpush1.msra.mxu0 0.0
        %2346 = vmatprep.mubr.f32.mxu0 0.0
        %2347 = vmatmul.mubr.f32.gmra.mrb[0].mxu0 %v2280
        %v2348 = vpop.f32.mrb[0].mxu0
        %v2349 = vadd.f32 0.0, %v2348
        %v2350 = vpop.f32.mrb[0].mxu0
        %2351 = vdwg.mxu0
        %2352 = vxpose.xlu0.b32.start [1/16] %v2010, 128
        %2353 = vxpose.xlu0.b32.cont [2/16] %v2011, 128
        %2354 = vxpose.xlu0.b32.cont [3/16] 0.0, 128
        %2355 = vxpose.xlu0.b32.cont [4/16] 0.0, 128
        %2356 = vxpose.xlu0.b32.cont [5/16] 0.0, 128
        %2357 = vxpose.xlu0.b32.cont [6/16] 0.0, 128
        %2358 = vxpose.xlu0.b32.cont [7/16] 0.0, 128
        %2359 = vxpose.xlu0.b32.cont [8/16] 0.0, 128
        %2360 = vxpose.xlu0.b32.cont [9/16] 0.0, 128
        %2361 = vxpose.xlu0.b32.cont [10/16] 0.0, 128
        %2362 = vxpose.xlu0.b32.cont [11/16] 0.0, 128
        %2363 = vxpose.xlu0.b32.cont [12/16] 0.0, 128
        %2364 = vxpose.xlu0.b32.cont [13/16] 0.0, 128
        %2365 = vxpose.xlu0.b32.cont [14/16] 0.0, 128
        %2366 = vxpose.xlu0.b32.cont [15/16] 0.0, 128
        %2367 = vxpose.xlu0.b32.end [16/16] 0.0, 128
        %v2368 = vpop.trf.xlu0
        %v2369 = vpop.trf.xlu0
        %v2370 = vpop.trf.xlu0
        %v2371 = vpop.trf.xlu0
        %v2372 = vpop.trf.xlu0
        %v2373 = vpop.trf.xlu0
        %v2374 = vpop.trf.xlu0
        %v2375 = vpop.trf.xlu0
        %v2376 = vpop.trf.xlu0
        %v2377 = vpop.trf.xlu0
        %v2378 = vpop.trf.xlu0
        %v2379 = vpop.trf.xlu0
        %v2380 = vpop.trf.xlu0
        %v2381 = vpop.trf.xlu0
        %v2382 = vpop.trf.xlu0
        %v2383 = vpop.trf.xlu0
        %v2385 = vsel %vm2068, %v2368, 0
        %2387 = vmatprep.subr.mxu0 0.0
        %2388 = vmatpush1.msra.mxu0 %v2026
        %2389 = vmatprep.subr.mxu0 0.0
        %2390 = vmatpush1.msra.mxu0 %v2027
        %2391 = vmatprep.subr.mxu0 0.0
        %2392 = vmatpush1.msra.mxu0 0.0
        %2393 = vmatprep.subr.mxu0 0.0
        %2394 = vmatpush1.msra.mxu0 0.0
        %2395 = vmatprep.subr.mxu0 0.0
        %2396 = vmatpush1.msra.mxu0 0.0
        %2397 = vmatprep.subr.mxu0 0.0
        %2398 = vmatpush1.msra.mxu0 0.0
        %2399 = vmatprep.subr.mxu0 0.0
        %2400 = vmatpush1.msra.mxu0 0.0
        %2401 = vmatprep.subr.mxu0 0.0
        %2402 = vmatpush1.msra.mxu0 0.0
        %2403 = vmatprep.subr.mxu0 0.0
        %2404 = vmatpush1.msra.mxu0 0.0
        %2405 = vmatprep.subr.mxu0 0.0
        %2406 = vmatpush1.msra.mxu0 0.0
        %2407 = vmatprep.subr.mxu0 0.0
        %2408 = vmatpush1.msra.mxu0 0.0
        %2409 = vmatprep.subr.mxu0 0.0
        %2410 = vmatpush1.msra.mxu0 0.0
        %2411 = vmatprep.subr.mxu0 0.0
        %2412 = vmatpush1.msra.mxu0 0.0
        %2413 = vmatprep.subr.mxu0 0.0
        %2414 = vmatpush1.msra.mxu0 0.0
        %2415 = vmatprep.subr.mxu0 0.0
        %2416 = vmatpush1.msra.mxu0 0.0
        %2417 = vmatprep.subr.mxu0 0.0
        %2418 = vmatpush1.msra.mxu0 0.0
        %2419 = vmatprep.subr.mxu0 0.0
        %2420 = vmatpush1.msra.mxu0 0.0
        %2421 = vmatprep.subr.mxu0 0.0
        %2422 = vmatpush1.msra.mxu0 0.0
        %2423 = vmatprep.subr.mxu0 0.0
        %2424 = vmatpush1.msra.mxu0 0.0
        %2425 = vmatprep.subr.mxu0 0.0
        %2426 = vmatpush1.msra.mxu0 0.0
        %2427 = vmatprep.subr.mxu0 0.0
        %2428 = vmatpush1.msra.mxu0 0.0
        %2429 = vmatprep.subr.mxu0 0.0
        %2430 = vmatpush1.msra.mxu0 0.0
        %2431 = vmatprep.subr.mxu0 0.0
        %2432 = vmatpush1.msra.mxu0 0.0
        %2433 = vmatprep.subr.mxu0 0.0
        %2434 = vmatpush1.msra.mxu0 0.0
        %2435 = vmatprep.subr.mxu0 0.0
        %2436 = vmatpush1.msra.mxu0 0.0
        %2437 = vmatprep.subr.mxu0 0.0
        %2438 = vmatpush1.msra.mxu0 0.0
        %2439 = vmatprep.subr.mxu0 0.0
        %2440 = vmatpush1.msra.mxu0 0.0
        %2441 = vmatprep.subr.mxu0 0.0
        %2442 = vmatpush1.msra.mxu0 0.0
        %2443 = vmatprep.subr.mxu0 0.0
        %2444 = vmatpush1.msra.mxu0 0.0
        %2445 = vmatprep.subr.mxu0 0.0
        %2446 = vmatpush1.msra.mxu0 0.0
        %2447 = vmatprep.subr.mxu0 0.0
        %2448 = vmatpush1.msra.mxu0 0.0
        %2449 = vmatprep.subr.mxu0 0.0
        %2450 = vmatpush1.msra.mxu0 0.0
        %2451 = vmatprep.mubr.f32.mxu0 0.0
        %2452 = vmatmul.mubr.f32.gmra.mrb[0].mxu0 %v2385
        %v2453 = vpop.f32.mrb[0].mxu0
        %v2454 = vadd.f32 0.0, %v2453
        %v2455 = vpop.f32.mrb[0].mxu0
        %2456 = vdwg.mxu0
        %2457 = vxpose.xlu0.b32.start [1/16] %v2012, 128
        %2458 = vxpose.xlu0.b32.cont [2/16] %v2013, 128
        %2459 = vxpose.xlu0.b32.cont [3/16] 0.0, 128
        %2460 = vxpose.xlu0.b32.cont [4/16] 0.0, 128
        %2461 = vxpose.xlu0.b32.cont [5/16] 0.0, 128
        %2462 = vxpose.xlu0.b32.cont [6/16] 0.0, 128
        %2463 = vxpose.xlu0.b32.cont [7/16] 0.0, 128
        %2464 = vxpose.xlu0.b32.cont [8/16] 0.0, 128
        %2465 = vxpose.xlu0.b32.cont [9/16] 0.0, 128
        %2466 = vxpose.xlu0.b32.cont [10/16] 0.0, 128
        %2467 = vxpose.xlu0.b32.cont [11/16] 0.0, 128
        %2468 = vxpose.xlu0.b32.cont [12/16] 0.0, 128
        %2469 = vxpose.xlu0.b32.cont [13/16] 0.0, 128
        %2470 = vxpose.xlu0.b32.cont [14/16] 0.0, 128
        %2471 = vxpose.xlu0.b32.cont [15/16] 0.0, 128
        %2472 = vxpose.xlu0.b32.end [16/16] 0.0, 128
        %v2473 = vpop.trf.xlu0
        %v2474 = vpop.trf.xlu0
        %v2475 = vpop.trf.xlu0
        %v2476 = vpop.trf.xlu0
        %v2477 = vpop.trf.xlu0
        %v2478 = vpop.trf.xlu0
        %v2479 = vpop.trf.xlu0
        %v2480 = vpop.trf.xlu0
        %v2481 = vpop.trf.xlu0
        %v2482 = vpop.trf.xlu0
        %v2483 = vpop.trf.xlu0
        %v2484 = vpop.trf.xlu0
        %v2485 = vpop.trf.xlu0
        %v2486 = vpop.trf.xlu0
        %v2487 = vpop.trf.xlu0
        %v2488 = vpop.trf.xlu0
        %v2490 = vsel %vm2068, %v2473, 0
        %2492 = vmatprep.subr.mxu0 0.0
        %2493 = vmatpush1.msra.mxu0 %v2028
        %2494 = vmatprep.subr.mxu0 0.0
        %2495 = vmatpush1.msra.mxu0 %v2029
        %2496 = vmatprep.subr.mxu0 0.0
        %2497 = vmatpush1.msra.mxu0 0.0
        %2498 = vmatprep.subr.mxu0 0.0
        %2499 = vmatpush1.msra.mxu0 0.0
        %2500 = vmatprep.subr.mxu0 0.0
        %2501 = vmatpush1.msra.mxu0 0.0
        %2502 = vmatprep.subr.mxu0 0.0
        %2503 = vmatpush1.msra.mxu0 0.0
        %2504 = vmatprep.subr.mxu0 0.0
        %2505 = vmatpush1.msra.mxu0 0.0
        %2506 = vmatprep.subr.mxu0 0.0
        %2507 = vmatpush1.msra.mxu0 0.0
        %2508 = vmatprep.subr.mxu0 0.0
        %2509 = vmatpush1.msra.mxu0 0.0
        %2510 = vmatprep.subr.mxu0 0.0
        %2511 = vmatpush1.msra.mxu0 0.0
        %2512 = vmatprep.subr.mxu0 0.0
        %2513 = vmatpush1.msra.mxu0 0.0
        %2514 = vmatprep.subr.mxu0 0.0
        %2515 = vmatpush1.msra.mxu0 0.0
        %2516 = vmatprep.subr.mxu0 0.0
        %2517 = vmatpush1.msra.mxu0 0.0
        %2518 = vmatprep.subr.mxu0 0.0
        %2519 = vmatpush1.msra.mxu0 0.0
        %2520 = vmatprep.subr.mxu0 0.0
        %2521 = vmatpush1.msra.mxu0 0.0
        %2522 = vmatprep.subr.mxu0 0.0
        %2523 = vmatpush1.msra.mxu0 0.0
        %2524 = vmatprep.subr.mxu0 0.0
        %2525 = vmatpush1.msra.mxu0 0.0
        %2526 = vmatprep.subr.mxu0 0.0
        %2527 = vmatpush1.msra.mxu0 0.0
        %2528 = vmatprep.subr.mxu0 0.0
        %2529 = vmatpush1.msra.mxu0 0.0
        %2530 = vmatprep.subr.mxu0 0.0
        %2531 = vmatpush1.msra.mxu0 0.0
        %2532 = vmatprep.subr.mxu0 0.0
        %2533 = vmatpush1.msra.mxu0 0.0
        %2534 = vmatprep.subr.mxu0 0.0
        %2535 = vmatpush1.msra.mxu0 0.0
        %2536 = vmatprep.subr.mxu0 0.0
        %2537 = vmatpush1.msra.mxu0 0.0
        %2538 = vmatprep.subr.mxu0 0.0
        %2539 = vmatpush1.msra.mxu0 0.0
        %2540 = vmatprep.subr.mxu0 0.0
        %2541 = vmatpush1.msra.mxu0 0.0
        %2542 = vmatprep.subr.mxu0 0.0
        %2543 = vmatpush1.msra.mxu0 0.0
        %2544 = vmatprep.subr.mxu0 0.0
        %2545 = vmatpush1.msra.mxu0 0.0
        %2546 = vmatprep.subr.mxu0 0.0
        %2547 = vmatpush1.msra.mxu0 0.0
        %2548 = vmatprep.subr.mxu0 0.0
        %2549 = vmatpush1.msra.mxu0 0.0
        %2550 = vmatprep.subr.mxu0 0.0
        %2551 = vmatpush1.msra.mxu0 0.0
        %2552 = vmatprep.subr.mxu0 0.0
        %2553 = vmatpush1.msra.mxu0 0.0
        %2554 = vmatprep.subr.mxu0 0.0
        %2555 = vmatpush1.msra.mxu0 0.0
        %2556 = vmatprep.mubr.f32.mxu0 0.0
        %2557 = vmatmul.mubr.f32.gmra.mrb[0].mxu0 %v2490
        %v2558 = vpop.f32.mrb[0].mxu0
        %v2559 = vadd.f32 0.0, %v2558
        %v2560 = vpop.f32.mrb[0].mxu0
        %2561 = vdwg.mxu0
        %2562 = vxpose.xlu0.b32.start [1/16] %v2014, 128
        %2563 = vxpose.xlu0.b32.cont [2/16] %v2015, 128
        %2564 = vxpose.xlu0.b32.cont [3/16] 0.0, 128
        %2565 = vxpose.xlu0.b32.cont [4/16] 0.0, 128
        %2566 = vxpose.xlu0.b32.cont [5/16] 0.0, 128
        %2567 = vxpose.xlu0.b32.cont [6/16] 0.0, 128
        %2568 = vxpose.xlu0.b32.cont [7/16] 0.0, 128
        %2569 = vxpose.xlu0.b32.cont [8/16] 0.0, 128
        %2570 = vxpose.xlu0.b32.cont [9/16] 0.0, 128
        %2571 = vxpose.xlu0.b32.cont [10/16] 0.0, 128
        %2572 = vxpose.xlu0.b32.cont [11/16] 0.0, 128
        %2573 = vxpose.xlu0.b32.cont [12/16] 0.0, 128
        %2574 = vxpose.xlu0.b32.cont [13/16] 0.0, 128
        %2575 = vxpose.xlu0.b32.cont [14/16] 0.0, 128
        %2576 = vxpose.xlu0.b32.cont [15/16] 0.0, 128
        %2577 = vxpose.xlu0.b32.end [16/16] 0.0, 128
        %v2578 = vpop.trf.xlu0
        %v2579 = vpop.trf.xlu0
        %v2580 = vpop.trf.xlu0
        %v2581 = vpop.trf.xlu0
        %v2582 = vpop.trf.xlu0
        %v2583 = vpop.trf.xlu0
        %v2584 = vpop.trf.xlu0
        %v2585 = vpop.trf.xlu0
        %v2586 = vpop.trf.xlu0
        %v2587 = vpop.trf.xlu0
        %v2588 = vpop.trf.xlu0
        %v2589 = vpop.trf.xlu0
        %v2590 = vpop.trf.xlu0
        %v2591 = vpop.trf.xlu0
        %v2592 = vpop.trf.xlu0
        %v2593 = vpop.trf.xlu0
        %v2595 = vsel %vm2068, %v2578, 0
        %2597 = vmatprep.subr.mxu0 0.0
        %2598 = vmatpush1.msra.mxu0 %v2030
        %2599 = vmatprep.subr.mxu0 0.0
        %2600 = vmatpush1.msra.mxu0 %v2031
        %2601 = vmatprep.subr.mxu0 0.0
        %2602 = vmatpush1.msra.mxu0 0.0
        %2603 = vmatprep.subr.mxu0 0.0
        %2604 = vmatpush1.msra.mxu0 0.0
        %2605 = vmatprep.subr.mxu0 0.0
        %2606 = vmatpush1.msra.mxu0 0.0
        %2607 = vmatprep.subr.mxu0 0.0
        %2608 = vmatpush1.msra.mxu0 0.0
        %2609 = vmatprep.subr.mxu0 0.0
        %2610 = vmatpush1.msra.mxu0 0.0
        %2611 = vmatprep.subr.mxu0 0.0
        %2612 = vmatpush1.msra.mxu0 0.0
        %2613 = vmatprep.subr.mxu0 0.0
        %2614 = vmatpush1.msra.mxu0 0.0
        %2615 = vmatprep.subr.mxu0 0.0
        %2616 = vmatpush1.msra.mxu0 0.0
        %2617 = vmatprep.subr.mxu0 0.0
        %2618 = vmatpush1.msra.mxu0 0.0
        %2619 = vmatprep.subr.mxu0 0.0
        %2620 = vmatpush1.msra.mxu0 0.0
        %2621 = vmatprep.subr.mxu0 0.0
        %2622 = vmatpush1.msra.mxu0 0.0
        %2623 = vmatprep.subr.mxu0 0.0
        %2624 = vmatpush1.msra.mxu0 0.0
        %2625 = vmatprep.subr.mxu0 0.0
        %2626 = vmatpush1.msra.mxu0 0.0
        %2627 = vmatprep.subr.mxu0 0.0
        %2628 = vmatpush1.msra.mxu0 0.0
        %2629 = vmatprep.subr.mxu0 0.0
        %2630 = vmatpush1.msra.mxu0 0.0
        %2631 = vmatprep.subr.mxu0 0.0
        %2632 = vmatpush1.msra.mxu0 0.0
        %2633 = vmatprep.subr.mxu0 0.0
        %2634 = vmatpush1.msra.mxu0 0.0
        %2635 = vmatprep.subr.mxu0 0.0
        %2636 = vmatpush1.msra.mxu0 0.0
        %2637 = vmatprep.subr.mxu0 0.0
        %2638 = vmatpush1.msra.mxu0 0.0
        %2639 = vmatprep.subr.mxu0 0.0
        %2640 = vmatpush1.msra.mxu0 0.0
        %2641 = vmatprep.subr.mxu0 0.0
        %2642 = vmatpush1.msra.mxu0 0.0
        %2643 = vmatprep.subr.mxu0 0.0
        %2644 = vmatpush1.msra.mxu0 0.0
        %2645 = vmatprep.subr.mxu0 0.0
        %2646 = vmatpush1.msra.mxu0 0.0
        %2647 = vmatprep.subr.mxu0 0.0
        %2648 = vmatpush1.msra.mxu0 0.0
        %2649 = vmatprep.subr.mxu0 0.0
        %2650 = vmatpush1.msra.mxu0 0.0
        %2651 = vmatprep.subr.mxu0 0.0
        %2652 = vmatpush1.msra.mxu0 0.0
        %2653 = vmatprep.subr.mxu0 0.0
        %2654 = vmatpush1.msra.mxu0 0.0
        %2655 = vmatprep.subr.mxu0 0.0
        %2656 = vmatpush1.msra.mxu0 0.0
        %2657 = vmatprep.subr.mxu0 0.0
        %2658 = vmatpush1.msra.mxu0 0.0
        %2659 = vmatprep.subr.mxu0 0.0
        %2660 = vmatpush1.msra.mxu0 0.0
        %2661 = vmatprep.mubr.f32.mxu0 0.0
        %2662 = vmatmul.mubr.f32.gmra.mrb[0].mxu0 %v2595
        %v2663 = vpop.f32.mrb[0].mxu0
        %v2664 = vadd.f32 0.0, %v2663
        %v2665 = vpop.f32.mrb[0].mxu0
        %2666 = vdwg.mxu0
        %2667 = vxpose.xlu0.b32.start [1/16] %v2016, 128
        %2668 = vxpose.xlu0.b32.cont [2/16] %v2017, 128
        %2669 = vxpose.xlu0.b32.cont [3/16] 0.0, 128
        %2670 = vxpose.xlu0.b32.cont [4/16] 0.0, 128
        %2671 = vxpose.xlu0.b32.cont [5/16] 0.0, 128
        %2672 = vxpose.xlu0.b32.cont [6/16] 0.0, 128
        %2673 = vxpose.xlu0.b32.cont [7/16] 0.0, 128
        %2674 = vxpose.xlu0.b32.cont [8/16] 0.0, 128
        %2675 = vxpose.xlu0.b32.cont [9/16] 0.0, 128
        %2676 = vxpose.xlu0.b32.cont [10/16] 0.0, 128
        %2677 = vxpose.xlu0.b32.cont [11/16] 0.0, 128
        %2678 = vxpose.xlu0.b32.cont [12/16] 0.0, 128
        %2679 = vxpose.xlu0.b32.cont [13/16] 0.0, 128
        %2680 = vxpose.xlu0.b32.cont [14/16] 0.0, 128
        %2681 = vxpose.xlu0.b32.cont [15/16] 0.0, 128
        %2682 = vxpose.xlu0.b32.end [16/16] 0.0, 128
        %v2683 = vpop.trf.xlu0
        %v2684 = vpop.trf.xlu0
        %v2685 = vpop.trf.xlu0
        %v2686 = vpop.trf.xlu0
        %v2687 = vpop.trf.xlu0
        %v2688 = vpop.trf.xlu0
        %v2689 = vpop.trf.xlu0
        %v2690 = vpop.trf.xlu0
        %v2691 = vpop.trf.xlu0
        %v2692 = vpop.trf.xlu0
        %v2693 = vpop.trf.xlu0
        %v2694 = vpop.trf.xlu0
        %v2695 = vpop.trf.xlu0
        %v2696 = vpop.trf.xlu0
        %v2697 = vpop.trf.xlu0
        %v2698 = vpop.trf.xlu0
        %v2700 = vsel %vm2068, %v2683, 0
        %2702 = vmatprep.subr.mxu0 0.0
        %2703 = vmatpush1.msra.mxu0 %v2032
        %2704 = vmatprep.subr.mxu0 0.0
        %2705 = vmatpush1.msra.mxu0 %v2033
        %2706 = vmatprep.subr.mxu0 0.0
        %2707 = vmatpush1.msra.mxu0 0.0
        %2708 = vmatprep.subr.mxu0 0.0
        %2709 = vmatpush1.msra.mxu0 0.0
        %2710 = vmatprep.subr.mxu0 0.0
        %2711 = vmatpush1.msra.mxu0 0.0
        %2712 = vmatprep.subr.mxu0 0.0
        %2713 = vmatpush1.msra.mxu0 0.0
        %2714 = vmatprep.subr.mxu0 0.0
        %2715 = vmatpush1.msra.mxu0 0.0
        %2716 = vmatprep.subr.mxu0 0.0
        %2717 = vmatpush1.msra.mxu0 0.0
        %2718 = vmatprep.subr.mxu0 0.0
        %2719 = vmatpush1.msra.mxu0 0.0
        %2720 = vmatprep.subr.mxu0 0.0
        %2721 = vmatpush1.msra.mxu0 0.0
        %2722 = vmatprep.subr.mxu0 0.0
        %2723 = vmatpush1.msra.mxu0 0.0
        %2724 = vmatprep.subr.mxu0 0.0
        %2725 = vmatpush1.msra.mxu0 0.0
        %2726 = vmatprep.subr.mxu0 0.0
        %2727 = vmatpush1.msra.mxu0 0.0
        %2728 = vmatprep.subr.mxu0 0.0
        %2729 = vmatpush1.msra.mxu0 0.0
        %2730 = vmatprep.subr.mxu0 0.0
        %2731 = vmatpush1.msra.mxu0 0.0
        %2732 = vmatprep.subr.mxu0 0.0
        %2733 = vmatpush1.msra.mxu0 0.0
        %2734 = vmatprep.subr.mxu0 0.0
        %2735 = vmatpush1.msra.mxu0 0.0
        %2736 = vmatprep.subr.mxu0 0.0
        %2737 = vmatpush1.msra.mxu0 0.0
        %2738 = vmatprep.subr.mxu0 0.0
        %2739 = vmatpush1.msra.mxu0 0.0
        %2740 = vmatprep.subr.mxu0 0.0
        %2741 = vmatpush1.msra.mxu0 0.0
        %2742 = vmatprep.subr.mxu0 0.0
        %2743 = vmatpush1.msra.mxu0 0.0
        %2744 = vmatprep.subr.mxu0 0.0
        %2745 = vmatpush1.msra.mxu0 0.0
        %2746 = vmatprep.subr.mxu0 0.0
        %2747 = vmatpush1.msra.mxu0 0.0
        %2748 = vmatprep.subr.mxu0 0.0
        %2749 = vmatpush1.msra.mxu0 0.0
        %2750 = vmatprep.subr.mxu0 0.0
        %2751 = vmatpush1.msra.mxu0 0.0
        %2752 = vmatprep.subr.mxu0 0.0
        %2753 = vmatpush1.msra.mxu0 0.0
        %2754 = vmatprep.subr.mxu0 0.0
        %2755 = vmatpush1.msra.mxu0 0.0
        %2756 = vmatprep.subr.mxu0 0.0
        %2757 = vmatpush1.msra.mxu0 0.0
        %2758 = vmatprep.subr.mxu0 0.0
        %2759 = vmatpush1.msra.mxu0 0.0
        %2760 = vmatprep.subr.mxu0 0.0
        %2761 = vmatpush1.msra.mxu0 0.0
        %2762 = vmatprep.subr.mxu0 0.0
        %2763 = vmatpush1.msra.mxu0 0.0
        %2764 = vmatprep.subr.mxu0 0.0
        %2765 = vmatpush1.msra.mxu0 0.0
        %2766 = vmatprep.mubr.f32.mxu0 0.0
        %2767 = vmatmul.mubr.f32.gmra.mrb[0].mxu0 %v2700
        %v2768 = vpop.f32.mrb[0].mxu0
        %v2769 = vadd.f32 0.0, %v2768
        %v2770 = vpop.f32.mrb[0].mxu0
        %2771 = vdwg.mxu0
        %2772 = vxpose.xlu0.b32.start [1/16] %v2018, 128
        %2773 = vxpose.xlu0.b32.cont [2/16] %v2019, 128
        %2774 = vxpose.xlu0.b32.cont [3/16] 0.0, 128
        %2775 = vxpose.xlu0.b32.cont [4/16] 0.0, 128
        %2776 = vxpose.xlu0.b32.cont [5/16] 0.0, 128
        %2777 = vxpose.xlu0.b32.cont [6/16] 0.0, 128
        %2778 = vxpose.xlu0.b32.cont [7/16] 0.0, 128
        %2779 = vxpose.xlu0.b32.cont [8/16] 0.0, 128
        %2780 = vxpose.xlu0.b32.cont [9/16] 0.0, 128
        %2781 = vxpose.xlu0.b32.cont [10/16] 0.0, 128
        %2782 = vxpose.xlu0.b32.cont [11/16] 0.0, 128
        %2783 = vxpose.xlu0.b32.cont [12/16] 0.0, 128
        %2784 = vxpose.xlu0.b32.cont [13/16] 0.0, 128
        %2785 = vxpose.xlu0.b32.cont [14/16] 0.0, 128
        %2786 = vxpose.xlu0.b32.cont [15/16] 0.0, 128
        %2787 = vxpose.xlu0.b32.end [16/16] 0.0, 128
        %v2788 = vpop.trf.xlu0
        %v2789 = vpop.trf.xlu0
        %v2790 = vpop.trf.xlu0
        %v2791 = vpop.trf.xlu0
        %v2792 = vpop.trf.xlu0
        %v2793 = vpop.trf.xlu0
        %v2794 = vpop.trf.xlu0
        %v2795 = vpop.trf.xlu0
        %v2796 = vpop.trf.xlu0
        %v2797 = vpop.trf.xlu0
        %v2798 = vpop.trf.xlu0
        %v2799 = vpop.trf.xlu0
        %v2800 = vpop.trf.xlu0
        %v2801 = vpop.trf.xlu0
        %v2802 = vpop.trf.xlu0
        %v2803 = vpop.trf.xlu0
        %v2805 = vsel %vm2068, %v2788, 0
        %2807 = vmatprep.subr.mxu0 0.0
        %2808 = vmatpush1.msra.mxu0 %v2034
        %2809 = vmatprep.subr.mxu0 0.0
        %2810 = vmatpush1.msra.mxu0 %v2035
        %2811 = vmatprep.subr.mxu0 0.0
        %2812 = vmatpush1.msra.mxu0 0.0
        %2813 = vmatprep.subr.mxu0 0.0
        %2814 = vmatpush1.msra.mxu0 0.0
        %2815 = vmatprep.subr.mxu0 0.0
        %2816 = vmatpush1.msra.mxu0 0.0
        %2817 = vmatprep.subr.mxu0 0.0
        %2818 = vmatpush1.msra.mxu0 0.0
        %2819 = vmatprep.subr.mxu0 0.0
        %2820 = vmatpush1.msra.mxu0 0.0
        %2821 = vmatprep.subr.mxu0 0.0
        %2822 = vmatpush1.msra.mxu0 0.0
        %2823 = vmatprep.subr.mxu0 0.0
        %2824 = vmatpush1.msra.mxu0 0.0
        %2825 = vmatprep.subr.mxu0 0.0
        %2826 = vmatpush1.msra.mxu0 0.0
        %2827 = vmatprep.subr.mxu0 0.0
        %2828 = vmatpush1.msra.mxu0 0.0
        %2829 = vmatprep.subr.mxu0 0.0
        %2830 = vmatpush1.msra.mxu0 0.0
        %2831 = vmatprep.subr.mxu0 0.0
        %2832 = vmatpush1.msra.mxu0 0.0
        %2833 = vmatprep.subr.mxu0 0.0
        %2834 = vmatpush1.msra.mxu0 0.0
        %2835 = vmatprep.subr.mxu0 0.0
        %2836 = vmatpush1.msra.mxu0 0.0
        %2837 = vmatprep.subr.mxu0 0.0
        %2838 = vmatpush1.msra.mxu0 0.0
        %2839 = vmatprep.subr.mxu0 0.0
        %2840 = vmatpush1.msra.mxu0 0.0
        %2841 = vmatprep.subr.mxu0 0.0
        %2842 = vmatpush1.msra.mxu0 0.0
        %2843 = vmatprep.subr.mxu0 0.0
        %2844 = vmatpush1.msra.mxu0 0.0
        %2845 = vmatprep.subr.mxu0 0.0
        %2846 = vmatpush1.msra.mxu0 0.0
        %2847 = vmatprep.subr.mxu0 0.0
        %2848 = vmatpush1.msra.mxu0 0.0
        %2849 = vmatprep.subr.mxu0 0.0
        %2850 = vmatpush1.msra.mxu0 0.0
        %2851 = vmatprep.subr.mxu0 0.0
        %2852 = vmatpush1.msra.mxu0 0.0
        %2853 = vmatprep.subr.mxu0 0.0
        %2854 = vmatpush1.msra.mxu0 0.0
        %2855 = vmatprep.subr.mxu0 0.0
        %2856 = vmatpush1.msra.mxu0 0.0
        %2857 = vmatprep.subr.mxu0 0.0
        %2858 = vmatpush1.msra.mxu0 0.0
        %2859 = vmatprep.subr.mxu0 0.0
        %2860 = vmatpush1.msra.mxu0 0.0
        %2861 = vmatprep.subr.mxu0 0.0
        %2862 = vmatpush1.msra.mxu0 0.0
        %2863 = vmatprep.subr.mxu0 0.0
        %2864 = vmatpush1.msra.mxu0 0.0
        %2865 = vmatprep.subr.mxu0 0.0
        %2866 = vmatpush1.msra.mxu0 0.0
        %2867 = vmatprep.subr.mxu0 0.0
        %2868 = vmatpush1.msra.mxu0 0.0
        %2869 = vmatprep.subr.mxu0 0.0
        %2870 = vmatpush1.msra.mxu0 0.0
        %2871 = vmatprep.mubr.f32.mxu0 0.0
        %2872 = vmatmul.mubr.f32.gmra.mrb[0].mxu0 %v2805
        %v2873 = vpop.f32.mrb[0].mxu0
        %v2874 = vadd.f32 0.0, %v2873
        %v2875 = vpop.f32.mrb[0].mxu0
        %2876 = vdwg.mxu0
        %v2877 = vld [vmem:[#allocation34] sm:$0xf]
        %v2878 = vmul.f32 %v2139, %v2877
        %v2879 = vmul.f32 %v2244, %v2877
        %v2880 = vmul.f32 %v2349, %v2877
        %v2881 = vmul.f32 %v2454, %v2877
        %v2882 = vmul.f32 %v2559, %v2877
        %v2883 = vmul.f32 %v2664, %v2877
        %v2884 = vmul.f32 %v2769, %v2877
        %v2885 = vmul.f32 %v2874, %v2877
        %vm2886 = vcmask 1043456
        %v2887 = vsel %vm2886, %v2878, 0.0
        %v2888 = vrot.slane %v2887, 4
        %v2889 = vadd.f32 %v2887, %v2888
        %v2890 = vrot.slane %v2889, 2
        %v2891 = vadd.f32 %v2889, %v2890
        %v2892 = vrot.slane %v2891, 1
        %v2893 = vadd.f32 %v2891, %v2892
        %v2894 = vsel %vm2886, %v2879, 0.0
        %v2895 = vrot.slane %v2894, 4
        %v2896 = vadd.f32 %v2894, %v2895
        %v2897 = vrot.slane %v2896, 2
        %v2898 = vadd.f32 %v2896, %v2897
        %v2899 = vrot.slane %v2898, 1
        %v2900 = vadd.f32 %v2898, %v2899
        %v2901 = vsel %vm2886, %v2880, 0.0
        %v2902 = vrot.slane %v2901, 4
        %v2903 = vadd.f32 %v2901, %v2902
        %v2904 = vrot.slane %v2903, 2
        %v2905 = vadd.f32 %v2903, %v2904
        %v2906 = vrot.slane %v2905, 1
        %v2907 = vadd.f32 %v2905, %v2906
        %v2908 = vsel %vm2886, %v2881, 0.0
        %v2909 = vrot.slane %v2908, 4
        %v2910 = vadd.f32 %v2908, %v2909
        %v2911 = vrot.slane %v2910, 2
        %v2912 = vadd.f32 %v2910, %v2911
        %v2913 = vrot.slane %v2912, 1
        %v2914 = vadd.f32 %v2912, %v2913
        %v2915 = vsel %vm2886, %v2882, 0.0
        %v2916 = vrot.slane %v2915, 4
        %v2917 = vadd.f32 %v2915, %v2916
        %v2918 = vrot.slane %v2917, 2
        %v2919 = vadd.f32 %v2917, %v2918
        %v2920 = vrot.slane %v2919, 1
        %v2921 = vadd.f32 %v2919, %v2920
        %v2922 = vsel %vm2886, %v2883, 0.0
        %v2923 = vrot.slane %v2922, 4
        %v2924 = vadd.f32 %v2922, %v2923
        %v2925 = vrot.slane %v2924, 2
        %v2926 = vadd.f32 %v2924, %v2925
        %v2927 = vrot.slane %v2926, 1
        %v2928 = vadd.f32 %v2926, %v2927
        %v2929 = vsel %vm2886, %v2884, 0.0
        %v2930 = vrot.slane %v2929, 4
        %v2931 = vadd.f32 %v2929, %v2930
        %v2932 = vrot.slane %v2931, 2
        %v2933 = vadd.f32 %v2931, %v2932
        %v2934 = vrot.slane %v2933, 1
        %v2935 = vadd.f32 %v2933, %v2934
        %v2936 = vsel %vm2886, %v2885, 0.0
        %v2937 = vrot.slane %v2936, 4
        %v2938 = vadd.f32 %v2936, %v2937
        %v2939 = vrot.slane %v2938, 2
        %v2940 = vadd.f32 %v2938, %v2939
        %v2941 = vrot.slane %v2940, 1
        %v2942 = vadd.f32 %v2940, %v2941
        %v2943 = vld [vmem:[#allocation18] sm:$0xff]
        %v2944 = vld [vmem:[#allocation18 + $0x8] sm:$0xff]
        %v2945 = vld [vmem:[#allocation18 + $0x10] sm:$0xff]
        %v2946 = vld [vmem:[#allocation18 + $0x18] sm:$0xff]
        %v2947 = vld [vmem:[#allocation18 + $0x20] sm:$0xff]
        %v2948 = vld [vmem:[#allocation18 + $0x28] sm:$0xff]
        %v2949 = vld [vmem:[#allocation18 + $0x30] sm:$0xff]
        %v2950 = vld [vmem:[#allocation18 + $0x38] sm:$0xff]
        %v2951 = vld [vmem:[#allocation18 + $0x40] sm:$0xff]
        %v2952 = vld [vmem:[#allocation18 + $0x48] sm:$0xff]
        %v2953 = vld [vmem:[#allocation18 + $0x50] sm:$0xff]
        %v2954 = vld [vmem:[#allocation18 + $0x58] sm:$0xff]
        %v2955 = vld [vmem:[#allocation18 + $0x60] sm:$0xff]
        %v2956 = vld [vmem:[#allocation18 + $0x68] sm:$0xff]
        %v2957 = vld [vmem:[#allocation18 + $0x70] sm:$0xff]
        %v2958 = vld [vmem:[#allocation18 + $0x78] sm:$0xff]
        %2959 = vmatprep.subr.mxu0 0.0
        %2960 = vmatpush1.msra.mxu0 %v2943
        %2961 = vmatprep.subr.mxu0 0.0
        %2962 = vmatpush1.msra.mxu0 %v2944
        %2963 = vmatprep.subr.mxu0 0.0
        %2964 = vmatpush1.msra.mxu0 %v2945
        %2965 = vmatprep.subr.mxu0 0.0
        %2966 = vmatpush1.msra.mxu0 %v2946
        %2967 = vmatprep.subr.mxu0 0.0
        %2968 = vmatpush1.msra.mxu0 %v2947
        %2969 = vmatprep.subr.mxu0 0.0
        %2970 = vmatpush1.msra.mxu0 %v2948
        %2971 = vmatprep.subr.mxu0 0.0
        %2972 = vmatpush1.msra.mxu0 %v2949
        %2973 = vmatprep.subr.mxu0 0.0
        %2974 = vmatpush1.msra.mxu0 %v2950
        %2975 = vmatprep.subr.mxu0 0.0
        %2976 = vmatpush1.msra.mxu0 %v2951
        %2977 = vmatprep.subr.mxu0 0.0
        %2978 = vmatpush1.msra.mxu0 %v2952
        %2979 = vmatprep.subr.mxu0 0.0
        %2980 = vmatpush1.msra.mxu0 %v2953
        %2981 = vmatprep.subr.mxu0 0.0
        %2982 = vmatpush1.msra.mxu0 %v2954
        %2983 = vmatprep.subr.mxu0 0.0
        %2984 = vmatpush1.msra.mxu0 %v2955
        %2985 = vmatprep.subr.mxu0 0.0
        %2986 = vmatpush1.msra.mxu0 %v2956
        %2987 = vmatprep.subr.mxu0 0.0
        %2988 = vmatpush1.msra.mxu0 %v2957
        %2989 = vmatprep.subr.mxu0 0.0
        %2990 = vmatpush1.msra.mxu0 %v2958
        %2991 = vmatprep.subr.mxu0 0.0
        %2992 = vmatpush1.msra.mxu0 0.0
        %2993 = vmatprep.subr.mxu0 0.0
        %2994 = vmatpush1.msra.mxu0 0.0
        %2995 = vmatprep.subr.mxu0 0.0
        %2996 = vmatpush1.msra.mxu0 0.0
        %2997 = vmatprep.subr.mxu0 0.0
        %2998 = vmatpush1.msra.mxu0 0.0
        %2999 = vmatprep.subr.mxu0 0.0
        %3000 = vmatpush1.msra.mxu0 0.0
        %3001 = vmatprep.subr.mxu0 0.0
        %3002 = vmatpush1.msra.mxu0 0.0
        %3003 = vmatprep.subr.mxu0 0.0
        %3004 = vmatpush1.msra.mxu0 0.0
        %3005 = vmatprep.subr.mxu0 0.0
        %3006 = vmatpush1.msra.mxu0 0.0
        %3007 = vmatprep.subr.mxu0 0.0
        %3008 = vmatpush1.msra.mxu0 0.0
        %3009 = vmatprep.subr.mxu0 0.0
        %3010 = vmatpush1.msra.mxu0 0.0
        %3011 = vmatprep.subr.mxu0 0.0
        %3012 = vmatpush1.msra.mxu0 0.0
        %3013 = vmatprep.subr.mxu0 0.0
        %3014 = vmatpush1.msra.mxu0 0.0
        %3015 = vmatprep.subr.mxu0 0.0
        %3016 = vmatpush1.msra.mxu0 0.0
        %3017 = vmatprep.subr.mxu0 0.0
        %3018 = vmatpush1.msra.mxu0 0.0
        %3019 = vmatprep.subr.mxu0 0.0
        %3020 = vmatpush1.msra.mxu0 0.0
        %3021 = vmatprep.subr.mxu0 0.0
        %3022 = vmatpush1.msra.mxu0 0.0
        %3023 = vmatprep.mubr.f32.mxu0 0.0
        %3024 = vmatmul.mubr.f32.gmra.mrb[0].mxu0 %v1026
        %v3025 = vpop.f32.mrb[0].mxu0
        %v3026 = vadd.f32 0.0, %v3025
        %v3027 = vpop.f32.mrb[0].mxu0
        %3028 = vdwg.mxu0
        %v3030 = vrot.slane %v3026, 1
        %v3031 = vrot.slane %v3026, 2
        %v3032 = vrot.slane %v3026, 3
        %v3033 = vrot.slane %v3026, 4
        %v3034 = vrot.slane %v3026, 5
        %v3035 = vrot.slane %v3026, 6
        %v3036 = vrot.slane %v3026, 7
        %v3045 = vadd.f32 %v2893, %v3026
        %v3046 = vadd.f32 %v2900, %v3030
        %v3047 = vadd.f32 %v2907, %v3031
        %v3048 = vadd.f32 %v2914, %v3032
        %v3049 = vadd.f32 %v2921, %v3033
        %v3050 = vadd.f32 %v2928, %v3034
        %v3051 = vadd.f32 %v2935, %v3035
        %v3052 = vadd.f32 %v2942, %v3036
        %v3053 = vld [vmem:[#allocation19] sm:$0x1]
        %v3055 = vlaneseq
        %v3056 = vshrl.u32 %v3055, 7
        %v3057 = vsub.s32 0, %v3056
        %v3058 = vrot.slane %v3053, %v3057
        %v3060 = vadd.f32 %v3045, %v3058
        %v3061 = vadd.f32 %v3046, %v3058
        %v3062 = vadd.f32 %v3047, %v3058
        %v3063 = vadd.f32 %v3048, %v3058
        %v3064 = vadd.f32 %v3049, %v3058
        %v3065 = vadd.f32 %v3050, %v3058
        %v3066 = vadd.f32 %v3051, %v3058
        %v3067 = vadd.f32 %v3052, %v3058
        %v3068 = vld [vmem:[#allocation21] sm:$0x1]
        %v3069 = vld [vmem:[#allocation22] sm:$0x1]
        %v3078 = vrot.slane %v3061, 7
        %vm3079 = vcmask 1041409
        %v3080 = vsel %vm3079, %v3078, %v3060
        %v3081 = vrot.slane %v3062, 6
        %vm3082 = vcmask 1042434
        %v3083 = vsel %vm3082, %v3081, %v3080
        %v3084 = vrot.slane %v3063, 5
        %vm3085 = vcmask 1043459
        %v3086 = vsel %vm3085, %v3084, %v3083
        %v3087 = vrot.slane %v3064, 4
        %vm3088 = vcmask 1044484
        %v3089 = vsel %vm3088, %v3087, %v3086
        %v3090 = vrot.slane %v3065, 3
        %vm3091 = vcmask 1045509
        %v3092 = vsel %vm3091, %v3090, %v3089
        %v3093 = vrot.slane %v3066, 2
        %vm3094 = vcmask 1046534
        %v3095 = vsel %vm3094, %v3093, %v3092
        %v3096 = vrot.slane %v3067, 1
        %vm3097 = vcmask 1047559
        %v3098 = vsel %vm3097, %v3096, %v3095
        %3100 = vadd.xlane.f32.xlu0 %v3098
        %v3101 = vpop.xlane.xlu0 %3100
        %v3102 = vrcp.pop 128.0
        %v3103 = vmul.f32 %v3101, %v3102
        %v3105 = vrot.slane %v3103, 1
        %v3106 = vrot.slane %v3103, 2
        %v3107 = vrot.slane %v3103, 3
        %v3108 = vrot.slane %v3103, 4
        %v3109 = vrot.slane %v3103, 5
        %v3110 = vrot.slane %v3103, 6
        %v3111 = vrot.slane %v3103, 7
        %v3120 = vsub.f32 %v3060, %v3103
        %v3121 = vsub.f32 %v3061, %v3105
        %v3122 = vsub.f32 %v3062, %v3106
        %v3123 = vsub.f32 %v3063, %v3107
        %v3124 = vsub.f32 %v3064, %v3108
        %v3125 = vsub.f32 %v3065, %v3109
        %v3126 = vsub.f32 %v3066, %v3110
        %v3127 = vsub.f32 %v3067, %v3111
        %v3128 = vmul.f32 %v3120, %v3120
        %v3129 = vmul.f32 %v3121, %v3121
        %v3130 = vmul.f32 %v3122, %v3122
        %v3131 = vmul.f32 %v3123, %v3123
        %v3132 = vmul.f32 %v3124, %v3124
        %v3133 = vmul.f32 %v3125, %v3125
        %v3134 = vmul.f32 %v3126, %v3126
        %v3135 = vmul.f32 %v3127, %v3127
        %v3144 = vrot.slane %v3129, 7
        %v3145 = vsel %vm3079, %v3144, %v3128
        %v3146 = vrot.slane %v3130, 6
        %v3147 = vsel %vm3082, %v3146, %v3145
        %v3148 = vrot.slane %v3131, 5
        %v3149 = vsel %vm3085, %v3148, %v3147
        %v3150 = vrot.slane %v3132, 4
        %v3151 = vsel %vm3088, %v3150, %v3149
        %v3152 = vrot.slane %v3133, 3
        %v3153 = vsel %vm3091, %v3152, %v3151
        %v3154 = vrot.slane %v3134, 2
        %v3155 = vsel %vm3094, %v3154, %v3153
        %v3156 = vrot.slane %v3135, 1
        %v3157 = vsel %vm3097, %v3156, %v3155
        %3159 = vadd.xlane.f32.xlu0 %v3157
        %v3160 = vpop.xlane.xlu0 %3159
        %v3161 = vmul.f32 %v3160, %v3102
        %v3162 = vadd.f32 %v3161, 1e-05
        %v3163 = vrsqrt.pop %v3162
        %v3165 = vrot.slane %v3163, 1
        %v3166 = vrot.slane %v3163, 2
        %v3167 = vrot.slane %v3163, 3
        %v3168 = vrot.slane %v3163, 4
        %v3169 = vrot.slane %v3163, 5
        %v3170 = vrot.slane %v3163, 6
        %v3171 = vrot.slane %v3163, 7
        %v3180 = vmul.f32 %v3120, %v3163
        %v3181 = vmul.f32 %v3121, %v3165
        %v3182 = vmul.f32 %v3122, %v3166
        %v3183 = vmul.f32 %v3123, %v3167
        %v3184 = vmul.f32 %v3124, %v3168
        %v3185 = vmul.f32 %v3125, %v3169
        %v3186 = vmul.f32 %v3126, %v3170
        %v3187 = vmul.f32 %v3127, %v3171
        %v3189 = vlaneseq
        %v3190 = vshrl.u32 %v3189, 7
        %v3191 = vsub.s32 0, %v3190
        %v3192 = vrot.slane %v3068, %v3191
        %v3194 = vmul.f32 %v3180, %v3192
        %v3195 = vmul.f32 %v3181, %v3192
        %v3196 = vmul.f32 %v3182, %v3192
        %v3197 = vmul.f32 %v3183, %v3192
        %v3198 = vmul.f32 %v3184, %v3192
        %v3199 = vmul.f32 %v3185, %v3192
        %v3200 = vmul.f32 %v3186, %v3192
        %v3201 = vmul.f32 %v3187, %v3192
        %v3203 = vlaneseq
        %v3204 = vshrl.u32 %v3203, 7
        %v3205 = vsub.s32 0, %v3204
        %v3206 = vrot.slane %v3069, %v3205
        %v3208 = vadd.f32 %v3194, %v3206
        %v3209 = vadd.f32 %v3195, %v3206
        %v3210 = vadd.f32 %v3196, %v3206
        %v3211 = vadd.f32 %v3197, %v3206
        %v3212 = vadd.f32 %v3198, %v3206
        %v3213 = vadd.f32 %v3199, %v3206
        %v3214 = vadd.f32 %v3200, %v3206
        %v3215 = vadd.f32 %v3201, %v3206
        %v3224 = vrot.slane %v3209, 7
        %v3225 = vsel %vm3079, %v3224, %v3208
        %v3226 = vrot.slane %v3210, 6
        %v3227 = vsel %vm3082, %v3226, %v3225
        %v3228 = vrot.slane %v3211, 5
        %v3229 = vsel %vm3085, %v3228, %v3227
        %v3230 = vrot.slane %v3212, 4
        %v3231 = vsel %vm3088, %v3230, %v3229
        %v3232 = vrot.slane %v3213, 3
        %v3233 = vsel %vm3091, %v3232, %v3231
        %v3234 = vrot.slane %v3214, 2
        %v3235 = vsel %vm3094, %v3234, %v3233
        %v3236 = vrot.slane %v3215, 1
        %v3237 = vsel %vm3097, %v3236, %v3235
        %v3239 = vadd.f32 %v1026, %v3237
        %v3240 = vld [vmem:[#allocation24] sm:$0xff]
        %v3241 = vld [vmem:[#allocation24 + $0x8] sm:$0xff]
        %v3242 = vld [vmem:[#allocation24 + $0x10] sm:$0xff]
        %v3243 = vld [vmem:[#allocation24 + $0x18] sm:$0xff]
        %v3244 = vld [vmem:[#allocation24 + $0x20] sm:$0xff]
        %v3245 = vld [vmem:[#allocation24 + $0x28] sm:$0xff]
        %v3246 = vld [vmem:[#allocation24 + $0x30] sm:$0xff]
        %v3247 = vld [vmem:[#allocation24 + $0x38] sm:$0xff]
        %v3248 = vld [vmem:[#allocation24 + $0x40] sm:$0xff]
        %v3249 = vld [vmem:[#allocation24 + $0x48] sm:$0xff]
        %v3250 = vld [vmem:[#allocation24 + $0x50] sm:$0xff]
        %v3251 = vld [vmem:[#allocation24 + $0x58] sm:$0xff]
        %v3252 = vld [vmem:[#allocation24 + $0x60] sm:$0xff]
        %v3253 = vld [vmem:[#allocation24 + $0x68] sm:$0xff]
        %v3254 = vld [vmem:[#allocation24 + $0x70] sm:$0xff]
        %v3255 = vld [vmem:[#allocation24 + $0x78] sm:$0xff]
        %v3256 = vld [vmem:[#allocation25] sm:$0x1]
        %v3258 = vlaneseq
        %v3259 = vshrl.u32 %v3258, 7
        %v3260 = vsub.s32 0, %v3259
        %v3261 = vrot.slane %v3256, %v3260
        %3263 = vmatprep.subr.mxu0 0.0
        %3264 = vmatpush1.msra.mxu0 %v3240
        %3265 = vmatprep.subr.mxu0 0.0
        %3266 = vmatpush1.msra.mxu0 %v3241
        %3267 = vmatprep.subr.mxu0 0.0
        %3268 = vmatpush1.msra.mxu0 %v3242
        %3269 = vmatprep.subr.mxu0 0.0
        %3270 = vmatpush1.msra.mxu0 %v3243
        %3271 = vmatprep.subr.mxu0 0.0
        %3272 = vmatpush1.msra.mxu0 %v3244
        %3273 = vmatprep.subr.mxu0 0.0
        %3274 = vmatpush1.msra.mxu0 %v3245
        %3275 = vmatprep.subr.mxu0 0.0
        %3276 = vmatpush1.msra.mxu0 %v3246
        %3277 = vmatprep.subr.mxu0 0.0
        %3278 = vmatpush1.msra.mxu0 %v3247
        %3279 = vmatprep.subr.mxu0 0.0
        %3280 = vmatpush1.msra.mxu0 %v3248
        %3281 = vmatprep.subr.mxu0 0.0
        %3282 = vmatpush1.msra.mxu0 %v3249
        %3283 = vmatprep.subr.mxu0 0.0
        %3284 = vmatpush1.msra.mxu0 %v3250
        %3285 = vmatprep.subr.mxu0 0.0
        %3286 = vmatpush1.msra.mxu0 %v3251
        %3287 = vmatprep.subr.mxu0 0.0
        %3288 = vmatpush1.msra.mxu0 %v3252
        %3289 = vmatprep.subr.mxu0 0.0
        %3290 = vmatpush1.msra.mxu0 %v3253
        %3291 = vmatprep.subr.mxu0 0.0
        %3292 = vmatpush1.msra.mxu0 %v3254
        %3293 = vmatprep.subr.mxu0 0.0
        %3294 = vmatpush1.msra.mxu0 %v3255
        %3295 = vmatprep.subr.mxu0 0.0
        %3296 = vmatpush1.msra.mxu0 0.0
        %3297 = vmatprep.subr.mxu0 0.0
        %3298 = vmatpush1.msra.mxu0 0.0
        %3299 = vmatprep.subr.mxu0 0.0
        %3300 = vmatpush1.msra.mxu0 0.0
        %3301 = vmatprep.subr.mxu0 0.0
        %3302 = vmatpush1.msra.mxu0 0.0
        %3303 = vmatprep.subr.mxu0 0.0
        %3304 = vmatpush1.msra.mxu0 0.0
        %3305 = vmatprep.subr.mxu0 0.0
        %3306 = vmatpush1.msra.mxu0 0.0
        %3307 = vmatprep.subr.mxu0 0.0
        %3308 = vmatpush1.msra.mxu0 0.0
        %3309 = vmatprep.subr.mxu0 0.0
        %3310 = vmatpush1.msra.mxu0 0.0
        %3311 = vmatprep.subr.mxu0 0.0
        %3312 = vmatpush1.msra.mxu0 0.0
        %3313 = vmatprep.subr.mxu0 0.0
        %3314 = vmatpush1.msra.mxu0 0.0
        %3315 = vmatprep.subr.mxu0 0.0
        %3316 = vmatpush1.msra.mxu0 0.0
        %3317 = vmatprep.subr.mxu0 0.0
        %3318 = vmatpush1.msra.mxu0 0.0
        %3319 = vmatprep.subr.mxu0 0.0
        %3320 = vmatpush1.msra.mxu0 0.0
        %3321 = vmatprep.subr.mxu0 0.0
        %3322 = vmatpush1.msra.mxu0 0.0
        %3323 = vmatprep.subr.mxu0 0.0
        %3324 = vmatpush1.msra.mxu0 0.0
        %3325 = vmatprep.subr.mxu0 0.0
        %3326 = vmatpush1.msra.mxu0 0.0
        %3327 = vmatprep.mubr.f32.mxu0 0.0
        %3328 = vmatmul.mubr.f32.gmra.mrb[0].mxu0 %v3239
        %v3329 = vpop.f32.mrb[0].mxu0
        %v3330 = vadd.f32 %v3261, %v3329
        %v3331 = vpop.f32.mrb[0].mxu0
        %3332 = vdwg.mxu0
        %v3333 = vxor.u32 %v3330, 2147483648
        %v3334 = vmul.f32 %v3333, 1.442695
        %v3335 = vpow.pop %v3334
        %v3336 = vadd.f32 %v3335, 1.0
        %v3337 = vrcp.pop %v3336
        %v3338 = vmul.f32 1.0, %v3337
        %v3339 = vmul.f32 %v3330, %v3338
        %v3340 = vld [vmem:[#allocation27] sm:$0xff]
        %v3341 = vld [vmem:[#allocation27 + $0x8] sm:$0xff]
        %v3342 = vld [vmem:[#allocation27 + $0x10] sm:$0xff]
        %v3343 = vld [vmem:[#allocation27 + $0x18] sm:$0xff]
        %v3344 = vld [vmem:[#allocation27 + $0x20] sm:$0xff]
        %v3345 = vld [vmem:[#allocation27 + $0x28] sm:$0xff]
        %v3346 = vld [vmem:[#allocation27 + $0x30] sm:$0xff]
        %v3347 = vld [vmem:[#allocation27 + $0x38] sm:$0xff]
        %v3348 = vld [vmem:[#allocation27 + $0x40] sm:$0xff]
        %v3349 = vld [vmem:[#allocation27 + $0x48] sm:$0xff]
        %v3350 = vld [vmem:[#allocation27 + $0x50] sm:$0xff]
        %v3351 = vld [vmem:[#allocation27 + $0x58] sm:$0xff]
        %v3352 = vld [vmem:[#allocation27 + $0x60] sm:$0xff]
        %v3353 = vld [vmem:[#allocation27 + $0x68] sm:$0xff]
        %v3354 = vld [vmem:[#allocation27 + $0x70] sm:$0xff]
        %v3355 = vld [vmem:[#allocation27 + $0x78] sm:$0xff]
        %v3356 = vld [vmem:[#allocation28] sm:$0x1]
        %v3358 = vlaneseq
        %v3359 = vshrl.u32 %v3358, 7
        %v3360 = vsub.s32 0, %v3359
        %v3361 = vrot.slane %v3356, %v3360
        %3363 = vmatprep.subr.mxu0 0.0
        %3364 = vmatpush1.msra.mxu0 %v3340
        %3365 = vmatprep.subr.mxu0 0.0
        %3366 = vmatpush1.msra.mxu0 %v3341
        %3367 = vmatprep.subr.mxu0 0.0
        %3368 = vmatpush1.msra.mxu0 %v3342
        %3369 = vmatprep.subr.mxu0 0.0
        %3370 = vmatpush1.msra.mxu0 %v3343
        %3371 = vmatprep.subr.mxu0 0.0
        %3372 = vmatpush1.msra.mxu0 %v3344
        %3373 = vmatprep.subr.mxu0 0.0
        %3374 = vmatpush1.msra.mxu0 %v3345
        %3375 = vmatprep.subr.mxu0 0.0
        %3376 = vmatpush1.msra.mxu0 %v3346
        %3377 = vmatprep.subr.mxu0 0.0
        %3378 = vmatpush1.msra.mxu0 %v3347
        %3379 = vmatprep.subr.mxu0 0.0
        %3380 = vmatpush1.msra.mxu0 %v3348
        %3381 = vmatprep.subr.mxu0 0.0
        %3382 = vmatpush1.msra.mxu0 %v3349
        %3383 = vmatprep.subr.mxu0 0.0
        %3384 = vmatpush1.msra.mxu0 %v3350
        %3385 = vmatprep.subr.mxu0 0.0
        %3386 = vmatpush1.msra.mxu0 %v3351
        %3387 = vmatprep.subr.mxu0 0.0
        %3388 = vmatpush1.msra.mxu0 %v3352
        %3389 = vmatprep.subr.mxu0 0.0
        %3390 = vmatpush1.msra.mxu0 %v3353
        %3391 = vmatprep.subr.mxu0 0.0
        %3392 = vmatpush1.msra.mxu0 %v3354
        %3393 = vmatprep.subr.mxu0 0.0
        %3394 = vmatpush1.msra.mxu0 %v3355
        %3395 = vmatprep.subr.mxu0 0.0
        %3396 = vmatpush1.msra.mxu0 0.0
        %3397 = vmatprep.subr.mxu0 0.0
        %3398 = vmatpush1.msra.mxu0 0.0
        %3399 = vmatprep.subr.mxu0 0.0
        %3400 = vmatpush1.msra.mxu0 0.0
        %3401 = vmatprep.subr.mxu0 0.0
        %3402 = vmatpush1.msra.mxu0 0.0
        %3403 = vmatprep.subr.mxu0 0.0
        %3404 = vmatpush1.msra.mxu0 0.0
        %3405 = vmatprep.subr.mxu0 0.0
        %3406 = vmatpush1.msra.mxu0 0.0
        %3407 = vmatprep.subr.mxu0 0.0
        %3408 = vmatpush1.msra.mxu0 0.0
        %3409 = vmatprep.subr.mxu0 0.0
        %3410 = vmatpush1.msra.mxu0 0.0
        %3411 = vmatprep.subr.mxu0 0.0
        %3412 = vmatpush1.msra.mxu0 0.0
        %3413 = vmatprep.subr.mxu0 0.0
        %3414 = vmatpush1.msra.mxu0 0.0
        %3415 = vmatprep.subr.mxu0 0.0
        %3416 = vmatpush1.msra.mxu0 0.0
        %3417 = vmatprep.subr.mxu0 0.0
        %3418 = vmatpush1.msra.mxu0 0.0
        %3419 = vmatprep.subr.mxu0 0.0
        %3420 = vmatpush1.msra.mxu0 0.0
        %3421 = vmatprep.subr.mxu0 0.0
        %3422 = vmatpush1.msra.mxu0 0.0
        %3423 = vmatprep.subr.mxu0 0.0
        %3424 = vmatpush1.msra.mxu0 0.0
        %3425 = vmatprep.subr.mxu0 0.0
        %3426 = vmatpush1.msra.mxu0 0.0
        %3427 = vmatprep.mubr.f32.mxu0 0.0
        %3428 = vmatmul.mubr.f32.gmra.mrb[0].mxu0 %v3339
        %v3429 = vpop.f32.mrb[0].mxu0
        %v3430 = vadd.f32 %v3361, %v3429
        %v3431 = vpop.f32.mrb[0].mxu0
        %3432 = vdwg.mxu0
        %v3433 = vld [vmem:[#allocation30] sm:$0x1]
        %v3434 = vld [vmem:[#allocation31] sm:$0x1]
        %3435 = vadd.xlane.f32.xlu0 %v3430
        %v3436 = vpop.xlane.xlu0 %3435
        %v3437 = vmul.f32 %v3436, %v3102
        %v3438 = vsub.f32 %v3430, %v3437
        %v3439 = vmul.f32 %v3438, %v3438
        %3440 = vadd.xlane.f32.xlu0 %v3439
        %v3441 = vpop.xlane.xlu0 %3440
        %v3442 = vmul.f32 %v3441, %v3102
        %v3443 = vadd.f32 %v3442, 1e-05
        %v3444 = vrsqrt.pop %v3443
        %v3445 = vmul.f32 %v3438, %v3444
        %v3447 = vlaneseq
        %v3448 = vshrl.u32 %v3447, 7
        %v3449 = vsub.s32 0, %v3448
        %v3450 = vrot.slane %v3433, %v3449
        %v3452 = vmul.f32 %v3445, %v3450
        %v3454 = vlaneseq
        %v3455 = vshrl.u32 %v3454, 7
        %v3456 = vsub.s32 0, %v3455
        %v3457 = vrot.slane %v3434, %v3456
        %v3459 = vadd.f32 %v3452, %v3457
        %v3460 = vadd.f32 %v3239, %v3459
        %3461 = vst [vmem:[%s1024] sm:$0xff] %v3460
        %s3462 = sand.u32 %s534, 1
        %s3463 = scalar_lea.sflag [#allocation4], %s3462
        %s3464 = sand.u32 %s534, 1
        %s3465 = smul.addr %s3464, 8
        %s3466 = scalar_lea.vmem [#allocation36], %s3465
        // Predicated region
        $region197: #{tpu_custom_call.1} parent=107 // pred_check
          %p3467 = pneg %p544
        $region198: #{tpu_custom_call.1} parent=107 // pred_check_branch
          %3469 = sbr.rel (%p3467) target = $region200
        $region199: #{tpu_custom_call.1} parent=107 // pred_region
          %s3471 = ssub.s32 128, 128
          %3472 = vsyncadd %s3463, %s3471
          %s3473 = smul.addr %s49, 128
          %s3474 = scalar_lea.hbm %s22, %s3473
          %s3476 = sshll.u32 %s3466, 4
          %s3477 = int_to_ptr.vmem [resolvable:$true] %s3476
          %3479 = dma.vmem_to_hbm [thread:$0]  %s3477, 128, %s3474, %s3463
        $region200: #{tpu_custom_call.1} parent=107 // pred_fallthru
          _
      $region108: #{tpu_custom_call.1} parent=5 // pred_fallthru
        _
      %p3480 = scmp.le.s32.totalorder 2, %s44
      // Predicated region
      $region201: #{tpu_custom_call.1} parent=5 // pred_check
        %p3481 = pneg %p3480
      $region202: #{tpu_custom_call.1} parent=5 // pred_check_branch
        %3483 = sbr.rel (%p3481) target = $region204
      $region203: #{tpu_custom_call.1} parent=5 // pred_region
        %s3484 = ssub.s32 %s44, 2
        // Predicated region
        $region205: #{tpu_custom_call.1} parent=203 // pred_check
          %p3485 = pneg %p550
        $region206: #{tpu_custom_call.1} parent=203 // pred_check_branch
          %3487 = sbr.rel (%p3485) target = $region208
        $region207: #{tpu_custom_call.1} parent=203 // pred_region
          %s3488 = sand.u32 %s535, 1
          %s3489 = scalar_lea.sflag [#allocation4], %s3488
          %s3490 = sand.u32 %s535, 1
          %s3491 = smul.addr %s3490, 8
          %s3492 = scalar_lea.vmem [#allocation36], %s3491
          %3493 = dma.done %s3489, 128
        $region208: #{tpu_custom_call.1} parent=203 // pred_fallthru
          _
      $region204: #{tpu_custom_call.1} parent=5 // pred_fallthru
        _
    $region6: #{tpu_custom_call.1} parent=1 // loop_footer
      %s48 = sadd.s32 1, %s44
    $region7: #{tpu_custom_call.1} parent=1 // loop_footer_branch
      %43 = sbr.rel target = $region3
    $region8: #{tpu_custom_call.1} parent=1 // loop_exit
      _
    %3494 = vsyncpa [#allocation3], 1
    %s3495 = scalar_lea.sflag [#allocation3], 1
    %3496 = vsyncpa %s3495, 1
    %3497 = vsyncpa [#allocation6], 1
    %3498 = vsyncpa [#allocation11], 1
    %3499 = vsyncpa [#allocation14], 1
    %3500 = vsyncpa [#allocation17], 1
    %3501 = vsyncpa [#allocation20], 1
    %3502 = vsyncpa [#allocation23], 1
    %3503 = vsyncpa [#allocation26], 1
    %3504 = vsyncpa [#allocation29], 1
    %3505 = vsyncpa [#allocation32], 1
    %3506 = vsyncpa [#allocation35], 1
    %3507 = vsyncpa [#allocation4], 1
    %s3508 = scalar_lea.sflag [#allocation4], 1
    %3509 = vsyncpa %s3508, 1

</llo_original>
